<compile_context>
chip_gen: v5e
topology: v5e:2x2
jax: 0.10.0
libtpu: 0.0.40
codegen_flags: <defaults>
</compile_context>

<pallas_src>
import math
import numpy as np
import jax
import jax.numpy as jnp
from jax.experimental import pallas as pl
from jax.experimental.pallas import tpu as pltpu

# ----------------------- module hyper-parameters (mirrors __init__) ----------
N_OCTAVES = 8
N_SCALE_DEGREES = 7
N_PITCHED_FEATURES = 5
OS = N_OCTAVES * N_SCALE_DEGREES            # 56 (octave, scale-degree) pairs

MELODY_SIZE = 16
BEAT_SIZE = 8
BAR_SIZE = 8
INSTRUMENT_SIZE = 16


def get_mean_size(*values, factor=1.0):
    return math.ceil(float(np.mean(values)) * factor)


BEATS_LIN = get_mean_size(BEAT_SIZE, MELODY_SIZE)                      # 12
BARS_LIN = get_mean_size(BAR_SIZE, MELODY_SIZE)                        # 12
INSTR_LIN = get_mean_size(INSTRUMENT_SIZE, MELODY_SIZE, factor=0.25)   # 4
CH_LIN = get_mean_size(N_PITCHED_FEATURES, MELODY_SIZE)                # 11
CH_LIN_P = MELODY_SIZE                                                 # 16 (padded)
DIN = BEATS_LIN + BARS_LIN + INSTR_LIN                                 # 28

OM = N_OCTAVES * MELODY_SIZE          # 128  octave projection width
SM = N_SCALE_DEGREES * MELODY_SIZE    # 112  scale-degree projection width
OSD = OM + SM                         # 240  fused oct+sd projection width
CH_IN = OS * N_PITCHED_FEATURES       # 280  lane-dense channel input width
F_OUT = OS * MELODY_SIZE              # 896  lane-dense output width (7*128)
GRP = N_OCTAVES * MELODY_SIZE         # 128  lane group (8 os blocks * 16)
N_GRP = F_OUT // GRP                  # 7    lane groups

_HI = jax.lax.Precision.HIGHEST
_BF16 = jnp.bfloat16


# ----------------------------- small jnp helpers ------------------------------
def leaky(v):
    return jnp.where(v > 0, v, 0.01 * v)   # F.leaky_relu, negative_slope=0.01


def cat_with_broadcast(tensors, axis=-1):
    assert axis == -1
    lead = jnp.broadcast_shapes(*[t.shape[:-1] for t in tensors])
    return jnp.concatenate(
        [jnp.broadcast_to(t, lead + (t.shape[-1],)) for t in tensors], axis=-1)


def combine(x, dim):
    # combine() from style/model.py, single-tensor path, safe=True
    axes = tuple(i for i in range(x.ndim) if i != dim)
    ssq = jnp.sum(x * x, axis=axes, keepdims=True)
    norm = jnp.sqrt(1.0 + ssq)
    return jnp.sum(x * norm, axis=dim) / jnp.sum(norm)


# ------------------------------- parameters ----------------------------------
def init_linear(key, fan_in, fan_out):
    kw, kb = jax.random.split(key)
    bound = 1.0 / math.sqrt(fan_in)
    w = jax.random.uniform(kw, (fan_in, fan_out), jnp.float32, -bound, bound)
    b = jax.random.uniform(kb, (fan_out,), jnp.float32, -bound, bound)
    return w, b


def make_params(key):
    ks = jax.random.split(key, 7)
    p = {}
    p["w_beats"], p["b_beats"] = init_linear(ks[0], BEAT_SIZE, BEATS_LIN)
    p["w_bars"], p["b_bars"] = init_linear(ks[1], BAR_SIZE, BARS_LIN)
    p["w_instr"], p["b_instr"] = init_linear(ks[2], INSTRUMENT_SIZE, INSTR_LIN)
    p["w_oct"], p["b_oct"] = init_linear(ks[3], DIN, MELODY_SIZE * N_OCTAVES)
    p["w_sd"], p["b_sd"] = init_linear(ks[4], DIN, MELODY_SIZE * N_SCALE_DEGREES)
    p["w_ch"], p["b_ch"] = init_linear(ks[5], N_PITCHED_FEATURES, CH_LIN)
    p["w_l"], p["b_l"] = init_linear(ks[6], MELODY_SIZE + CH_LIN, MELODY_SIZE)
    return p


def prepare_kernel_params(p):
    """Lane-dense, bf16, VMEM-resident kernel weights (built once on host)."""
    f32 = jnp.float32
    # Fused octave + scale-degree projection: y @ (DIN, 240) + (1, 240).
    w_osd = jnp.concatenate([p["w_oct"], p["w_sd"]], axis=1).astype(_BF16)   # (28, 240)
    b_osd = jnp.concatenate([p["b_oct"], p["b_sd"]]).reshape(1, OSD)          # (1, 240) f32

    # 0/1 expansion matrices realising the (o, s) outer sum as MXU matmuls:
    #   e_oct[o*16+f, (o*7+s)*16+f] = 1 ;  e_sd[s*16+f, (o*7+s)*16+f] = 1
    eye16 = jnp.eye(MELODY_SIZE, dtype=f32)
    e_oct = jnp.kron(jnp.eye(N_OCTAVES, dtype=f32),
                     jnp.kron(jnp.ones((1, N_SCALE_DEGREES), f32), eye16))   # (128, 896)
    e_sd = jnp.kron(jnp.ones((1, N_OCTAVES), f32),
                    jnp.eye(SM, dtype=f32))                                  # (112, 896)

    # channels_linear: pad CH_LIN 11 -> 16 so each os block is 16-wide and the
    # lane-dense hidden width is 56*16 = 896 (128-aligned).  Pad cols are 0.
    w_ch_pad = jnp.pad(p["w_ch"], ((0, 0), (0, CH_LIN_P - CH_LIN)))          # (5, 16)
    b_ch_pad = jnp.pad(p["b_ch"], (0, CH_LIN_P - CH_LIN))                    # (16,)
    w_ch_bd = jnp.kron(jnp.eye(OS, dtype=f32), w_ch_pad)                     # (280, 896)
    b_ch_t = jnp.tile(b_ch_pad, OS).reshape(1, F_OUT)                        # (1, 896) f32

    # Final linear: one SHARED kron(I_8, w) weight per 128-lane group.
    w_l1_sh = jnp.kron(jnp.eye(N_OCTAVES, dtype=f32), p["w_l"][:MELODY_SIZE])   # (128,128)
    w_l2_pad = jnp.pad(p["w_l"][MELODY_SIZE:], ((0, CH_LIN_P - CH_LIN), (0, 0)))  # (16,16)
    w_l2_sh = jnp.kron(jnp.eye(N_OCTAVES, dtype=f32), w_l2_pad)                 # (128,128)
    b_l_g = jnp.tile(p["b_l"], N_OCTAVES).reshape(1, GRP)                       # (1, 128) f32

    return dict(w_osd=w_osd, b_osd=b_osd,
                e_oct=e_oct.astype(_BF16), e_sd=e_sd.astype(_BF16),
                w_ch_bd=w_ch_bd.astype(_BF16), b_ch_t=b_ch_t,
                w_l1_sh=w_l1_sh.astype(_BF16), w_l2_sh=w_l2_sh.astype(_BF16),
                b_l_g=b_l_g)


# ------------------------------- Pallas kernel --------------------------------
def _melody_kernel(y_ref, ch_ref, wosd_ref, bosd_ref, eoct_ref, esd_ref,
                   wch_ref, bch_ref, wl1_ref, wl2_ref, bl_ref, out_ref):
    f32 = jnp.float32

    # Fused octave+scale-degree projection: (TN, 28)bf16 @ (28, 240)bf16.
    proj = (jnp.dot(y_ref[...], wosd_ref[...], preferred_element_type=f32)
            + bosd_ref[...])                                 # f32 bias add
    ol = leaky(proj[:, :OM]).astype(_BF16)                   # (TN, 128)
    sl = leaky(proj[:, OM:]).astype(_BF16)                   # (TN, 112)

    # (o, s) outer sum as lane-dense (TN, 896) via exact 0/1 expansion matmuls.
    x1 = leaky(jnp.dot(ol, eoct_ref[...], preferred_element_type=f32)
               + jnp.dot(sl, esd_ref[...], preferred_element_type=f32))

    # Channel path: (TN, 280)bf16 @ block-diag(56 x (5, 16)) -> (TN, 896).
    # Padded feature columns are exactly zero (zero weights, zero bias).
    x2 = leaky(jnp.dot(ch_ref[...], wch_ref[...], preferred_element_type=f32)
               + bch_ref[...])

    x1b = x1.astype(_BF16)
    x2b = x2.astype(_BF16)
    bl = bl_ref[...]
    # Final linear: each 128-lane group holds 8 consecutive os blocks, so the
    # block-diagonal weight restricted to a group is the SAME kron(I_8, w)
    # (128, 128) weight for every group -> 7 small shared-weight matmuls,
    # each writing a 128-lane-aligned (unmasked) output slice.
    for g in range(N_GRP):
        lo = g * GRP
        o = (jnp.dot(x1b[:, lo:lo + GRP], wl1_ref[...], preferred_element_type=f32)
             + jnp.dot(x2b[:, lo:lo + GRP], wl2_ref[...], preferred_element_type=f32)
             + bl)
        out_ref[:, lo:lo + GRP] = leaky(o)


def _choose_tn(n, target=512):
    """Row tile: multiple of 16 sublanes (bf16 input blocks), capped at
    `target`, and small enough that the grid has >= 4 steps (>= 2 per v7x
    TensorCore, keeping i+1 prefetch overlap on both cores) when n allows."""
    tn = min(target, max(16, (n // 4) // 16 * 16))
    return tn


def _melody_core(y_flat, ch_flat, kp, tn):
    n = y_flat.shape[0]
    assert n % tn == 0
    const = lambda i: (0, 0)
    return pl.pallas_call(
        _melody_kernel,
        out_shape=jax.ShapeDtypeStruct((n, F_OUT), jnp.float32),
        grid_spec=pltpu.PrefetchScalarGridSpec(
            num_scalar_prefetch=0,
            grid=(n // tn,),
            in_specs=[
                pl.BlockSpec((tn, DIN), lambda i: (i, 0)),       # y positions (bf16)
                pl.BlockSpec((tn, CH_IN), lambda i: (i, 0)),     # channels (bf16)
                pl.BlockSpec((DIN, OSD), const),                 # fused oct+sd W
                pl.BlockSpec((1, OSD), const),                   # fused oct+sd b
                pl.BlockSpec((OM, F_OUT), const),                # octave expander
                pl.BlockSpec((SM, F_OUT), const),                # scale-deg expander
                pl.BlockSpec((CH_IN, F_OUT), const),             # block-diag w_ch
                pl.BlockSpec((1, F_OUT), const),                 # tiled b_ch
                pl.BlockSpec((GRP, GRP), const),                 # shared w_l1 (128,128)
                pl.BlockSpec((GRP, GRP), const),                 # shared w_l2 (128,128)
                pl.BlockSpec((1, GRP), const),                   # group bias b_l
            ],
            out_specs=pl.BlockSpec((tn, F_OUT), lambda i: (i, 0)),
        ),
        compiler_params=pltpu.CompilerParams(
            dimension_semantics=("parallel",),
            vmem_limit_bytes=32 * 1024 * 1024,   # safe on v7x's 64 MiB VMEM
        ),
    )(y_flat, ch_flat, kp["w_osd"], kp["b_osd"], kp["e_oct"], kp["e_sd"],
      kp["w_ch_bd"], kp["b_ch_t"], kp["w_l1_sh"], kp["w_l2_sh"], kp["b_l_g"])


# --------------------------- full forward (kernel path) -----------------------
def melody_encoder_pallas(p, kp, beats, bars, channels, instruments):
    # Tiny pre-broadcast linears stay in XLA (negligible work).
    xb = leaky(jnp.matmul(beats, p["w_beats"], precision=_HI) + p["b_beats"])
    x1 = xb[..., None, :]
    xr = leaky(jnp.matmul(bars, p["w_bars"], precision=_HI) + p["b_bars"])
    x2 = xr.reshape(xr.shape[0], 1, xr.shape[1], 1, 1, -1)
    xi = leaky(jnp.matmul(instruments, p["w_instr"], precision=_HI) + p["b_instr"])
    x3 = xi.reshape(xi.shape[0], xi.shape[1], 1, 1, 1, -1)
    y = cat_with_broadcast([x1, x2, x3])                     # (B,C,NB,NT,1,DIN)

    B, C, NB, NT = y.shape[:4]
    n = B * C * NB * NT
    # bf16 at the kernel boundary: halves the per-step y/ch input DMA and the
    # MXU consumes bf16 anyway (accumulation stays f32 inside the kernel).
    y_flat = y.reshape(n, DIN).astype(_BF16)
    ch = jnp.broadcast_to(channels, (B, C, NB, NT, 1, OS, N_PITCHED_FEATURES))
    ch_flat = ch.reshape(n, CH_IN).astype(_BF16)             # lane-dense channels

    tn = _choose_tn(n)
    n_pad = pl.cdiv(n, tn) * tn
    if n_pad != n:
        # Padded tail rows compute leaky(bias) garbage; they are sliced off
        # below and must never enter a reduction.
        y_flat = jnp.pad(y_flat, ((0, n_pad - n), (0, 0)))
        ch_flat = jnp.pad(ch_flat, ((0, n_pad - n), (0, 0)))

    out = _melody_core(y_flat, ch_flat, kp, tn)              # (n_pad, 896) f32
    x = out[:n].reshape(B, C, NB, NT, 1, OS, MELODY_SIZE)    # pure reshape
    # TODO(synk): combine()'s norm is a global reduction over the whole kernel
    # output (a second full pass), so it stays in plain JAX after the kernel.
    return combine(x, dim=1)


# ------------------------------ pure-JAX reference ----------------------------
def melody_encoder_reference(p, beats, bars, channels, instruments):
    P = _HI
    x = leaky(jnp.matmul(beats, p["w_beats"], precision=P) + p["b_beats"])
    x1 = x[..., None, :]
    x = leaky(jnp.matmul(bars, p["w_bars"], precision=P) + p["b_bars"])
    x2 = x.reshape(x.shape[0], 1, x.shape[1], 1, 1, -1)
    x = leaky(jnp.matmul(instruments, p["w_instr"], precision=P) + p["b_instr"])
    x3 = x.reshape(x.shape[0], x.shape[1], 1, 1, 1, -1)
    y = cat_with_broadcast([x1, x2, x3])
    x = jnp.matmul(y, p["w_oct"], precision=P) + p["b_oct"]
    x = leaky(x.reshape(x.shape[:-1] + (N_OCTAVES, MELODY_SIZE)))
    x1o = x[..., None, :]                                    # unsqueeze(-2)
    x = jnp.matmul(y, p["w_sd"], precision=P) + p["b_sd"]
    x = leaky(x.reshape(x.shape[:-1] + (N_SCALE_DEGREES, MELODY_SIZE)))
    x2s = x[..., None, :, :]                                 # unsqueeze(-3)
    x = leaky(x1o + x2s)                                     # (B,C,NB,NT,1,8,7,MEL)
    x1f = x.reshape(x.shape[:5] + (OS, MELODY_SIZE))         # squash_dims(x, 5, 7)
    x2c = leaky(jnp.matmul(channels, p["w_ch"], precision=P) + p["b_ch"])
    x = cat_with_broadcast([x1f, x2c])
    x = leaky(jnp.matmul(x, p["w_l"], precision=P) + p["b_l"])
    return combine(x, dim=1)


# ------------------------------------ main ------------------------------------
if __name__ == "__main__":
    B, C, NB, NT = 2, 3, 2, 4       # batch, channels, bars, beats-per-bar

    key = jax.random.PRNGKey(0)
    kparam, kdata = jax.random.split(key)
    params = make_params(kparam)
    kparams = prepare_kernel_params(params)

    k1, k2, k3, k4 = jax.random.split(kdata, 4)
    beats = jax.random.normal(k1, (B, 1, NB, NT, BEAT_SIZE), jnp.float32)
    bars = jax.random.normal(k2, (B, NB, BAR_SIZE), jnp.float32)
    channels = jax.random.normal(
        k3, (B, C, NB, NT, 1, OS, N_PITCHED_FEATURES), jnp.float32)
    instruments = jax.random.normal(k4, (B, C, INSTRUMENT_SIZE), jnp.float32)

    out = jax.jit(melody_encoder_pallas)(
        params, kparams, beats, bars, channels, instruments)
    out = jax.block_until_ready(out)

    ref = jax.block_until_ready(
        melody_encoder_reference(params, beats, bars, channels, instruments))

    assert out.shape == (B, NB, NT, 1, OS, MELODY_SIZE), out.shape
    # bf16 MXU operands (f32 accumulation) vs f32 HIGHEST-precision reference.
    np.testing.assert_allclose(np.asarray(out), np.asarray(ref),
                               rtol=2e-2, atol=2e-2)
    print("KERNEL_OK")
</pallas_src>

<mosaic_0001>
module attributes {stable_mosaic.version = 11 : i64} {
  func.func @_melody_kernel(%arg0: i32, %arg1: memref<16x28xbf16, #tpu.memory_space<vmem>>, %arg2: memref<16x280xbf16, #tpu.memory_space<vmem>>, %arg3: memref<28x240xbf16, #tpu.memory_space<vmem>>, %arg4: memref<1x240xf32, #tpu.memory_space<vmem>>, %arg5: memref<128x896xbf16, #tpu.memory_space<vmem>>, %arg6: memref<112x896xbf16, #tpu.memory_space<vmem>>, %arg7: memref<280x896xbf16, #tpu.memory_space<vmem>>, %arg8: memref<1x896xf32, #tpu.memory_space<vmem>>, %arg9: memref<128x128xbf16, #tpu.memory_space<vmem>>, %arg10: memref<128x128xbf16, #tpu.memory_space<vmem>>, %arg11: memref<1x128xf32, #tpu.memory_space<vmem>>, %arg12: memref<16x896xf32, #tpu.memory_space<vmem>>) attributes {dimension_semantics = [#tpu.dimension_semantics<parallel>], iteration_bounds = array<i64: 3>, scalar_prefetch = 0 : i64, scratch_operands = 0 : i64, tpu.core_type = #tpu.core_type<tc>, window_params = [{transform_indices = @transform_0, window_bounds = array<i64: 16, 28>}, {transform_indices = @transform_1, window_bounds = array<i64: 16, 280>}, {pipeline_mode = #tpu.pipeline_mode<synchronous>, transform_indices = @transform_2, window_bounds = array<i64: 28, 240>}, {pipeline_mode = #tpu.pipeline_mode<synchronous>, transform_indices = @transform_3, window_bounds = array<i64: 1, 240>}, {pipeline_mode = #tpu.pipeline_mode<synchronous>, transform_indices = @transform_4, window_bounds = array<i64: 128, 896>}, {pipeline_mode = #tpu.pipeline_mode<synchronous>, transform_indices = @transform_5, window_bounds = array<i64: 112, 896>}, {pipeline_mode = #tpu.pipeline_mode<synchronous>, transform_indices = @transform_6, window_bounds = array<i64: 280, 896>}, {pipeline_mode = #tpu.pipeline_mode<synchronous>, transform_indices = @transform_7, window_bounds = array<i64: 1, 896>}, {pipeline_mode = #tpu.pipeline_mode<synchronous>, transform_indices = @transform_8, window_bounds = array<i64: 128, 128>}, {pipeline_mode = #tpu.pipeline_mode<synchronous>, transform_indices = @transform_9, window_bounds = array<i64: 128, 128>}, {pipeline_mode = #tpu.pipeline_mode<synchronous>, transform_indices = @transform_10, window_bounds = array<i64: 1, 128>}, {transform_indices = @transform_11, window_bounds = array<i64: 16, 896>}]} {
    %c0 = arith.constant 0 : index
    %c0_0 = arith.constant 0 : index
    %0 = vector.load %arg1[%c0, %c0_0] : memref<16x28xbf16, #tpu.memory_space<vmem>>, vector<16x28xbf16>
    %c0_1 = arith.constant 0 : index
    %c0_2 = arith.constant 0 : index
    %1 = vector.load %arg3[%c0_1, %c0_2] : memref<28x240xbf16, #tpu.memory_space<vmem>>, vector<28x240xbf16>
    %cst = arith.constant dense<0.000000e+00> : vector<16x240xf32>
    %2 = tpu.matmul %0, %1, %cst {dimension_numbers = #tpu.dot_dimension_numbers<[1], [0], [0], [1], [0, 0, 1, 1], [], []>} : vector<16x28xbf16>, vector<28x240xbf16>, vector<16x240xf32> -> vector<16x240xf32>
    %c0_3 = arith.constant 0 : index
    %c0_4 = arith.constant 0 : index
    %3 = vector.load %arg4[%c0_3, %c0_4] : memref<1x240xf32, #tpu.memory_space<vmem>>, vector<1x240xf32>
    %4 = vector.broadcast %3 : vector<1x240xf32> to vector<16x240xf32>
    %5 = arith.addf %2, %4 : vector<16x240xf32>
    %6 = vector.extract_strided_slice %5 {offsets = [0, 0], sizes = [16, 128], strides = [1, 1]} : vector<16x240xf32> to vector<16x128xf32>
    %cst_5 = arith.constant 0.000000e+00 : f32
    %7 = vector.broadcast %cst_5 : f32 to vector<16x128xf32>
    %8 = arith.cmpf ogt, %6, %7 : vector<16x128xf32>
    %cst_6 = arith.constant 0.00999999977 : f32
    %9 = vector.broadcast %cst_6 : f32 to vector<16x128xf32>
    %10 = arith.mulf %9, %6 : vector<16x128xf32>
    %11 = arith.select %8, %6, %10 : vector<16x128xi1>, vector<16x128xf32>
    %12 = arith.truncf %11 : vector<16x128xf32> to vector<16x128xbf16>
    %13 = vector.extract_strided_slice %5 {offsets = [0, 128], sizes = [16, 112], strides = [1, 1]} : vector<16x240xf32> to vector<16x112xf32>
    %cst_7 = arith.constant 0.000000e+00 : f32
    %14 = vector.broadcast %cst_7 : f32 to vector<16x112xf32>
    %15 = arith.cmpf ogt, %13, %14 : vector<16x112xf32>
    %cst_8 = arith.constant 0.00999999977 : f32
    %16 = vector.broadcast %cst_8 : f32 to vector<16x112xf32>
    %17 = arith.mulf %16, %13 : vector<16x112xf32>
    %18 = arith.select %15, %13, %17 : vector<16x112xi1>, vector<16x112xf32>
    %19 = arith.truncf %18 : vector<16x112xf32> to vector<16x112xbf16>
    %c0_9 = arith.constant 0 : index
    %c0_10 = arith.constant 0 : index
    %20 = vector.load %arg5[%c0_9, %c0_10] : memref<128x896xbf16, #tpu.memory_space<vmem>>, vector<128x896xbf16>
    %cst_11 = arith.constant dense<0.000000e+00> : vector<16x896xf32>
    %21 = tpu.matmul %12, %20, %cst_11 {dimension_numbers = #tpu.dot_dimension_numbers<[1], [0], [0], [1], [0, 0, 1, 1], [], []>} : vector<16x128xbf16>, vector<128x896xbf16>, vector<16x896xf32> -> vector<16x896xf32>
    %c0_12 = arith.constant 0 : index
    %c0_13 = arith.constant 0 : index
    %22 = vector.load %arg6[%c0_12, %c0_13] : memref<112x896xbf16, #tpu.memory_space<vmem>>, vector<112x896xbf16>
    %cst_14 = arith.constant dense<0.000000e+00> : vector<16x896xf32>
    %23 = tpu.matmul %19, %22, %cst_14 {dimension_numbers = #tpu.dot_dimension_numbers<[1], [0], [0], [1], [0, 0, 1, 1], [], []>} : vector<16x112xbf16>, vector<112x896xbf16>, vector<16x896xf32> -> vector<16x896xf32>
    %24 = arith.addf %21, %23 : vector<16x896xf32>
    %cst_15 = arith.constant 0.000000e+00 : f32
    %25 = vector.broadcast %cst_15 : f32 to vector<16x896xf32>
    %26 = arith.cmpf ogt, %24, %25 : vector<16x896xf32>
    %cst_16 = arith.constant 0.00999999977 : f32
    %27 = vector.broadcast %cst_16 : f32 to vector<16x896xf32>
    %28 = arith.mulf %27, %24 : vector<16x896xf32>
    %29 = arith.select %26, %24, %28 : vector<16x896xi1>, vector<16x896xf32>
    %c0_17 = arith.constant 0 : index
    %c0_18 = arith.constant 0 : index
    %30 = vector.load %arg2[%c0_17, %c0_18] : memref<16x280xbf16, #tpu.memory_space<vmem>>, vector<16x280xbf16>
    %c0_19 = arith.constant 0 : index
    %c0_20 = arith.constant 0 : index
    %31 = vector.load %arg7[%c0_19, %c0_20] : memref<280x896xbf16, #tpu.memory_space<vmem>>, vector<280x896xbf16>
    %cst_21 = arith.constant dense<0.000000e+00> : vector<16x896xf32>
    %32 = tpu.matmul %30, %31, %cst_21 {dimension_numbers = #tpu.dot_dimension_numbers<[1], [0], [0], [1], [0, 0, 1, 1], [], []>} : vector<16x280xbf16>, vector<280x896xbf16>, vector<16x896xf32> -> vector<16x896xf32>
    %c0_22 = arith.constant 0 : index
    %c0_23 = arith.constant 0 : index
    %33 = vector.load %arg8[%c0_22, %c0_23] : memref<1x896xf32, #tpu.memory_space<vmem>>, vector<1x896xf32>
    %34 = vector.broadcast %33 : vector<1x896xf32> to vector<16x896xf32>
    %35 = arith.addf %32, %34 : vector<16x896xf32>
    %cst_24 = arith.constant 0.000000e+00 : f32
    %36 = vector.broadcast %cst_24 : f32 to vector<16x896xf32>
    %37 = arith.cmpf ogt, %35, %36 : vector<16x896xf32>
    %cst_25 = arith.constant 0.00999999977 : f32
    %38 = vector.broadcast %cst_25 : f32 to vector<16x896xf32>
    %39 = arith.mulf %38, %35 : vector<16x896xf32>
    %40 = arith.select %37, %35, %39 : vector<16x896xi1>, vector<16x896xf32>
    %41 = arith.truncf %29 : vector<16x896xf32> to vector<16x896xbf16>
    %42 = arith.truncf %40 : vector<16x896xf32> to vector<16x896xbf16>
    %c0_26 = arith.constant 0 : index
    %c0_27 = arith.constant 0 : index
    %43 = vector.load %arg11[%c0_26, %c0_27] : memref<1x128xf32, #tpu.memory_space<vmem>>, vector<1x128xf32>
    %44 = vector.extract_strided_slice %41 {offsets = [0, 0], sizes = [16, 128], strides = [1, 1]} : vector<16x896xbf16> to vector<16x128xbf16>
    %c0_28 = arith.constant 0 : index
    %c0_29 = arith.constant 0 : index
    %45 = vector.load %arg9[%c0_28, %c0_29] : memref<128x128xbf16, #tpu.memory_space<vmem>>, vector<128x128xbf16>
    %cst_30 = arith.constant dense<0.000000e+00> : vector<16x128xf32>
    %46 = tpu.matmul %44, %45, %cst_30 {dimension_numbers = #tpu.dot_dimension_numbers<[1], [0], [0], [1], [0, 0, 1, 1], [], []>} : vector<16x128xbf16>, vector<128x128xbf16>, vector<16x128xf32> -> vector<16x128xf32>
    %47 = vector.extract_strided_slice %42 {offsets = [0, 0], sizes = [16, 128], strides = [1, 1]} : vector<16x896xbf16> to vector<16x128xbf16>
    %c0_31 = arith.constant 0 : index
    %c0_32 = arith.constant 0 : index
    %48 = vector.load %arg10[%c0_31, %c0_32] : memref<128x128xbf16, #tpu.memory_space<vmem>>, vector<128x128xbf16>
    %cst_33 = arith.constant dense<0.000000e+00> : vector<16x128xf32>
    %49 = tpu.matmul %47, %48, %cst_33 {dimension_numbers = #tpu.dot_dimension_numbers<[1], [0], [0], [1], [0, 0, 1, 1], [], []>} : vector<16x128xbf16>, vector<128x128xbf16>, vector<16x128xf32> -> vector<16x128xf32>
    %50 = arith.addf %46, %49 : vector<16x128xf32>
    %51 = vector.broadcast %43 : vector<1x128xf32> to vector<16x128xf32>
    %52 = arith.addf %50, %51 : vector<16x128xf32>
    %cst_34 = arith.constant 0.000000e+00 : f32
    %53 = vector.broadcast %cst_34 : f32 to vector<16x128xf32>
    %54 = arith.cmpf ogt, %52, %53 : vector<16x128xf32>
    %cst_35 = arith.constant 0.00999999977 : f32
    %55 = vector.broadcast %cst_35 : f32 to vector<16x128xf32>
    %56 = arith.mulf %55, %52 : vector<16x128xf32>
    %57 = arith.select %54, %52, %56 : vector<16x128xi1>, vector<16x128xf32>
    %c0_36 = arith.constant 0 : index
    %c0_37 = arith.constant 0 : index
    %58 = vector.load %arg12[%c0_36, %c0_37] : memref<16x896xf32, #tpu.memory_space<vmem>>, vector<16x128xf32>
    tpu.vector_store %arg12[%c0_36, %c0_37], %57 {strides = array<i32>} : memref<16x896xf32, #tpu.memory_space<vmem>>, vector<16x128xf32>,
    %59 = vector.extract_strided_slice %41 {offsets = [0, 128], sizes = [16, 128], strides = [1, 1]} : vector<16x896xbf16> to vector<16x128xbf16>
    %c0_38 = arith.constant 0 : index
    %c0_39 = arith.constant 0 : index
    %60 = vector.load %arg9[%c0_38, %c0_39] : memref<128x128xbf16, #tpu.memory_space<vmem>>, vector<128x128xbf16>
    %cst_40 = arith.constant dense<0.000000e+00> : vector<16x128xf32>
    %61 = tpu.matmul %59, %60, %cst_40 {dimension_numbers = #tpu.dot_dimension_numbers<[1], [0], [0], [1], [0, 0, 1, 1], [], []>} : vector<16x128xbf16>, vector<128x128xbf16>, vector<16x128xf32> -> vector<16x128xf32>
    %62 = vector.extract_strided_slice %42 {offsets = [0, 128], sizes = [16, 128], strides = [1, 1]} : vector<16x896xbf16> to vector<16x128xbf16>
    %c0_41 = arith.constant 0 : index
    %c0_42 = arith.constant 0 : index
    %63 = vector.load %arg10[%c0_41, %c0_42] : memref<128x128xbf16, #tpu.memory_space<vmem>>, vector<128x128xbf16>
    %cst_43 = arith.constant dense<0.000000e+00> : vector<16x128xf32>
    %64 = tpu.matmul %62, %63, %cst_43 {dimension_numbers = #tpu.dot_dimension_numbers<[1], [0], [0], [1], [0, 0, 1, 1], [], []>} : vector<16x128xbf16>, vector<128x128xbf16>, vector<16x128xf32> -> vector<16x128xf32>
    %65 = arith.addf %61, %64 : vector<16x128xf32>
    %66 = vector.broadcast %43 : vector<1x128xf32> to vector<16x128xf32>
    %67 = arith.addf %65, %66 : vector<16x128xf32>
    %cst_44 = arith.constant 0.000000e+00 : f32
    %68 = vector.broadcast %cst_44 : f32 to vector<16x128xf32>
    %69 = arith.cmpf ogt, %67, %68 : vector<16x128xf32>
    %cst_45 = arith.constant 0.00999999977 : f32
    %70 = vector.broadcast %cst_45 : f32 to vector<16x128xf32>
    %71 = arith.mulf %70, %67 : vector<16x128xf32>
    %72 = arith.select %69, %67, %71 : vector<16x128xi1>, vector<16x128xf32>
    %c0_46 = arith.constant 0 : index
    %c128 = arith.constant 128 : index
    %73 = vector.load %arg12[%c0_46, %c128] : memref<16x896xf32, #tpu.memory_space<vmem>>, vector<16x128xf32>
    tpu.vector_store %arg12[%c0_46, %c128], %72 {strides = array<i32>} : memref<16x896xf32, #tpu.memory_space<vmem>>, vector<16x128xf32>,
    %74 = vector.extract_strided_slice %41 {offsets = [0, 256], sizes = [16, 128], strides = [1, 1]} : vector<16x896xbf16> to vector<16x128xbf16>
    %c0_47 = arith.constant 0 : index
    %c0_48 = arith.constant 0 : index
    %75 = vector.load %arg9[%c0_47, %c0_48] : memref<128x128xbf16, #tpu.memory_space<vmem>>, vector<128x128xbf16>
    %cst_49 = arith.constant dense<0.000000e+00> : vector<16x128xf32>
    %76 = tpu.matmul %74, %75, %cst_49 {dimension_numbers = #tpu.dot_dimension_numbers<[1], [0], [0], [1], [0, 0, 1, 1], [], []>} : vector<16x128xbf16>, vector<128x128xbf16>, vector<16x128xf32> -> vector<16x128xf32>
    %77 = vector.extract_strided_slice %42 {offsets = [0, 256], sizes = [16, 128], strides = [1, 1]} : vector<16x896xbf16> to vector<16x128xbf16>
    %c0_50 = arith.constant 0 : index
    %c0_51 = arith.constant 0 : index
    %78 = vector.load %arg10[%c0_50, %c0_51] : memref<128x128xbf16, #tpu.memory_space<vmem>>, vector<128x128xbf16>
    %cst_52 = arith.constant dense<0.000000e+00> : vector<16x128xf32>
    %79 = tpu.matmul %77, %78, %cst_52 {dimension_numbers = #tpu.dot_dimension_numbers<[1], [0], [0], [1], [0, 0, 1, 1], [], []>} : vector<16x128xbf16>, vector<128x128xbf16>, vector<16x128xf32> -> vector<16x128xf32>
    %80 = arith.addf %76, %79 : vector<16x128xf32>
    %81 = vector.broadcast %43 : vector<1x128xf32> to vector<16x128xf32>
    %82 = arith.addf %80, %81 : vector<16x128xf32>
    %cst_53 = arith.constant 0.000000e+00 : f32
    %83 = vector.broadcast %cst_53 : f32 to vector<16x128xf32>
    %84 = arith.cmpf ogt, %82, %83 : vector<16x128xf32>
    %cst_54 = arith.constant 0.00999999977 : f32
    %85 = vector.broadcast %cst_54 : f32 to vector<16x128xf32>
    %86 = arith.mulf %85, %82 : vector<16x128xf32>
    %87 = arith.select %84, %82, %86 : vector<16x128xi1>, vector<16x128xf32>
    %c0_55 = arith.constant 0 : index
    %c256 = arith.constant 256 : index
    %88 = vector.load %arg12[%c0_55, %c256] : memref<16x896xf32, #tpu.memory_space<vmem>>, vector<16x128xf32>
    tpu.vector_store %arg12[%c0_55, %c256], %87 {strides = array<i32>} : memref<16x896xf32, #tpu.memory_space<vmem>>, vector<16x128xf32>,
    %89 = vector.extract_strided_slice %41 {offsets = [0, 384], sizes = [16, 128], strides = [1, 1]} : vector<16x896xbf16> to vector<16x128xbf16>
    %c0_56 = arith.constant 0 : index
    %c0_57 = arith.constant 0 : index
    %90 = vector.load %arg9[%c0_56, %c0_57] : memref<128x128xbf16, #tpu.memory_space<vmem>>, vector<128x128xbf16>
    %cst_58 = arith.constant dense<0.000000e+00> : vector<16x128xf32>
    %91 = tpu.matmul %89, %90, %cst_58 {dimension_numbers = #tpu.dot_dimension_numbers<[1], [0], [0], [1], [0, 0, 1, 1], [], []>} : vector<16x128xbf16>, vector<128x128xbf16>, vector<16x128xf32> -> vector<16x128xf32>
    %92 = vector.extract_strided_slice %42 {offsets = [0, 384], sizes = [16, 128], strides = [1, 1]} : vector<16x896xbf16> to vector<16x128xbf16>
    %c0_59 = arith.constant 0 : index
    %c0_60 = arith.constant 0 : index
    %93 = vector.load %arg10[%c0_59, %c0_60] : memref<128x128xbf16, #tpu.memory_space<vmem>>, vector<128x128xbf16>
    %cst_61 = arith.constant dense<0.000000e+00> : vector<16x128xf32>
    %94 = tpu.matmul %92, %93, %cst_61 {dimension_numbers = #tpu.dot_dimension_numbers<[1], [0], [0], [1], [0, 0, 1, 1], [], []>} : vector<16x128xbf16>, vector<128x128xbf16>, vector<16x128xf32> -> vector<16x128xf32>
    %95 = arith.addf %91, %94 : vector<16x128xf32>
    %96 = vector.broadcast %43 : vector<1x128xf32> to vector<16x128xf32>
    %97 = arith.addf %95, %96 : vector<16x128xf32>
    %cst_62 = arith.constant 0.000000e+00 : f32
    %98 = vector.broadcast %cst_62 : f32 to vector<16x128xf32>
    %99 = arith.cmpf ogt, %97, %98 : vector<16x128xf32>
    %cst_63 = arith.constant 0.00999999977 : f32
    %100 = vector.broadcast %cst_63 : f32 to vector<16x128xf32>
    %101 = arith.mulf %100, %97 : vector<16x128xf32>
    %102 = arith.select %99, %97, %101 : vector<16x128xi1>, vector<16x128xf32>
    %c0_64 = arith.constant 0 : index
    %c384 = arith.constant 384 : index
    %103 = vector.load %arg12[%c0_64, %c384] : memref<16x896xf32, #tpu.memory_space<vmem>>, vector<16x128xf32>
    tpu.vector_store %arg12[%c0_64, %c384], %102 {strides = array<i32>} : memref<16x896xf32, #tpu.memory_space<vmem>>, vector<16x128xf32>,
    %104 = vector.extract_strided_slice %41 {offsets = [0, 512], sizes = [16, 128], strides = [1, 1]} : vector<16x896xbf16> to vector<16x128xbf16>
    %c0_65 = arith.constant 0 : index
    %c0_66 = arith.constant 0 : index
    %105 = vector.load %arg9[%c0_65, %c0_66] : memref<128x128xbf16, #tpu.memory_space<vmem>>, vector<128x128xbf16>
    %cst_67 = arith.constant dense<0.000000e+00> : vector<16x128xf32>
    %106 = tpu.matmul %104, %105, %cst_67 {dimension_numbers = #tpu.dot_dimension_numbers<[1], [0], [0], [1], [0, 0, 1, 1], [], []>} : vector<16x128xbf16>, vector<128x128xbf16>, vector<16x128xf32> -> vector<16x128xf32>
    %107 = vector.extract_strided_slice %42 {offsets = [0, 512], sizes = [16, 128], strides = [1, 1]} : vector<16x896xbf16> to vector<16x128xbf16>
    %c0_68 = arith.constant 0 : index
    %c0_69 = arith.constant 0 : index
    %108 = vector.load %arg10[%c0_68, %c0_69] : memref<128x128xbf16, #tpu.memory_space<vmem>>, vector<128x128xbf16>
    %cst_70 = arith.constant dense<0.000000e+00> : vector<16x128xf32>
    %109 = tpu.matmul %107, %108, %cst_70 {dimension_numbers = #tpu.dot_dimension_numbers<[1], [0], [0], [1], [0, 0, 1, 1], [], []>} : vector<16x128xbf16>, vector<128x128xbf16>, vector<16x128xf32> -> vector<16x128xf32>
    %110 = arith.addf %106, %109 : vector<16x128xf32>
    %111 = vector.broadcast %43 : vector<1x128xf32> to vector<16x128xf32>
    %112 = arith.addf %110, %111 : vector<16x128xf32>
    %cst_71 = arith.constant 0.000000e+00 : f32
    %113 = vector.broadcast %cst_71 : f32 to vector<16x128xf32>
    %114 = arith.cmpf ogt, %112, %113 : vector<16x128xf32>
    %cst_72 = arith.constant 0.00999999977 : f32
    %115 = vector.broadcast %cst_72 : f32 to vector<16x128xf32>
    %116 = arith.mulf %115, %112 : vector<16x128xf32>
    %117 = arith.select %114, %112, %116 : vector<16x128xi1>, vector<16x128xf32>
    %c0_73 = arith.constant 0 : index
    %c512 = arith.constant 512 : index
    %118 = vector.load %arg12[%c0_73, %c512] : memref<16x896xf32, #tpu.memory_space<vmem>>, vector<16x128xf32>
    tpu.vector_store %arg12[%c0_73, %c512], %117 {strides = array<i32>} : memref<16x896xf32, #tpu.memory_space<vmem>>, vector<16x128xf32>,
    %119 = vector.extract_strided_slice %41 {offsets = [0, 640], sizes = [16, 128], strides = [1, 1]} : vector<16x896xbf16> to vector<16x128xbf16>
    %c0_74 = arith.constant 0 : index
    %c0_75 = arith.constant 0 : index
    %120 = vector.load %arg9[%c0_74, %c0_75] : memref<128x128xbf16, #tpu.memory_space<vmem>>, vector<128x128xbf16>
    %cst_76 = arith.constant dense<0.000000e+00> : vector<16x128xf32>
    %121 = tpu.matmul %119, %120, %cst_76 {dimension_numbers = #tpu.dot_dimension_numbers<[1], [0], [0], [1], [0, 0, 1, 1], [], []>} : vector<16x128xbf16>, vector<128x128xbf16>, vector<16x128xf32> -> vector<16x128xf32>
    %122 = vector.extract_strided_slice %42 {offsets = [0, 640], sizes = [16, 128], strides = [1, 1]} : vector<16x896xbf16> to vector<16x128xbf16>
    %c0_77 = arith.constant 0 : index
    %c0_78 = arith.constant 0 : index
    %123 = vector.load %arg10[%c0_77, %c0_78] : memref<128x128xbf16, #tpu.memory_space<vmem>>, vector<128x128xbf16>
    %cst_79 = arith.constant dense<0.000000e+00> : vector<16x128xf32>
    %124 = tpu.matmul %122, %123, %cst_79 {dimension_numbers = #tpu.dot_dimension_numbers<[1], [0], [0], [1], [0, 0, 1, 1], [], []>} : vector<16x128xbf16>, vector<128x128xbf16>, vector<16x128xf32> -> vector<16x128xf32>
    %125 = arith.addf %121, %124 : vector<16x128xf32>
    %126 = vector.broadcast %43 : vector<1x128xf32> to vector<16x128xf32>
    %127 = arith.addf %125, %126 : vector<16x128xf32>
    %cst_80 = arith.constant 0.000000e+00 : f32
    %128 = vector.broadcast %cst_80 : f32 to vector<16x128xf32>
    %129 = arith.cmpf ogt, %127, %128 : vector<16x128xf32>
    %cst_81 = arith.constant 0.00999999977 : f32
    %130 = vector.broadcast %cst_81 : f32 to vector<16x128xf32>
    %131 = arith.mulf %130, %127 : vector<16x128xf32>
    %132 = arith.select %129, %127, %131 : vector<16x128xi1>, vector<16x128xf32>
    %c0_82 = arith.constant 0 : index
    %c640 = arith.constant 640 : index
    %133 = vector.load %arg12[%c0_82, %c640] : memref<16x896xf32, #tpu.memory_space<vmem>>, vector<16x128xf32>
    tpu.vector_store %arg12[%c0_82, %c640], %132 {strides = array<i32>} : memref<16x896xf32, #tpu.memory_space<vmem>>, vector<16x128xf32>,
    %134 = vector.extract_strided_slice %41 {offsets = [0, 768], sizes = [16, 128], strides = [1, 1]} : vector<16x896xbf16> to vector<16x128xbf16>
    %c0_83 = arith.constant 0 : index
    %c0_84 = arith.constant 0 : index
    %135 = vector.load %arg9[%c0_83, %c0_84] : memref<128x128xbf16, #tpu.memory_space<vmem>>, vector<128x128xbf16>
    %cst_85 = arith.constant dense<0.000000e+00> : vector<16x128xf32>
    %136 = tpu.matmul %134, %135, %cst_85 {dimension_numbers = #tpu.dot_dimension_numbers<[1], [0], [0], [1], [0, 0, 1, 1], [], []>} : vector<16x128xbf16>, vector<128x128xbf16>, vector<16x128xf32> -> vector<16x128xf32>
    %137 = vector.extract_strided_slice %42 {offsets = [0, 768], sizes = [16, 128], strides = [1, 1]} : vector<16x896xbf16> to vector<16x128xbf16>
    %c0_86 = arith.constant 0 : index
    %c0_87 = arith.constant 0 : index
    %138 = vector.load %arg10[%c0_86, %c0_87] : memref<128x128xbf16, #tpu.memory_space<vmem>>, vector<128x128xbf16>
    %cst_88 = arith.constant dense<0.000000e+00> : vector<16x128xf32>
    %139 = tpu.matmul %137, %138, %cst_88 {dimension_numbers = #tpu.dot_dimension_numbers<[1], [0], [0], [1], [0, 0, 1, 1], [], []>} : vector<16x128xbf16>, vector<128x128xbf16>, vector<16x128xf32> -> vector<16x128xf32>
    %140 = arith.addf %136, %139 : vector<16x128xf32>
    %141 = vector.broadcast %43 : vector<1x128xf32> to vector<16x128xf32>
    %142 = arith.addf %140, %141 : vector<16x128xf32>
    %cst_89 = arith.constant 0.000000e+00 : f32
    %143 = vector.broadcast %cst_89 : f32 to vector<16x128xf32>
    %144 = arith.cmpf ogt, %142, %143 : vector<16x128xf32>
    %cst_90 = arith.constant 0.00999999977 : f32
    %145 = vector.broadcast %cst_90 : f32 to vector<16x128xf32>
    %146 = arith.mulf %145, %142 : vector<16x128xf32>
    %147 = arith.select %144, %142, %146 : vector<16x128xi1>, vector<16x128xf32>
    %c0_91 = arith.constant 0 : index
    %c768 = arith.constant 768 : index
    %148 = vector.load %arg12[%c0_91, %c768] : memref<16x896xf32, #tpu.memory_space<vmem>>, vector<16x128xf32>
    tpu.vector_store %arg12[%c0_91, %c768], %147 {strides = array<i32>} : memref<16x896xf32, #tpu.memory_space<vmem>>, vector<16x128xf32>,
    return
  }
  func.func @transform_0(%arg0: i32) -> (i32, i32) {
    %c0_i32 = arith.constant 0 : i32
    %c0_i32_0 = arith.constant 0 : i32
    return %arg0, %c0_i32 : i32, i32
  }
  func.func @transform_1(%arg0: i32) -> (i32, i32) {
    %c0_i32 = arith.constant 0 : i32
    %c0_i32_0 = arith.constant 0 : i32
    return %arg0, %c0_i32 : i32, i32
  }
  func.func @transform_2(%arg0: i32) -> (i32, i32) {
    %c0_i32 = arith.constant 0 : i32
    %c0_i32_0 = arith.constant 0 : i32
    %c0_i32_1 = arith.constant 0 : i32
    return %c0_i32, %c0_i32_0 : i32, i32
  }
  func.func @transform_3(%arg0: i32) -> (i32, i32) {
    %c0_i32 = arith.constant 0 : i32
    %c0_i32_0 = arith.constant 0 : i32
    %c0_i32_1 = arith.constant 0 : i32
    return %c0_i32, %c0_i32_0 : i32, i32
  }
  func.func @transform_4(%arg0: i32) -> (i32, i32) {
    %c0_i32 = arith.constant 0 : i32
    %c0_i32_0 = arith.constant 0 : i32
    %c0_i32_1 = arith.constant 0 : i32
    return %c0_i32, %c0_i32_0 : i32, i32
  }
  func.func @transform_5(%arg0: i32) -> (i32, i32) {
    %c0_i32 = arith.constant 0 : i32
    %c0_i32_0 = arith.constant 0 : i32
    %c0_i32_1 = arith.constant 0 : i32
    return %c0_i32, %c0_i32_0 : i32, i32
  }
  func.func @transform_6(%arg0: i32) -> (i32, i32) {
    %c0_i32 = arith.constant 0 : i32
    %c0_i32_0 = arith.constant 0 : i32
    %c0_i32_1 = arith.constant 0 : i32
    return %c0_i32, %c0_i32_0 : i32, i32
  }
  func.func @transform_7(%arg0: i32) -> (i32, i32) {
    %c0_i32 = arith.constant 0 : i32
    %c0_i32_0 = arith.constant 0 : i32
    %c0_i32_1 = arith.constant 0 : i32
    return %c0_i32, %c0_i32_0 : i32, i32
  }
  func.func @transform_8(%arg0: i32) -> (i32, i32) {
    %c0_i32 = arith.constant 0 : i32
    %c0_i32_0 = arith.constant 0 : i32
    %c0_i32_1 = arith.constant 0 : i32
    return %c0_i32, %c0_i32_0 : i32, i32
  }
  func.func @transform_9(%arg0: i32) -> (i32, i32) {
    %c0_i32 = arith.constant 0 : i32
    %c0_i32_0 = arith.constant 0 : i32
    %c0_i32_1 = arith.constant 0 : i32
    return %c0_i32, %c0_i32_0 : i32, i32
  }
  func.func @transform_10(%arg0: i32) -> (i32, i32) {
    %c0_i32 = arith.constant 0 : i32
    %c0_i32_0 = arith.constant 0 : i32
    %c0_i32_1 = arith.constant 0 : i32
    return %c0_i32, %c0_i32_0 : i32, i32
  }
  func.func @transform_11(%arg0: i32) -> (i32, i32) {
    %c0_i32 = arith.constant 0 : i32
    %c0_i32_0 = arith.constant 0 : i32
    return %arg0, %c0_i32 : i32, i32
  }
}

</mosaic_0001>

<llo_original>
// kernel: melody_encoder_pallas.1
$region0: #{melody_encoder_pallas.1}
  #allocation0 [shape = 'u32[]', space=smem, size = 0x4, offset = 0x4, fixed_abs, tag = 'smem constant byte address 0x4 - core index']
  #allocation1 [shape = 'u32[72,128]{1,0:T(1,128)}', space=vmem, size = 0x9000, scoped, tag = 'internal scratch']
  %s0 = inlined_call_operand.vmem [shape: bf16[48,28], index: 0, kind: input, shape index: {}]
  %s1 = inlined_call_operand.vmem [shape: bf16[48,280], index: 1, kind: input, shape index: {}]
  %s2 = inlined_call_operand.vmem [shape: bf16[28,240], index: 2, kind: input, shape index: {}]
  %s3 = inlined_call_operand.vmem [shape: f32[1,240], index: 3, kind: input, shape index: {}]
  %s4 = inlined_call_operand.vmem [shape: bf16[128,896], index: 4, kind: input, shape index: {}]
  %s5 = inlined_call_operand.vmem [shape: bf16[112,896], index: 5, kind: input, shape index: {}]
  %s6 = inlined_call_operand.vmem [shape: bf16[280,896], index: 6, kind: input, shape index: {}]
  %s7 = inlined_call_operand.vmem [shape: f32[1,896], index: 7, kind: input, shape index: {}]
  %s8 = inlined_call_operand.vmem [shape: bf16[128,128], index: 8, kind: input, shape index: {}]
  %s9 = inlined_call_operand.vmem [shape: bf16[128,128], index: 9, kind: input, shape index: {}]
  %s10 = inlined_call_operand.vmem [shape: f32[1,128], index: 10, kind: input, shape index: {}]
  %s11 = inlined_call_operand.vmem [shape: f32[48,896], index: 11, kind: output, shape index: {}]
  %s12 = sld [smem:[#allocation0]]
  $region77: #{melody_encoder_pallas.1} parent=0
    _
  %s14 = ssub.s32 1, %s12
  %s15 = scalar_select 0, %s14, %s12
  loop: start=0, step=1, limit=5
  $region2: #{melody_encoder_pallas.1} parent=0 // loop_pre_header
    _
  $region3: #{melody_encoder_pallas.1} parent=0 // loop_header
    %s17 = sphi 0, %s21
    %p18 = scmp.ge.s32.totalorder %s17, 5
    %s27 = sphi 0, %s29
    %s30 = sphi 0, %s27
    %s31 = sphi 0, %s30
    %s47 = sphi 0, %s31
    %s53 = sphi 0, %s55
    %s56 = sphi 0, %s53
    %s57 = sphi 0, %s56
    %s73 = sphi 0, %s57
    %s77 = sphi 0, %s77
    %s79 = sphi 0, %s77
    %s80 = sphi 0, %s79
    %s94 = sphi 0, %s80
    %s98 = sphi 0, %s98
    %s100 = sphi 0, %s98
    %s101 = sphi 0, %s100
    %s115 = sphi 0, %s101
    %s119 = sphi 0, %s119
    %s121 = sphi 0, %s119
    %s122 = sphi 0, %s121
    %s136 = sphi 0, %s122
    %s140 = sphi 0, %s140
    %s142 = sphi 0, %s140
    %s143 = sphi 0, %s142
    %s157 = sphi 0, %s143
    %s161 = sphi 0, %s161
    %s163 = sphi 0, %s161
    %s164 = sphi 0, %s163
    %s178 = sphi 0, %s164
    %s182 = sphi 0, %s182
    %s184 = sphi 0, %s182
    %s185 = sphi 0, %s184
    %s199 = sphi 0, %s185
    %s203 = sphi 0, %s203
    %s205 = sphi 0, %s203
    %s206 = sphi 0, %s205
    %s220 = sphi 0, %s206
    %s224 = sphi 0, %s224
    %s226 = sphi 0, %s224
    %s227 = sphi 0, %s226
    %s241 = sphi 0, %s227
    %s245 = sphi 0, %s245
    %s247 = sphi 0, %s245
    %s248 = sphi 0, %s247
    %s262 = sphi 0, %s248
    %s268 = sphi 0, %s270
    %s271 = sphi 0, %s268
    %s272 = sphi 0, %s271
    %s288 = sphi 0, %s272
  $region4: #{melody_encoder_pallas.1} parent=0 // loop_header_branch
    %20 = sbr.rel (%p18) target = $region8
  $region5: #{melody_encoder_pallas.1} parent=0 // loop_body
    %s22 = ssub.s32 %s17, 1
    %s23 = ssub.s32 %s17, 2
    %s24 = sadd.s32 %s17, 1
    %s25 = ssub.s32 %s17, %s24
    %p26 = scmp.eq.s32.totalorder %s25, 0
    %s28 = sadd.s32 %s27, 1
    %s29 = scalar_select %p26, %s27, %s28
    %p32 = pneg %p26
    %p33 = scmp.eq.s32.totalorder %s17, 2
    %p34 = por %p32, %p33
    %p35 = scmp.ne.s32.totalorder %s27, %s30
    %p36 = scmp.eq.s32.totalorder %s17, 0
    %p37 = por %p35, %p36
    %p38 = scmp.ne.s32.totalorder %s27, %s30
    %p39 = scmp.eq.s32.totalorder %s22, 2
    %p40 = por %p38, %p39
    %p41 = scmp.ne.s32.totalorder %s30, %s31
    %p42 = scmp.eq.s32.totalorder %s22, 0
    %p43 = por %p41, %p42
    %p44 = scmp.ne.s32.totalorder %s30, %s31
    %p45 = scmp.eq.s32.totalorder %s23, 2
    %p46 = por %p44, %p45
    %p48 = scmp.ne.s32.totalorder %s31, %s47
    %p49 = scmp.eq.s32.totalorder %s23, 0
    %p50 = por %p48, %p49
    %s51 = ssub.s32 %s17, %s24
    %p52 = scmp.eq.s32.totalorder %s51, 0
    %s54 = sadd.s32 %s53, 1
    %s55 = scalar_select %p52, %s53, %s54
    %p58 = pneg %p52
    %p59 = scmp.eq.s32.totalorder %s17, 2
    %p60 = por %p58, %p59
    %p61 = scmp.ne.s32.totalorder %s53, %s56
    %p62 = scmp.eq.s32.totalorder %s17, 0
    %p63 = por %p61, %p62
    %p64 = scmp.ne.s32.totalorder %s53, %s56
    %p65 = scmp.eq.s32.totalorder %s22, 2
    %p66 = por %p64, %p65
    %p67 = scmp.ne.s32.totalorder %s56, %s57
    %p68 = scmp.eq.s32.totalorder %s22, 0
    %p69 = por %p67, %p68
    %p70 = scmp.ne.s32.totalorder %s56, %s57
    %p71 = scmp.eq.s32.totalorder %s23, 2
    %p72 = por %p70, %p71
    %p74 = scmp.ne.s32.totalorder %s57, %s73
    %p75 = scmp.eq.s32.totalorder %s23, 0
    %p76 = por %p74, %p75
    %s78 = sadd.s32 %s77, 1
    %p81 = scmp.eq.s32.totalorder %s17, 2
    %p82 = scmp.ne.s32.totalorder %s77, %s79
    %p83 = scmp.eq.s32.totalorder %s17, 0
    %p84 = por %p82, %p83
    %p85 = scmp.ne.s32.totalorder %s77, %s79
    %p86 = scmp.eq.s32.totalorder %s22, 2
    %p87 = por %p85, %p86
    %p88 = scmp.ne.s32.totalorder %s79, %s80
    %p89 = scmp.eq.s32.totalorder %s22, 0
    %p90 = por %p88, %p89
    %p91 = scmp.ne.s32.totalorder %s79, %s80
    %p92 = scmp.eq.s32.totalorder %s23, 2
    %p93 = por %p91, %p92
    %p95 = scmp.ne.s32.totalorder %s80, %s94
    %p96 = scmp.eq.s32.totalorder %s23, 0
    %p97 = por %p95, %p96
    %s99 = sadd.s32 %s98, 1
    %p102 = scmp.eq.s32.totalorder %s17, 2
    %p103 = scmp.ne.s32.totalorder %s98, %s100
    %p104 = scmp.eq.s32.totalorder %s17, 0
    %p105 = por %p103, %p104
    %p106 = scmp.ne.s32.totalorder %s98, %s100
    %p107 = scmp.eq.s32.totalorder %s22, 2
    %p108 = por %p106, %p107
    %p109 = scmp.ne.s32.totalorder %s100, %s101
    %p110 = scmp.eq.s32.totalorder %s22, 0
    %p111 = por %p109, %p110
    %p112 = scmp.ne.s32.totalorder %s100, %s101
    %p113 = scmp.eq.s32.totalorder %s23, 2
    %p114 = por %p112, %p113
    %p116 = scmp.ne.s32.totalorder %s101, %s115
    %p117 = scmp.eq.s32.totalorder %s23, 0
    %p118 = por %p116, %p117
    %s120 = sadd.s32 %s119, 1
    %p123 = scmp.eq.s32.totalorder %s17, 2
    %p124 = scmp.ne.s32.totalorder %s119, %s121
    %p125 = scmp.eq.s32.totalorder %s17, 0
    %p126 = por %p124, %p125
    %p127 = scmp.ne.s32.totalorder %s119, %s121
    %p128 = scmp.eq.s32.totalorder %s22, 2
    %p129 = por %p127, %p128
    %p130 = scmp.ne.s32.totalorder %s121, %s122
    %p131 = scmp.eq.s32.totalorder %s22, 0
    %p132 = por %p130, %p131
    %p133 = scmp.ne.s32.totalorder %s121, %s122
    %p134 = scmp.eq.s32.totalorder %s23, 2
    %p135 = por %p133, %p134
    %p137 = scmp.ne.s32.totalorder %s122, %s136
    %p138 = scmp.eq.s32.totalorder %s23, 0
    %p139 = por %p137, %p138
    %s141 = sadd.s32 %s140, 1
    %p144 = scmp.eq.s32.totalorder %s17, 2
    %p145 = scmp.ne.s32.totalorder %s140, %s142
    %p146 = scmp.eq.s32.totalorder %s17, 0
    %p147 = por %p145, %p146
    %p148 = scmp.ne.s32.totalorder %s140, %s142
    %p149 = scmp.eq.s32.totalorder %s22, 2
    %p150 = por %p148, %p149
    %p151 = scmp.ne.s32.totalorder %s142, %s143
    %p152 = scmp.eq.s32.totalorder %s22, 0
    %p153 = por %p151, %p152
    %p154 = scmp.ne.s32.totalorder %s142, %s143
    %p155 = scmp.eq.s32.totalorder %s23, 2
    %p156 = por %p154, %p155
    %p158 = scmp.ne.s32.totalorder %s143, %s157
    %p159 = scmp.eq.s32.totalorder %s23, 0
    %p160 = por %p158, %p159
    %s162 = sadd.s32 %s161, 1
    %p165 = scmp.eq.s32.totalorder %s17, 2
    %p166 = scmp.ne.s32.totalorder %s161, %s163
    %p167 = scmp.eq.s32.totalorder %s17, 0
    %p168 = por %p166, %p167
    %p169 = scmp.ne.s32.totalorder %s161, %s163
    %p170 = scmp.eq.s32.totalorder %s22, 2
    %p171 = por %p169, %p170
    %p172 = scmp.ne.s32.totalorder %s163, %s164
    %p173 = scmp.eq.s32.totalorder %s22, 0
    %p174 = por %p172, %p173
    %p175 = scmp.ne.s32.totalorder %s163, %s164
    %p176 = scmp.eq.s32.totalorder %s23, 2
    %p177 = por %p175, %p176
    %p179 = scmp.ne.s32.totalorder %s164, %s178
    %p180 = scmp.eq.s32.totalorder %s23, 0
    %p181 = por %p179, %p180
    %s183 = sadd.s32 %s182, 1
    %p186 = scmp.eq.s32.totalorder %s17, 2
    %p187 = scmp.ne.s32.totalorder %s182, %s184
    %p188 = scmp.eq.s32.totalorder %s17, 0
    %p189 = por %p187, %p188
    %p190 = scmp.ne.s32.totalorder %s182, %s184
    %p191 = scmp.eq.s32.totalorder %s22, 2
    %p192 = por %p190, %p191
    %p193 = scmp.ne.s32.totalorder %s184, %s185
    %p194 = scmp.eq.s32.totalorder %s22, 0
    %p195 = por %p193, %p194
    %p196 = scmp.ne.s32.totalorder %s184, %s185
    %p197 = scmp.eq.s32.totalorder %s23, 2
    %p198 = por %p196, %p197
    %p200 = scmp.ne.s32.totalorder %s185, %s199
    %p201 = scmp.eq.s32.totalorder %s23, 0
    %p202 = por %p200, %p201
    %s204 = sadd.s32 %s203, 1
    %p207 = scmp.eq.s32.totalorder %s17, 2
    %p208 = scmp.ne.s32.totalorder %s203, %s205
    %p209 = scmp.eq.s32.totalorder %s17, 0
    %p210 = por %p208, %p209
    %p211 = scmp.ne.s32.totalorder %s203, %s205
    %p212 = scmp.eq.s32.totalorder %s22, 2
    %p213 = por %p211, %p212
    %p214 = scmp.ne.s32.totalorder %s205, %s206
    %p215 = scmp.eq.s32.totalorder %s22, 0
    %p216 = por %p214, %p215
    %p217 = scmp.ne.s32.totalorder %s205, %s206
    %p218 = scmp.eq.s32.totalorder %s23, 2
    %p219 = por %p217, %p218
    %p221 = scmp.ne.s32.totalorder %s206, %s220
    %p222 = scmp.eq.s32.totalorder %s23, 0
    %p223 = por %p221, %p222
    %s225 = sadd.s32 %s224, 1
    %p228 = scmp.eq.s32.totalorder %s17, 2
    %p229 = scmp.ne.s32.totalorder %s224, %s226
    %p230 = scmp.eq.s32.totalorder %s17, 0
    %p231 = por %p229, %p230
    %p232 = scmp.ne.s32.totalorder %s224, %s226
    %p233 = scmp.eq.s32.totalorder %s22, 2
    %p234 = por %p232, %p233
    %p235 = scmp.ne.s32.totalorder %s226, %s227
    %p236 = scmp.eq.s32.totalorder %s22, 0
    %p237 = por %p235, %p236
    %p238 = scmp.ne.s32.totalorder %s226, %s227
    %p239 = scmp.eq.s32.totalorder %s23, 2
    %p240 = por %p238, %p239
    %p242 = scmp.ne.s32.totalorder %s227, %s241
    %p243 = scmp.eq.s32.totalorder %s23, 0
    %p244 = por %p242, %p243
    %s246 = sadd.s32 %s245, 1
    %p249 = scmp.eq.s32.totalorder %s17, 2
    %p250 = scmp.ne.s32.totalorder %s245, %s247
    %p251 = scmp.eq.s32.totalorder %s17, 0
    %p252 = por %p250, %p251
    %p253 = scmp.ne.s32.totalorder %s245, %s247
    %p254 = scmp.eq.s32.totalorder %s22, 2
    %p255 = por %p253, %p254
    %p256 = scmp.ne.s32.totalorder %s247, %s248
    %p257 = scmp.eq.s32.totalorder %s22, 0
    %p258 = por %p256, %p257
    %p259 = scmp.ne.s32.totalorder %s247, %s248
    %p260 = scmp.eq.s32.totalorder %s23, 2
    %p261 = por %p259, %p260
    %p263 = scmp.ne.s32.totalorder %s248, %s262
    %p264 = scmp.eq.s32.totalorder %s23, 0
    %p265 = por %p263, %p264
    %s266 = ssub.s32 %s17, %s24
    %p267 = scmp.eq.s32.totalorder %s266, 0
    %s269 = sadd.s32 %s268, 1
    %s270 = scalar_select %p267, %s268, %s269
    %p273 = pneg %p267
    %p274 = scmp.eq.s32.totalorder %s17, 2
    %p275 = por %p273, %p274
    %p276 = scmp.ne.s32.totalorder %s268, %s271
    %p277 = scmp.eq.s32.totalorder %s17, 0
    %p278 = por %p276, %p277
    %p279 = scmp.ne.s32.totalorder %s268, %s271
    %p280 = scmp.eq.s32.totalorder %s22, 2
    %p281 = por %p279, %p280
    %p282 = scmp.ne.s32.totalorder %s271, %s272
    %p283 = scmp.eq.s32.totalorder %s22, 0
    %p284 = por %p282, %p283
    %p285 = scmp.ne.s32.totalorder %s271, %s272
    %p286 = scmp.eq.s32.totalorder %s23, 2
    %p287 = por %p285, %p286
    %p289 = scmp.ne.s32.totalorder %s272, %s288
    %p290 = scmp.eq.s32.totalorder %s23, 0
    %p291 = por %p289, %p290
    %p292 = scmp.le.s32.totalorder 1, %s17
    %p293 = scmp.lt.s32.totalorder %s17, 4
    %p294 = pnand %p292, %p293
    %p295 = pneg %p294
    // Predicated region
    $region9: #{melody_encoder_pallas.1} parent=5 // pred_check
      _
    $region10: #{melody_encoder_pallas.1} parent=5 // pred_check_branch
      %297 = sbr.rel (%p294) target = $region12
    $region11: #{melody_encoder_pallas.1} parent=5 // pred_region
      %s298 = ssub.s32 %s17, 1
      // Predicated region
      $region13: #{melody_encoder_pallas.1} parent=11 // pred_check
        %p299 = pneg %p90
      $region14: #{melody_encoder_pallas.1} parent=11 // pred_check_branch
        %301 = sbr.rel (%p299) target = $region16
      $region15: #{melody_encoder_pallas.1} parent=11 // pred_region
        _
      $region16: #{melody_encoder_pallas.1} parent=11 // pred_fallthru
        _
      // Predicated region
      $region17: #{melody_encoder_pallas.1} parent=11 // pred_check
        %p302 = pneg %p111
      $region18: #{melody_encoder_pallas.1} parent=11 // pred_check_branch
        %304 = sbr.rel (%p302) target = $region20
      $region19: #{melody_encoder_pallas.1} parent=11 // pred_region
        _
      $region20: #{melody_encoder_pallas.1} parent=11 // pred_fallthru
        _
      // Predicated region
      $region21: #{melody_encoder_pallas.1} parent=11 // pred_check
        %p305 = pneg %p132
      $region22: #{melody_encoder_pallas.1} parent=11 // pred_check_branch
        %307 = sbr.rel (%p305) target = $region24
      $region23: #{melody_encoder_pallas.1} parent=11 // pred_region
        _
      $region24: #{melody_encoder_pallas.1} parent=11 // pred_fallthru
        _
      // Predicated region
      $region25: #{melody_encoder_pallas.1} parent=11 // pred_check
        %p308 = pneg %p153
      $region26: #{melody_encoder_pallas.1} parent=11 // pred_check_branch
        %310 = sbr.rel (%p308) target = $region28
      $region27: #{melody_encoder_pallas.1} parent=11 // pred_region
        _
      $region28: #{melody_encoder_pallas.1} parent=11 // pred_fallthru
        _
      // Predicated region
      $region29: #{melody_encoder_pallas.1} parent=11 // pred_check
        %p311 = pneg %p174
      $region30: #{melody_encoder_pallas.1} parent=11 // pred_check_branch
        %313 = sbr.rel (%p311) target = $region32
      $region31: #{melody_encoder_pallas.1} parent=11 // pred_region
        _
      $region32: #{melody_encoder_pallas.1} parent=11 // pred_fallthru
        _
      // Predicated region
      $region33: #{melody_encoder_pallas.1} parent=11 // pred_check
        %p314 = pneg %p195
      $region34: #{melody_encoder_pallas.1} parent=11 // pred_check_branch
        %316 = sbr.rel (%p314) target = $region36
      $region35: #{melody_encoder_pallas.1} parent=11 // pred_region
        _
      $region36: #{melody_encoder_pallas.1} parent=11 // pred_fallthru
        _
      // Predicated region
      $region37: #{melody_encoder_pallas.1} parent=11 // pred_check
        %p317 = pneg %p216
      $region38: #{melody_encoder_pallas.1} parent=11 // pred_check_branch
        %319 = sbr.rel (%p317) target = $region40
      $region39: #{melody_encoder_pallas.1} parent=11 // pred_region
        _
      $region40: #{melody_encoder_pallas.1} parent=11 // pred_fallthru
        _
      // Predicated region
      $region41: #{melody_encoder_pallas.1} parent=11 // pred_check
        %p320 = pneg %p237
      $region42: #{melody_encoder_pallas.1} parent=11 // pred_check_branch
        %322 = sbr.rel (%p320) target = $region44
      $region43: #{melody_encoder_pallas.1} parent=11 // pred_region
        _
      $region44: #{melody_encoder_pallas.1} parent=11 // pred_fallthru
        _
      // Predicated region
      $region45: #{melody_encoder_pallas.1} parent=11 // pred_check
        %p323 = pneg %p258
      $region46: #{melody_encoder_pallas.1} parent=11 // pred_check_branch
        %325 = sbr.rel (%p323) target = $region48
      $region47: #{melody_encoder_pallas.1} parent=11 // pred_region
        _
      $region48: #{melody_encoder_pallas.1} parent=11 // pred_fallthru
        _
    $region12: #{melody_encoder_pallas.1} parent=5 // pred_fallthru
      _
    %p326 = scmp.lt.s32.totalorder %s17, 3
    // Predicated region
    $region49: #{melody_encoder_pallas.1} parent=5 // pred_check
      %p327 = pneg %p326
    $region50: #{melody_encoder_pallas.1} parent=5 // pred_check_branch
      %329 = sbr.rel (%p327) target = $region52
    $region51: #{melody_encoder_pallas.1} parent=5 // pred_region
      // Predicated region
      $region53: #{melody_encoder_pallas.1} parent=51 // pred_check
        %p330 = pneg %p37
      $region54: #{melody_encoder_pallas.1} parent=51 // pred_check_branch
        %332 = sbr.rel (%p330) target = $region56
      $region55: #{melody_encoder_pallas.1} parent=51 // pred_region
        %s333 = smul.u32 2, %s17
        %p334 = scmp.lt.s32.totalorder %s333, 5
        %s335 = scalar_select %p334, %s333, 5
        %s336 = smul.addr %s335, 4
        %s337 = scalar_lea.vmem %s0, %s336
        %s338 = smul.u32 2, %s17
      $region56: #{melody_encoder_pallas.1} parent=51 // pred_fallthru
        _
      // Predicated region
      $region57: #{melody_encoder_pallas.1} parent=51 // pred_check
        %p339 = pneg %p63
      $region58: #{melody_encoder_pallas.1} parent=51 // pred_check_branch
        %341 = sbr.rel (%p339) target = $region60
      $region59: #{melody_encoder_pallas.1} parent=51 // pred_region
        %s342 = smul.u32 2, %s17
        %p343 = scmp.lt.s32.totalorder %s342, 5
        %s344 = scalar_select %p343, %s342, 5
        %s345 = smul.addr %s344, 3
        %s346 = smul.addr %s345, 4
        %s347 = scalar_lea.vmem %s1, %s346
        %s348 = smul.u32 2, %s17
      $region60: #{melody_encoder_pallas.1} parent=51 // pred_fallthru
        _
    $region52: #{melody_encoder_pallas.1} parent=5 // pred_fallthru
      _
    %p349 = scmp.le.s32.totalorder 1, %s17
    %p350 = scmp.lt.s32.totalorder %s17, 4
    %p351 = pnand %p349, %p350
    %p352 = pneg %p351
    // Predicated region
    $region61: #{melody_encoder_pallas.1} parent=5 // pred_check
      _
    $region62: #{melody_encoder_pallas.1} parent=5 // pred_check_branch
      %354 = sbr.rel (%p351) target = $region64
    $region63: #{melody_encoder_pallas.1} parent=5 // pred_region
      %s355 = ssub.s32 %s17, 1
      %s356 = smul.u32 2, %s22
      %p357 = scmp.lt.s32.totalorder %s356, 5
      %s358 = scalar_select %p357, %s356, 5
      %s359 = smul.addr %s358, 4
      %s360 = scalar_lea.vmem %s0, %s359
      %p361 = pneg %p43
      %p362 = pneg %p40
      %s363 = smul.u32 2, %s22
      %p364 = scmp.lt.s32.totalorder %s363, 5
      %s365 = scalar_select %p364, %s363, 5
      %s366 = smul.addr %s365, 3
      %s367 = smul.addr %s366, 4
      %s368 = scalar_lea.vmem %s1, %s367
      %p369 = pneg %p69
      %p370 = pneg %p66
      %p371 = pneg %p90
      %p372 = pneg %p87
      %p373 = pneg %p111
      %p374 = pneg %p108
      %p375 = pneg %p132
      %p376 = pneg %p129
      %p377 = pneg %p153
      %p378 = pneg %p150
      %p379 = pneg %p174
      %p380 = pneg %p171
      %p381 = pneg %p195
      %p382 = pneg %p192
      %p383 = pneg %p216
      %p384 = pneg %p213
      %p385 = pneg %p237
      %p386 = pneg %p234
      %p387 = pneg %p258
      %p388 = pneg %p255
      %p389 = pneg %p284
      %p390 = pneg %p281
      %s391 = smul.u32 2, %s22
      %p392 = scmp.lt.s32.totalorder %s391, 5
      %s393 = scalar_select %p392, %s391, 5
      %s394 = smul.addr %s393, 7
      %s395 = smul.addr %s394, 8
      %s396 = scalar_lea.vmem %s11, %s395
      %s397 = smul.u32 2, %s22
      %p398 = scmp.lt.s32.totalorder %s397, 5
      %s399 = scalar_select %p398, %s397, 5
      %s400 = smul.addr %s399, 4
      %s401 = scalar_lea.vmem %s0, %s400
      %s402 = smul.u32 2, %s22
      %s403 = smul.u32 2, %s22
      %p404 = scmp.lt.s32.totalorder %s403, 5
      %s405 = scalar_select %p404, %s403, 5
      %s406 = smul.addr %s405, 3
      %s407 = smul.addr %s406, 4
      %s408 = scalar_lea.vmem %s1, %s407
      %s409 = smul.u32 2, %s22
      %s410 = smul.u32 2, %s22
      %p411 = scmp.lt.s32.totalorder %s410, 5
      %s412 = scalar_select %p411, %s410, 5
      %s413 = smul.addr %s412, 7
      %s414 = smul.addr %s413, 8
      %s415 = scalar_lea.vmem %s11, %s414
      %s416 = smul.u32 2, %s22
      %v418 = vld [vmem:[%s401] sm:$0xf]
      %v419 = vld [vmem:[%s401 + $0x4] sm:$0xf]
      %v420 = vld [vmem:[%s2] sm:$0xff]
      %v421 = vld [vmem:[%s2 + $0x8] sm:$0xff]
      %v422 = vld [vmem:[%s2 + $0x10] sm:$0xff]
      %v423 = vld [vmem:[%s2 + $0x18] sm:$0x33]
      %v424 = vld [vmem:[%s3] sm:$0x3]
      %v426 = vperm.slane %v424, 0
      %v427 = vperm.slane %v424, 1
      %v432 = vunpack.c.l.b16 %v418
      %v433 = vunpack.c.l.b16 %v419
      %v434 = vpack.c.b16 %v433, %v432
      %v439 = vunpack.c.l.b16 %v420
      %v440 = vunpack.c.h.b16 %v420
      %v441 = vunpack.c.l.b16 %v421
      %v442 = vunpack.c.h.b16 %v421
      %v443 = vunpack.c.l.b16 %v422
      %v444 = vunpack.c.h.b16 %v422
      %v445 = vunpack.c.l.b16 %v423
      %v446 = vunpack.c.h.b16 %v423
      %v447 = vpack.c.b16 %v441, %v439
      %v448 = vpack.c.b16 %v442, %v440
      %v449 = vpack.c.b16 %v445, %v443
      %v450 = vpack.c.b16 %v446, %v444
      %vm453 = vcmask 228352
      %v455 = vsel %vm453, %v434, 0
      %vm457 = vcmask 1045504
      %v459 = vsel %vm457, %v449, 0
      %v462 = vsel %vm457, %v450, 0
      %464 = vmatpush.bf16.msra.mxu0 0
      %465 = vmatpush.bf16.msra.mxu0 0
      %466 = vmatpush.bf16.msra.mxu0 0
      %467 = vmatpush.bf16.msra.mxu0 0
      %468 = vmatpush.bf16.msra.mxu0 0
      %469 = vmatpush.bf16.msra.mxu0 0
      %470 = vmatpush.bf16.msra.mxu0 %v459
      %471 = vmatpush.bf16.msra.mxu0 %v447
      %472 = vmatmul.bf16.gmra.mxu0 %v455
      %v473 = vpop.f32.mrf.mxu0
      %v474 = vadd.f32 %v426, %v473
      %v475 = vpop.f32.mrf.mxu0
      %v476 = vadd.f32 %v426, %v475
      %477 = vdwg.mxu0
      %478 = vmatpush.bf16.msra.mxu0 0
      %479 = vmatpush.bf16.msra.mxu0 0
      %480 = vmatpush.bf16.msra.mxu0 0
      %481 = vmatpush.bf16.msra.mxu0 0
      %482 = vmatpush.bf16.msra.mxu0 0
      %483 = vmatpush.bf16.msra.mxu0 0
      %484 = vmatpush.bf16.msra.mxu0 %v462
      %485 = vmatpush.bf16.msra.mxu0 %v448
      %486 = vmatmul.bf16.gmra.mxu0 %v455
      %v487 = vpop.f32.mrf.mxu0
      %v488 = vadd.f32 %v427, %v487
      %v489 = vpop.f32.mrf.mxu0
      %v490 = vadd.f32 %v427, %v489
      %491 = vdwg.mxu0
      %vm492 = vcmp.gt.f32.partialorder %v474, 0.0
      %vm493 = vcmp.gt.f32.partialorder %v476, 0.0
      %v494 = vmul.f32 %v474, 0.01
      %v495 = vmul.f32 %v476, 0.01
      %v496 = vsel %vm492, %v474, %v494
      %v497 = vsel %vm493, %v476, %v495
      %v498 = vpack.c.bf16 %v497, %v496
      %vm499 = vcmp.gt.f32.partialorder %v488, 0.0
      %vm500 = vcmp.gt.f32.partialorder %v490, 0.0
      %v501 = vmul.f32 %v488, 0.01
      %v502 = vmul.f32 %v490, 0.01
      %v503 = vsel %vm499, %v488, %v501
      %v504 = vsel %vm500, %v490, %v502
      %v505 = vpack.c.bf16 %v504, %v503
      %v506 = vld [vmem:[%s4] sm:$0xff]
      %v507 = vld [vmem:[%s4 + $0x8] sm:$0xff]
      %v508 = vld [vmem:[%s4 + $0x10] sm:$0xff]
      %v509 = vld [vmem:[%s4 + $0x18] sm:$0xf]
      %v510 = vld [vmem:[%s4 + $0x1c] sm:$0xff]
      %v511 = vld [vmem:[%s4 + $0x24] sm:$0xff]
      %v512 = vld [vmem:[%s4 + $0x2c] sm:$0xff]
      %v513 = vld [vmem:[%s4 + $0x34] sm:$0xf]
      %v514 = vld [vmem:[%s4 + $0x38] sm:$0xff]
      %v515 = vld [vmem:[%s4 + $0x40] sm:$0xff]
      %v516 = vld [vmem:[%s4 + $0x48] sm:$0xff]
      %v517 = vld [vmem:[%s4 + $0x50] sm:$0xf]
      %v518 = vld [vmem:[%s4 + $0x54] sm:$0xff]
      %v519 = vld [vmem:[%s4 + $0x5c] sm:$0xff]
      %v520 = vld [vmem:[%s4 + $0x64] sm:$0xff]
      %v521 = vld [vmem:[%s4 + $0x6c] sm:$0xf]
      %v522 = vld [vmem:[%s4 + $0x70] sm:$0xff]
      %v523 = vld [vmem:[%s4 + $0x78] sm:$0xff]
      %v524 = vld [vmem:[%s4 + $0x80] sm:$0xff]
      %v525 = vld [vmem:[%s4 + $0x88] sm:$0xf]
      %v526 = vld [vmem:[%s4 + $0x8c] sm:$0xff]
      %v527 = vld [vmem:[%s4 + $0x94] sm:$0xff]
      %v528 = vld [vmem:[%s4 + $0x9c] sm:$0xff]
      %v529 = vld [vmem:[%s4 + $0xa4] sm:$0xf]
      %v530 = vld [vmem:[%s4 + $0xa8] sm:$0xff]
      %v531 = vld [vmem:[%s4 + $0xb0] sm:$0xff]
      %v532 = vld [vmem:[%s4 + $0xb8] sm:$0xff]
      %v533 = vld [vmem:[%s4 + $0xc0] sm:$0xf]
      %v534 = vld [vmem:[%s4 + $0xc4] sm:$0xff]
      %v535 = vld [vmem:[%s4 + $0xcc] sm:$0xff]
      %v536 = vld [vmem:[%s4 + $0xd4] sm:$0xff]
      %v537 = vld [vmem:[%s4 + $0xdc] sm:$0xf]
      %v538 = vld [vmem:[%s4 + $0xe0] sm:$0xff]
      %v539 = vld [vmem:[%s4 + $0xe8] sm:$0xff]
      %v540 = vld [vmem:[%s4 + $0xf0] sm:$0xff]
      %v541 = vld [vmem:[%s4 + $0xf8] sm:$0xf]
      %v542 = vld [vmem:[%s4 + $0xfc] sm:$0xff]
      %v543 = vld [vmem:[%s4 + $0x104] sm:$0xff]
      %v544 = vld [vmem:[%s4 + $0x10c] sm:$0xff]
      %v545 = vld [vmem:[%s4 + $0x114] sm:$0xf]
      %v546 = vld [vmem:[%s4 + $0x118] sm:$0xff]
      %v547 = vld [vmem:[%s4 + $0x120] sm:$0xff]
      %v548 = vld [vmem:[%s4 + $0x128] sm:$0xff]
      %v549 = vld [vmem:[%s4 + $0x130] sm:$0xf]
      %v550 = vld [vmem:[%s4 + $0x134] sm:$0xff]
      %v551 = vld [vmem:[%s4 + $0x13c] sm:$0xff]
      %v552 = vld [vmem:[%s4 + $0x144] sm:$0xff]
      %v553 = vld [vmem:[%s4 + $0x14c] sm:$0xf]
      %v554 = vld [vmem:[%s4 + $0x150] sm:$0xff]
      %v555 = vld [vmem:[%s4 + $0x158] sm:$0xff]
      %v556 = vld [vmem:[%s4 + $0x160] sm:$0xff]
      %v557 = vld [vmem:[%s4 + $0x168] sm:$0xf]
      %v558 = vld [vmem:[%s4 + $0x16c] sm:$0xff]
      %v559 = vld [vmem:[%s4 + $0x174] sm:$0xff]
      %v560 = vld [vmem:[%s4 + $0x17c] sm:$0xff]
      %v561 = vld [vmem:[%s4 + $0x184] sm:$0xf]
      %v562 = vld [vmem:[%s4 + $0x188] sm:$0xff]
      %v563 = vld [vmem:[%s4 + $0x190] sm:$0xff]
      %v564 = vld [vmem:[%s4 + $0x198] sm:$0xff]
      %v565 = vld [vmem:[%s4 + $0x1a0] sm:$0xf]
      %v566 = vld [vmem:[%s4 + $0x1a4] sm:$0xff]
      %v567 = vld [vmem:[%s4 + $0x1ac] sm:$0xff]
      %v568 = vld [vmem:[%s4 + $0x1b4] sm:$0xff]
      %v569 = vld [vmem:[%s4 + $0x1bc] sm:$0xf]
      %v570 = vld [vmem:[%s5] sm:$0xff]
      %v571 = vld [vmem:[%s5 + $0x8] sm:$0xff]
      %v572 = vld [vmem:[%s5 + $0x10] sm:$0xff]
      %v573 = vld [vmem:[%s5 + $0x18] sm:$0xf]
      %v574 = vld [vmem:[%s5 + $0x1c] sm:$0xff]
      %v575 = vld [vmem:[%s5 + $0x24] sm:$0xff]
      %v576 = vld [vmem:[%s5 + $0x2c] sm:$0xff]
      %v577 = vld [vmem:[%s5 + $0x34] sm:$0xf]
      %v578 = vld [vmem:[%s5 + $0x38] sm:$0xff]
      %v579 = vld [vmem:[%s5 + $0x40] sm:$0xff]
      %v580 = vld [vmem:[%s5 + $0x48] sm:$0xff]
      %v581 = vld [vmem:[%s5 + $0x50] sm:$0xf]
      %v582 = vld [vmem:[%s5 + $0x54] sm:$0xff]
      %v583 = vld [vmem:[%s5 + $0x5c] sm:$0xff]
      %v584 = vld [vmem:[%s5 + $0x64] sm:$0xff]
      %v585 = vld [vmem:[%s5 + $0x6c] sm:$0xf]
      %v586 = vld [vmem:[%s5 + $0x70] sm:$0xff]
      %v587 = vld [vmem:[%s5 + $0x78] sm:$0xff]
      %v588 = vld [vmem:[%s5 + $0x80] sm:$0xff]
      %v589 = vld [vmem:[%s5 + $0x88] sm:$0xf]
      %v590 = vld [vmem:[%s5 + $0x8c] sm:$0xff]
      %v591 = vld [vmem:[%s5 + $0x94] sm:$0xff]
      %v592 = vld [vmem:[%s5 + $0x9c] sm:$0xff]
      %v593 = vld [vmem:[%s5 + $0xa4] sm:$0xf]
      %v594 = vld [vmem:[%s5 + $0xa8] sm:$0xff]
      %v595 = vld [vmem:[%s5 + $0xb0] sm:$0xff]
      %v596 = vld [vmem:[%s5 + $0xb8] sm:$0xff]
      %v597 = vld [vmem:[%s5 + $0xc0] sm:$0xf]
      %v598 = vld [vmem:[%s5 + $0xc4] sm:$0xff]
      %v599 = vld [vmem:[%s5 + $0xcc] sm:$0xff]
      %v600 = vld [vmem:[%s5 + $0xd4] sm:$0xff]
      %v601 = vld [vmem:[%s5 + $0xdc] sm:$0xf]
      %v602 = vld [vmem:[%s5 + $0xe0] sm:$0xff]
      %v603 = vld [vmem:[%s5 + $0xe8] sm:$0xff]
      %v604 = vld [vmem:[%s5 + $0xf0] sm:$0xff]
      %v605 = vld [vmem:[%s5 + $0xf8] sm:$0xf]
      %v606 = vld [vmem:[%s5 + $0xfc] sm:$0xff]
      %v607 = vld [vmem:[%s5 + $0x104] sm:$0xff]
      %v608 = vld [vmem:[%s5 + $0x10c] sm:$0xff]
      %v609 = vld [vmem:[%s5 + $0x114] sm:$0xf]
      %v610 = vld [vmem:[%s5 + $0x118] sm:$0xff]
      %v611 = vld [vmem:[%s5 + $0x120] sm:$0xff]
      %v612 = vld [vmem:[%s5 + $0x128] sm:$0xff]
      %v613 = vld [vmem:[%s5 + $0x130] sm:$0xf]
      %v614 = vld [vmem:[%s5 + $0x134] sm:$0xff]
      %v615 = vld [vmem:[%s5 + $0x13c] sm:$0xff]
      %v616 = vld [vmem:[%s5 + $0x144] sm:$0xff]
      %v617 = vld [vmem:[%s5 + $0x14c] sm:$0xf]
      %v618 = vld [vmem:[%s5 + $0x150] sm:$0xff]
      %v619 = vld [vmem:[%s5 + $0x158] sm:$0xff]
      %v620 = vld [vmem:[%s5 + $0x160] sm:$0xff]
      %v621 = vld [vmem:[%s5 + $0x168] sm:$0xf]
      %v622 = vld [vmem:[%s5 + $0x16c] sm:$0xff]
      %v623 = vld [vmem:[%s5 + $0x174] sm:$0xff]
      %v624 = vld [vmem:[%s5 + $0x17c] sm:$0xff]
      %v625 = vld [vmem:[%s5 + $0x184] sm:$0xf]
      %v682 = vunpack.c.l.b16 %v570
      %v683 = vunpack.c.h.b16 %v570
      %v684 = vunpack.c.l.b16 %v571
      %v685 = vunpack.c.h.b16 %v571
      %v686 = vunpack.c.l.b16 %v572
      %v687 = vunpack.c.h.b16 %v572
      %v688 = vunpack.c.l.b16 %v573
      %v689 = vunpack.c.l.b16 %v574
      %v690 = vunpack.c.h.b16 %v574
      %v691 = vunpack.c.l.b16 %v575
      %v692 = vunpack.c.h.b16 %v575
      %v693 = vunpack.c.l.b16 %v576
      %v694 = vunpack.c.h.b16 %v576
      %v695 = vunpack.c.l.b16 %v577
      %v696 = vunpack.c.l.b16 %v578
      %v697 = vunpack.c.h.b16 %v578
      %v698 = vunpack.c.l.b16 %v579
      %v699 = vunpack.c.h.b16 %v579
      %v700 = vunpack.c.l.b16 %v580
      %v701 = vunpack.c.h.b16 %v580
      %v702 = vunpack.c.l.b16 %v581
      %v703 = vunpack.c.l.b16 %v582
      %v704 = vunpack.c.h.b16 %v582
      %v705 = vunpack.c.l.b16 %v583
      %v706 = vunpack.c.h.b16 %v583
      %v707 = vunpack.c.l.b16 %v584
      %v708 = vunpack.c.h.b16 %v584
      %v709 = vunpack.c.l.b16 %v585
      %v710 = vunpack.c.l.b16 %v586
      %v711 = vunpack.c.h.b16 %v586
      %v712 = vunpack.c.l.b16 %v587
      %v713 = vunpack.c.h.b16 %v587
      %v714 = vunpack.c.l.b16 %v588
      %v715 = vunpack.c.h.b16 %v588
      %v716 = vunpack.c.l.b16 %v589
      %v717 = vunpack.c.l.b16 %v590
      %v718 = vunpack.c.h.b16 %v590
      %v719 = vunpack.c.l.b16 %v591
      %v720 = vunpack.c.h.b16 %v591
      %v721 = vunpack.c.l.b16 %v592
      %v722 = vunpack.c.h.b16 %v592
      %v723 = vunpack.c.l.b16 %v593
      %v724 = vunpack.c.l.b16 %v594
      %v725 = vunpack.c.h.b16 %v594
      %v726 = vunpack.c.l.b16 %v595
      %v727 = vunpack.c.h.b16 %v595
      %v728 = vunpack.c.l.b16 %v596
      %v729 = vunpack.c.h.b16 %v596
      %v730 = vunpack.c.l.b16 %v597
      %v731 = vunpack.c.l.b16 %v598
      %v732 = vunpack.c.h.b16 %v598
      %v733 = vunpack.c.l.b16 %v599
      %v734 = vunpack.c.h.b16 %v599
      %v735 = vunpack.c.l.b16 %v600
      %v736 = vunpack.c.h.b16 %v600
      %v737 = vunpack.c.l.b16 %v601
      %v738 = vunpack.c.l.b16 %v602
      %v739 = vunpack.c.h.b16 %v602
      %v740 = vunpack.c.l.b16 %v603
      %v741 = vunpack.c.h.b16 %v603
      %v742 = vunpack.c.l.b16 %v604
      %v743 = vunpack.c.h.b16 %v604
      %v744 = vunpack.c.l.b16 %v605
      %v745 = vunpack.c.l.b16 %v606
      %v746 = vunpack.c.h.b16 %v606
      %v747 = vunpack.c.l.b16 %v607
      %v748 = vunpack.c.h.b16 %v607
      %v749 = vunpack.c.l.b16 %v608
      %v750 = vunpack.c.h.b16 %v608
      %v751 = vunpack.c.l.b16 %v609
      %v752 = vunpack.c.l.b16 %v610
      %v753 = vunpack.c.h.b16 %v610
      %v754 = vunpack.c.l.b16 %v611
      %v755 = vunpack.c.h.b16 %v611
      %v756 = vunpack.c.l.b16 %v612
      %v757 = vunpack.c.h.b16 %v612
      %v758 = vunpack.c.l.b16 %v613
      %v759 = vunpack.c.l.b16 %v614
      %v760 = vunpack.c.h.b16 %v614
      %v761 = vunpack.c.l.b16 %v615
      %v762 = vunpack.c.h.b16 %v615
      %v763 = vunpack.c.l.b16 %v616
      %v764 = vunpack.c.h.b16 %v616
      %v765 = vunpack.c.l.b16 %v617
      %v766 = vunpack.c.l.b16 %v618
      %v767 = vunpack.c.h.b16 %v618
      %v768 = vunpack.c.l.b16 %v619
      %v769 = vunpack.c.h.b16 %v619
      %v770 = vunpack.c.l.b16 %v620
      %v771 = vunpack.c.h.b16 %v620
      %v772 = vunpack.c.l.b16 %v621
      %v773 = vunpack.c.l.b16 %v622
      %v774 = vunpack.c.h.b16 %v622
      %v775 = vunpack.c.l.b16 %v623
      %v776 = vunpack.c.h.b16 %v623
      %v777 = vunpack.c.l.b16 %v624
      %v778 = vunpack.c.h.b16 %v624
      %v779 = vunpack.c.l.b16 %v625
      %v780 = vpack.c.b16 %v689, %v682
      %v781 = vpack.c.b16 %v690, %v683
      %v782 = vpack.c.b16 %v691, %v684
      %v783 = vpack.c.b16 %v692, %v685
      %v784 = vpack.c.b16 %v693, %v686
      %v785 = vpack.c.b16 %v694, %v687
      %v786 = vpack.c.b16 %v695, %v688
      %v787 = vpack.c.b16 %v703, %v696
      %v788 = vpack.c.b16 %v704, %v697
      %v789 = vpack.c.b16 %v705, %v698
      %v790 = vpack.c.b16 %v706, %v699
      %v791 = vpack.c.b16 %v707, %v700
      %v792 = vpack.c.b16 %v708, %v701
      %v793 = vpack.c.b16 %v709, %v702
      %v794 = vpack.c.b16 %v717, %v710
      %v795 = vpack.c.b16 %v718, %v711
      %v796 = vpack.c.b16 %v719, %v712
      %v797 = vpack.c.b16 %v720, %v713
      %v798 = vpack.c.b16 %v721, %v714
      %v799 = vpack.c.b16 %v722, %v715
      %v800 = vpack.c.b16 %v723, %v716
      %v801 = vpack.c.b16 %v731, %v724
      %v802 = vpack.c.b16 %v732, %v725
      %v803 = vpack.c.b16 %v733, %v726
      %v804 = vpack.c.b16 %v734, %v727
      %v805 = vpack.c.b16 %v735, %v728
      %v806 = vpack.c.b16 %v736, %v729
      %v807 = vpack.c.b16 %v737, %v730
      %v808 = vpack.c.b16 %v745, %v738
      %v809 = vpack.c.b16 %v746, %v739
      %v810 = vpack.c.b16 %v747, %v740
      %v811 = vpack.c.b16 %v748, %v741
      %v812 = vpack.c.b16 %v749, %v742
      %v813 = vpack.c.b16 %v750, %v743
      %v814 = vpack.c.b16 %v751, %v744
      %v815 = vpack.c.b16 %v759, %v752
      %v816 = vpack.c.b16 %v760, %v753
      %v817 = vpack.c.b16 %v761, %v754
      %v818 = vpack.c.b16 %v762, %v755
      %v819 = vpack.c.b16 %v763, %v756
      %v820 = vpack.c.b16 %v764, %v757
      %v821 = vpack.c.b16 %v765, %v758
      %v822 = vpack.c.b16 %v773, %v766
      %v823 = vpack.c.b16 %v774, %v767
      %v824 = vpack.c.b16 %v775, %v768
      %v825 = vpack.c.b16 %v776, %v769
      %v826 = vpack.c.b16 %v777, %v770
      %v827 = vpack.c.b16 %v778, %v771
      %v828 = vpack.c.b16 %v779, %v772
      %vm878 = vcmask 916480
      %v880 = vsel %vm878, %v505, 0
      %882 = vmatpush.bf16.msra.mxu0 0
      %883 = vmatpush.bf16.msra.mxu0 %v822
      %884 = vmatpush.bf16.msra.mxu0 %v815
      %885 = vmatpush.bf16.msra.mxu0 %v808
      %886 = vmatpush.bf16.msra.mxu0 %v801
      %887 = vmatpush.bf16.msra.mxu0 %v794
      %888 = vmatpush.bf16.msra.mxu0 %v787
      %889 = vmatpush.bf16.msra.mxu0 %v780
      %890 = vmatmul.bf16.gmra.mxu0 %v880
      %v891 = vpop.f32.mrf.mxu0
      %v892 = vadd.f32 0.0, %v891
      %v893 = vpop.f32.mrf.mxu0
      %v894 = vadd.f32 0.0, %v893
      %895 = vdwg.mxu0
      %896 = vmatpush.bf16.msra.mxu0 0
      %897 = vmatpush.bf16.msra.mxu0 %v823
      %898 = vmatpush.bf16.msra.mxu0 %v816
      %899 = vmatpush.bf16.msra.mxu0 %v809
      %900 = vmatpush.bf16.msra.mxu0 %v802
      %901 = vmatpush.bf16.msra.mxu0 %v795
      %902 = vmatpush.bf16.msra.mxu0 %v788
      %903 = vmatpush.bf16.msra.mxu0 %v781
      %904 = vmatmul.bf16.gmra.mxu0 %v880
      %v905 = vpop.f32.mrf.mxu0
      %v906 = vadd.f32 0.0, %v905
      %v907 = vpop.f32.mrf.mxu0
      %v908 = vadd.f32 0.0, %v907
      %909 = vdwg.mxu0
      %910 = vmatpush.bf16.msra.mxu0 0
      %911 = vmatpush.bf16.msra.mxu0 %v824
      %912 = vmatpush.bf16.msra.mxu0 %v817
      %913 = vmatpush.bf16.msra.mxu0 %v810
      %914 = vmatpush.bf16.msra.mxu0 %v803
      %915 = vmatpush.bf16.msra.mxu0 %v796
      %916 = vmatpush.bf16.msra.mxu0 %v789
      %917 = vmatpush.bf16.msra.mxu0 %v782
      %918 = vmatmul.bf16.gmra.mxu0 %v880
      %v919 = vpop.f32.mrf.mxu0
      %v920 = vadd.f32 0.0, %v919
      %v921 = vpop.f32.mrf.mxu0
      %v922 = vadd.f32 0.0, %v921
      %923 = vdwg.mxu0
      %924 = vmatpush.bf16.msra.mxu0 0
      %925 = vmatpush.bf16.msra.mxu0 %v825
      %926 = vmatpush.bf16.msra.mxu0 %v818
      %927 = vmatpush.bf16.msra.mxu0 %v811
      %928 = vmatpush.bf16.msra.mxu0 %v804
      %929 = vmatpush.bf16.msra.mxu0 %v797
      %930 = vmatpush.bf16.msra.mxu0 %v790
      %931 = vmatpush.bf16.msra.mxu0 %v783
      %932 = vmatmul.bf16.gmra.mxu0 %v880
      %v933 = vpop.f32.mrf.mxu0
      %v934 = vadd.f32 0.0, %v933
      %v935 = vpop.f32.mrf.mxu0
      %v936 = vadd.f32 0.0, %v935
      %937 = vdwg.mxu0
      %938 = vmatpush.bf16.msra.mxu0 0
      %939 = vmatpush.bf16.msra.mxu0 %v826
      %940 = vmatpush.bf16.msra.mxu0 %v819
      %941 = vmatpush.bf16.msra.mxu0 %v812
      %942 = vmatpush.bf16.msra.mxu0 %v805
      %943 = vmatpush.bf16.msra.mxu0 %v798
      %944 = vmatpush.bf16.msra.mxu0 %v791
      %945 = vmatpush.bf16.msra.mxu0 %v784
      %946 = vmatmul.bf16.gmra.mxu0 %v880
      %v947 = vpop.f32.mrf.mxu0
      %v948 = vadd.f32 0.0, %v947
      %v949 = vpop.f32.mrf.mxu0
      %v950 = vadd.f32 0.0, %v949
      %951 = vdwg.mxu0
      %952 = vmatpush.bf16.msra.mxu0 0
      %953 = vmatpush.bf16.msra.mxu0 %v827
      %954 = vmatpush.bf16.msra.mxu0 %v820
      %955 = vmatpush.bf16.msra.mxu0 %v813
      %956 = vmatpush.bf16.msra.mxu0 %v806
      %957 = vmatpush.bf16.msra.mxu0 %v799
      %958 = vmatpush.bf16.msra.mxu0 %v792
      %959 = vmatpush.bf16.msra.mxu0 %v785
      %960 = vmatmul.bf16.gmra.mxu0 %v880
      %v961 = vpop.f32.mrf.mxu0
      %v962 = vadd.f32 0.0, %v961
      %v963 = vpop.f32.mrf.mxu0
      %v964 = vadd.f32 0.0, %v963
      %965 = vdwg.mxu0
      %966 = vmatpush.bf16.msra.mxu0 0
      %967 = vmatpush.bf16.msra.mxu0 %v828
      %968 = vmatpush.bf16.msra.mxu0 %v821
      %969 = vmatpush.bf16.msra.mxu0 %v814
      %970 = vmatpush.bf16.msra.mxu0 %v807
      %971 = vmatpush.bf16.msra.mxu0 %v800
      %972 = vmatpush.bf16.msra.mxu0 %v793
      %973 = vmatpush.bf16.msra.mxu0 %v786
      %974 = vmatmul.bf16.gmra.mxu0 %v880
      %v975 = vpop.f32.mrf.mxu0
      %v976 = vadd.f32 0.0, %v975
      %v977 = vpop.f32.mrf.mxu0
      %v978 = vadd.f32 0.0, %v977
      %979 = vdwg.mxu0
      %v1044 = vunpack.c.l.b16 %v506
      %v1045 = vunpack.c.h.b16 %v506
      %v1046 = vunpack.c.l.b16 %v507
      %v1047 = vunpack.c.h.b16 %v507
      %v1048 = vunpack.c.l.b16 %v508
      %v1049 = vunpack.c.h.b16 %v508
      %v1050 = vunpack.c.l.b16 %v509
      %v1051 = vunpack.c.l.b16 %v510
      %v1052 = vunpack.c.h.b16 %v510
      %v1053 = vunpack.c.l.b16 %v511
      %v1054 = vunpack.c.h.b16 %v511
      %v1055 = vunpack.c.l.b16 %v512
      %v1056 = vunpack.c.h.b16 %v512
      %v1057 = vunpack.c.l.b16 %v513
      %v1058 = vunpack.c.l.b16 %v514
      %v1059 = vunpack.c.h.b16 %v514
      %v1060 = vunpack.c.l.b16 %v515
      %v1061 = vunpack.c.h.b16 %v515
      %v1062 = vunpack.c.l.b16 %v516
      %v1063 = vunpack.c.h.b16 %v516
      %v1064 = vunpack.c.l.b16 %v517
      %v1065 = vunpack.c.l.b16 %v518
      %v1066 = vunpack.c.h.b16 %v518
      %v1067 = vunpack.c.l.b16 %v519
      %v1068 = vunpack.c.h.b16 %v519
      %v1069 = vunpack.c.l.b16 %v520
      %v1070 = vunpack.c.h.b16 %v520
      %v1071 = vunpack.c.l.b16 %v521
      %v1072 = vunpack.c.l.b16 %v522
      %v1073 = vunpack.c.h.b16 %v522
      %v1074 = vunpack.c.l.b16 %v523
      %v1075 = vunpack.c.h.b16 %v523
      %v1076 = vunpack.c.l.b16 %v524
      %v1077 = vunpack.c.h.b16 %v524
      %v1078 = vunpack.c.l.b16 %v525
      %v1079 = vunpack.c.l.b16 %v526
      %v1080 = vunpack.c.h.b16 %v526
      %v1081 = vunpack.c.l.b16 %v527
      %v1082 = vunpack.c.h.b16 %v527
      %v1083 = vunpack.c.l.b16 %v528
      %v1084 = vunpack.c.h.b16 %v528
      %v1085 = vunpack.c.l.b16 %v529
      %v1086 = vunpack.c.l.b16 %v530
      %v1087 = vunpack.c.h.b16 %v530
      %v1088 = vunpack.c.l.b16 %v531
      %v1089 = vunpack.c.h.b16 %v531
      %v1090 = vunpack.c.l.b16 %v532
      %v1091 = vunpack.c.h.b16 %v532
      %v1092 = vunpack.c.l.b16 %v533
      %v1093 = vunpack.c.l.b16 %v534
      %v1094 = vunpack.c.h.b16 %v534
      %v1095 = vunpack.c.l.b16 %v535
      %v1096 = vunpack.c.h.b16 %v535
      %v1097 = vunpack.c.l.b16 %v536
      %v1098 = vunpack.c.h.b16 %v536
      %v1099 = vunpack.c.l.b16 %v537
      %v1100 = vunpack.c.l.b16 %v538
      %v1101 = vunpack.c.h.b16 %v538
      %v1102 = vunpack.c.l.b16 %v539
      %v1103 = vunpack.c.h.b16 %v539
      %v1104 = vunpack.c.l.b16 %v540
      %v1105 = vunpack.c.h.b16 %v540
      %v1106 = vunpack.c.l.b16 %v541
      %v1107 = vunpack.c.l.b16 %v542
      %v1108 = vunpack.c.h.b16 %v542
      %v1109 = vunpack.c.l.b16 %v543
      %v1110 = vunpack.c.h.b16 %v543
      %v1111 = vunpack.c.l.b16 %v544
      %v1112 = vunpack.c.h.b16 %v544
      %v1113 = vunpack.c.l.b16 %v545
      %v1114 = vunpack.c.l.b16 %v546
      %v1115 = vunpack.c.h.b16 %v546
      %v1116 = vunpack.c.l.b16 %v547
      %v1117 = vunpack.c.h.b16 %v547
      %v1118 = vunpack.c.l.b16 %v548
      %v1119 = vunpack.c.h.b16 %v548
      %v1120 = vunpack.c.l.b16 %v549
      %v1121 = vunpack.c.l.b16 %v550
      %v1122 = vunpack.c.h.b16 %v550
      %v1123 = vunpack.c.l.b16 %v551
      %v1124 = vunpack.c.h.b16 %v551
      %v1125 = vunpack.c.l.b16 %v552
      %v1126 = vunpack.c.h.b16 %v552
      %v1127 = vunpack.c.l.b16 %v553
      %v1128 = vunpack.c.l.b16 %v554
      %v1129 = vunpack.c.h.b16 %v554
      %v1130 = vunpack.c.l.b16 %v555
      %v1131 = vunpack.c.h.b16 %v555
      %v1132 = vunpack.c.l.b16 %v556
      %v1133 = vunpack.c.h.b16 %v556
      %v1134 = vunpack.c.l.b16 %v557
      %v1135 = vunpack.c.l.b16 %v558
      %v1136 = vunpack.c.h.b16 %v558
      %v1137 = vunpack.c.l.b16 %v559
      %v1138 = vunpack.c.h.b16 %v559
      %v1139 = vunpack.c.l.b16 %v560
      %v1140 = vunpack.c.h.b16 %v560
      %v1141 = vunpack.c.l.b16 %v561
      %v1142 = vunpack.c.l.b16 %v562
      %v1143 = vunpack.c.h.b16 %v562
      %v1144 = vunpack.c.l.b16 %v563
      %v1145 = vunpack.c.h.b16 %v563
      %v1146 = vunpack.c.l.b16 %v564
      %v1147 = vunpack.c.h.b16 %v564
      %v1148 = vunpack.c.l.b16 %v565
      %v1149 = vunpack.c.l.b16 %v566
      %v1150 = vunpack.c.h.b16 %v566
      %v1151 = vunpack.c.l.b16 %v567
      %v1152 = vunpack.c.h.b16 %v567
      %v1153 = vunpack.c.l.b16 %v568
      %v1154 = vunpack.c.h.b16 %v568
      %v1155 = vunpack.c.l.b16 %v569
      %v1156 = vpack.c.b16 %v1051, %v1044
      %v1157 = vpack.c.b16 %v1052, %v1045
      %v1158 = vpack.c.b16 %v1053, %v1046
      %v1159 = vpack.c.b16 %v1054, %v1047
      %v1160 = vpack.c.b16 %v1055, %v1048
      %v1161 = vpack.c.b16 %v1056, %v1049
      %v1162 = vpack.c.b16 %v1057, %v1050
      %v1163 = vpack.c.b16 %v1065, %v1058
      %v1164 = vpack.c.b16 %v1066, %v1059
      %v1165 = vpack.c.b16 %v1067, %v1060
      %v1166 = vpack.c.b16 %v1068, %v1061
      %v1167 = vpack.c.b16 %v1069, %v1062
      %v1168 = vpack.c.b16 %v1070, %v1063
      %v1169 = vpack.c.b16 %v1071, %v1064
      %v1170 = vpack.c.b16 %v1079, %v1072
      %v1171 = vpack.c.b16 %v1080, %v1073
      %v1172 = vpack.c.b16 %v1081, %v1074
      %v1173 = vpack.c.b16 %v1082, %v1075
      %v1174 = vpack.c.b16 %v1083, %v1076
      %v1175 = vpack.c.b16 %v1084, %v1077
      %v1176 = vpack.c.b16 %v1085, %v1078
      %v1177 = vpack.c.b16 %v1093, %v1086
      %v1178 = vpack.c.b16 %v1094, %v1087
      %v1179 = vpack.c.b16 %v1095, %v1088
      %v1180 = vpack.c.b16 %v1096, %v1089
      %v1181 = vpack.c.b16 %v1097, %v1090
      %v1182 = vpack.c.b16 %v1098, %v1091
      %v1183 = vpack.c.b16 %v1099, %v1092
      %v1184 = vpack.c.b16 %v1107, %v1100
      %v1185 = vpack.c.b16 %v1108, %v1101
      %v1186 = vpack.c.b16 %v1109, %v1102
      %v1187 = vpack.c.b16 %v1110, %v1103
      %v1188 = vpack.c.b16 %v1111, %v1104
      %v1189 = vpack.c.b16 %v1112, %v1105
      %v1190 = vpack.c.b16 %v1113, %v1106
      %v1191 = vpack.c.b16 %v1121, %v1114
      %v1192 = vpack.c.b16 %v1122, %v1115
      %v1193 = vpack.c.b16 %v1123, %v1116
      %v1194 = vpack.c.b16 %v1124, %v1117
      %v1195 = vpack.c.b16 %v1125, %v1118
      %v1196 = vpack.c.b16 %v1126, %v1119
      %v1197 = vpack.c.b16 %v1127, %v1120
      %v1198 = vpack.c.b16 %v1135, %v1128
      %v1199 = vpack.c.b16 %v1136, %v1129
      %v1200 = vpack.c.b16 %v1137, %v1130
      %v1201 = vpack.c.b16 %v1138, %v1131
      %v1202 = vpack.c.b16 %v1139, %v1132
      %v1203 = vpack.c.b16 %v1140, %v1133
      %v1204 = vpack.c.b16 %v1141, %v1134
      %v1205 = vpack.c.b16 %v1149, %v1142
      %v1206 = vpack.c.b16 %v1150, %v1143
      %v1207 = vpack.c.b16 %v1151, %v1144
      %v1208 = vpack.c.b16 %v1152, %v1145
      %v1209 = vpack.c.b16 %v1153, %v1146
      %v1210 = vpack.c.b16 %v1154, %v1147
      %v1211 = vpack.c.b16 %v1155, %v1148
      %1268 = vmatpush.bf16.msra.mxu0 %v1205
      %1269 = vmatpush.bf16.msra.mxu0 %v1198
      %1270 = vmatpush.bf16.msra.mxu0 %v1191
      %1271 = vmatpush.bf16.msra.mxu0 %v1184
      %1272 = vmatpush.bf16.msra.mxu0 %v1177
      %1273 = vmatpush.bf16.msra.mxu0 %v1170
      %1274 = vmatpush.bf16.msra.mxu0 %v1163
      %1275 = vmatpush.bf16.msra.mxu0 %v1156
      %1276 = vmatmul.bf16.gmra.mxu0 %v498
      %v1277 = vpop.f32.mrf.mxu0
      %v1278 = vadd.f32 %v892, %v1277
      %v1279 = vpop.f32.mrf.mxu0
      %v1280 = vadd.f32 %v894, %v1279
      %1281 = vdwg.mxu0
      %1282 = vmatpush.bf16.msra.mxu0 %v1206
      %1283 = vmatpush.bf16.msra.mxu0 %v1199
      %1284 = vmatpush.bf16.msra.mxu0 %v1192
      %1285 = vmatpush.bf16.msra.mxu0 %v1185
      %1286 = vmatpush.bf16.msra.mxu0 %v1178
      %1287 = vmatpush.bf16.msra.mxu0 %v1171
      %1288 = vmatpush.bf16.msra.mxu0 %v1164
      %1289 = vmatpush.bf16.msra.mxu0 %v1157
      %1290 = vmatmul.bf16.gmra.mxu0 %v498
      %v1291 = vpop.f32.mrf.mxu0
      %v1292 = vadd.f32 %v906, %v1291
      %v1293 = vpop.f32.mrf.mxu0
      %v1294 = vadd.f32 %v908, %v1293
      %1295 = vdwg.mxu0
      %1296 = vmatpush.bf16.msra.mxu0 %v1207
      %1297 = vmatpush.bf16.msra.mxu0 %v1200
      %1298 = vmatpush.bf16.msra.mxu0 %v1193
      %1299 = vmatpush.bf16.msra.mxu0 %v1186
      %1300 = vmatpush.bf16.msra.mxu0 %v1179
      %1301 = vmatpush.bf16.msra.mxu0 %v1172
      %1302 = vmatpush.bf16.msra.mxu0 %v1165
      %1303 = vmatpush.bf16.msra.mxu0 %v1158
      %1304 = vmatmul.bf16.gmra.mxu0 %v498
      %v1305 = vpop.f32.mrf.mxu0
      %v1306 = vadd.f32 %v920, %v1305
      %v1307 = vpop.f32.mrf.mxu0
      %v1308 = vadd.f32 %v922, %v1307
      %1309 = vdwg.mxu0
      %1310 = vmatpush.bf16.msra.mxu0 %v1208
      %1311 = vmatpush.bf16.msra.mxu0 %v1201
      %1312 = vmatpush.bf16.msra.mxu0 %v1194
      %1313 = vmatpush.bf16.msra.mxu0 %v1187
      %1314 = vmatpush.bf16.msra.mxu0 %v1180
      %1315 = vmatpush.bf16.msra.mxu0 %v1173
      %1316 = vmatpush.bf16.msra.mxu0 %v1166
      %1317 = vmatpush.bf16.msra.mxu0 %v1159
      %1318 = vmatmul.bf16.gmra.mxu0 %v498
      %v1319 = vpop.f32.mrf.mxu0
      %v1320 = vadd.f32 %v934, %v1319
      %v1321 = vpop.f32.mrf.mxu0
      %v1322 = vadd.f32 %v936, %v1321
      %1323 = vdwg.mxu0
      %1324 = vmatpush.bf16.msra.mxu0 %v1209
      %1325 = vmatpush.bf16.msra.mxu0 %v1202
      %1326 = vmatpush.bf16.msra.mxu0 %v1195
      %1327 = vmatpush.bf16.msra.mxu0 %v1188
      %1328 = vmatpush.bf16.msra.mxu0 %v1181
      %1329 = vmatpush.bf16.msra.mxu0 %v1174
      %1330 = vmatpush.bf16.msra.mxu0 %v1167
      %1331 = vmatpush.bf16.msra.mxu0 %v1160
      %1332 = vmatmul.bf16.gmra.mxu0 %v498
      %v1333 = vpop.f32.mrf.mxu0
      %v1334 = vadd.f32 %v948, %v1333
      %v1335 = vpop.f32.mrf.mxu0
      %v1336 = vadd.f32 %v950, %v1335
      %1337 = vdwg.mxu0
      %1338 = vmatpush.bf16.msra.mxu0 %v1210
      %1339 = vmatpush.bf16.msra.mxu0 %v1203
      %1340 = vmatpush.bf16.msra.mxu0 %v1196
      %1341 = vmatpush.bf16.msra.mxu0 %v1189
      %1342 = vmatpush.bf16.msra.mxu0 %v1182
      %1343 = vmatpush.bf16.msra.mxu0 %v1175
      %1344 = vmatpush.bf16.msra.mxu0 %v1168
      %1345 = vmatpush.bf16.msra.mxu0 %v1161
      %1346 = vmatmul.bf16.gmra.mxu0 %v498
      %v1347 = vpop.f32.mrf.mxu0
      %v1348 = vadd.f32 %v962, %v1347
      %v1349 = vpop.f32.mrf.mxu0
      %v1350 = vadd.f32 %v964, %v1349
      %1351 = vdwg.mxu0
      %1352 = vmatpush.bf16.msra.mxu0 %v1211
      %1353 = vmatpush.bf16.msra.mxu0 %v1204
      %1354 = vmatpush.bf16.msra.mxu0 %v1197
      %1355 = vmatpush.bf16.msra.mxu0 %v1190
      %1356 = vmatpush.bf16.msra.mxu0 %v1183
      %1357 = vmatpush.bf16.msra.mxu0 %v1176
      %1358 = vmatpush.bf16.msra.mxu0 %v1169
      %1359 = vmatpush.bf16.msra.mxu0 %v1162
      %1360 = vmatmul.bf16.gmra.mxu0 %v498
      %v1361 = vpop.f32.mrf.mxu0
      %v1362 = vadd.f32 %v976, %v1361
      %v1363 = vpop.f32.mrf.mxu0
      %v1364 = vadd.f32 %v978, %v1363
      %1365 = vdwg.mxu0
      %vm1366 = vcmp.gt.f32.partialorder %v1278, 0.0
      %vm1367 = vcmp.gt.f32.partialorder %v1292, 0.0
      %vm1368 = vcmp.gt.f32.partialorder %v1306, 0.0
      %vm1369 = vcmp.gt.f32.partialorder %v1320, 0.0
      %vm1370 = vcmp.gt.f32.partialorder %v1334, 0.0
      %vm1371 = vcmp.gt.f32.partialorder %v1348, 0.0
      %vm1372 = vcmp.gt.f32.partialorder %v1362, 0.0
      %vm1373 = vcmp.gt.f32.partialorder %v1280, 0.0
      %vm1374 = vcmp.gt.f32.partialorder %v1294, 0.0
      %vm1375 = vcmp.gt.f32.partialorder %v1308, 0.0
      %vm1376 = vcmp.gt.f32.partialorder %v1322, 0.0
      %vm1377 = vcmp.gt.f32.partialorder %v1336, 0.0
      %vm1378 = vcmp.gt.f32.partialorder %v1350, 0.0
      %vm1379 = vcmp.gt.f32.partialorder %v1364, 0.0
      %v1380 = vmul.f32 %v1278, 0.01
      %v1381 = vmul.f32 %v1292, 0.01
      %v1382 = vmul.f32 %v1306, 0.01
      %v1383 = vmul.f32 %v1320, 0.01
      %v1384 = vmul.f32 %v1334, 0.01
      %v1385 = vmul.f32 %v1348, 0.01
      %v1386 = vmul.f32 %v1362, 0.01
      %v1387 = vmul.f32 %v1280, 0.01
      %v1388 = vmul.f32 %v1294, 0.01
      %v1389 = vmul.f32 %v1308, 0.01
      %v1390 = vmul.f32 %v1322, 0.01
      %v1391 = vmul.f32 %v1336, 0.01
      %v1392 = vmul.f32 %v1350, 0.01
      %v1393 = vmul.f32 %v1364, 0.01
      %v1394 = vsel %vm1366, %v1278, %v1380
      %v1395 = vsel %vm1367, %v1292, %v1381
      %v1396 = vsel %vm1368, %v1306, %v1382
      %v1397 = vsel %vm1369, %v1320, %v1383
      %v1398 = vsel %vm1370, %v1334, %v1384
      %v1399 = vsel %vm1371, %v1348, %v1385
      %v1400 = vsel %vm1372, %v1362, %v1386
      %v1401 = vsel %vm1373, %v1280, %v1387
      %v1402 = vsel %vm1374, %v1294, %v1388
      %v1403 = vsel %vm1375, %v1308, %v1389
      %v1404 = vsel %vm1376, %v1322, %v1390
      %v1405 = vsel %vm1377, %v1336, %v1391
      %v1406 = vsel %vm1378, %v1350, %v1392
      %v1407 = vsel %vm1379, %v1364, %v1393
      %v1408 = vld [vmem:[%s408] sm:$0xff]
      %v1409 = vld [vmem:[%s408 + $0x8] sm:$0xf]
      %v1410 = vld [vmem:[%s408 + $0xc] sm:$0xff]
      %v1411 = vld [vmem:[%s408 + $0x14] sm:$0xf]
      %v1412 = vld [vmem:[%s6] sm:$0xff]
      %v1413 = vld [vmem:[%s6 + $0x8] sm:$0xff]
      %v1414 = vld [vmem:[%s6 + $0x10] sm:$0xff]
      %v1415 = vld [vmem:[%s6 + $0x18] sm:$0xf]
      %v1416 = vld [vmem:[%s6 + $0x1c] sm:$0xff]
      %v1417 = vld [vmem:[%s6 + $0x24] sm:$0xff]
      %v1418 = vld [vmem:[%s6 + $0x2c] sm:$0xff]
      %v1419 = vld [vmem:[%s6 + $0x34] sm:$0xf]
      %v1420 = vld [vmem:[%s6 + $0x38] sm:$0xff]
      %v1421 = vld [vmem:[%s6 + $0x40] sm:$0xff]
      %v1422 = vld [vmem:[%s6 + $0x48] sm:$0xff]
      %v1423 = vld [vmem:[%s6 + $0x50] sm:$0xf]
      %v1424 = vld [vmem:[%s6 + $0x54] sm:$0xff]
      %v1425 = vld [vmem:[%s6 + $0x5c] sm:$0xff]
      %v1426 = vld [vmem:[%s6 + $0x64] sm:$0xff]
      %v1427 = vld [vmem:[%s6 + $0x6c] sm:$0xf]
      %v1428 = vld [vmem:[%s6 + $0x70] sm:$0xff]
      %v1429 = vld [vmem:[%s6 + $0x78] sm:$0xff]
      %v1430 = vld [vmem:[%s6 + $0x80] sm:$0xff]
      %v1431 = vld [vmem:[%s6 + $0x88] sm:$0xf]
      %v1432 = vld [vmem:[%s6 + $0x8c] sm:$0xff]
      %v1433 = vld [vmem:[%s6 + $0x94] sm:$0xff]
      %v1434 = vld [vmem:[%s6 + $0x9c] sm:$0xff]
      %v1435 = vld [vmem:[%s6 + $0xa4] sm:$0xf]
      %v1436 = vld [vmem:[%s6 + $0xa8] sm:$0xff]
      %v1437 = vld [vmem:[%s6 + $0xb0] sm:$0xff]
      %v1438 = vld [vmem:[%s6 + $0xb8] sm:$0xff]
      %v1439 = vld [vmem:[%s6 + $0xc0] sm:$0xf]
      %v1440 = vld [vmem:[%s6 + $0xc4] sm:$0xff]
      %v1441 = vld [vmem:[%s6 + $0xcc] sm:$0xff]
      %v1442 = vld [vmem:[%s6 + $0xd4] sm:$0xff]
      %v1443 = vld [vmem:[%s6 + $0xdc] sm:$0xf]
      %v1444 = vld [vmem:[%s6 + $0xe0] sm:$0xff]
      %v1445 = vld [vmem:[%s6 + $0xe8] sm:$0xff]
      %v1446 = vld [vmem:[%s6 + $0xf0] sm:$0xff]
      %v1447 = vld [vmem:[%s6 + $0xf8] sm:$0xf]
      %v1448 = vld [vmem:[%s6 + $0xfc] sm:$0xff]
      %v1449 = vld [vmem:[%s6 + $0x104] sm:$0xff]
      %v1450 = vld [vmem:[%s6 + $0x10c] sm:$0xff]
      %v1451 = vld [vmem:[%s6 + $0x114] sm:$0xf]
      %v1452 = vld [vmem:[%s6 + $0x118] sm:$0xff]
      %v1453 = vld [vmem:[%s6 + $0x120] sm:$0xff]
      %v1454 = vld [vmem:[%s6 + $0x128] sm:$0xff]
      %v1455 = vld [vmem:[%s6 + $0x130] sm:$0xf]
      %v1456 = vld [vmem:[%s6 + $0x134] sm:$0xff]
      %v1457 = vld [vmem:[%s6 + $0x13c] sm:$0xff]
      %v1458 = vld [vmem:[%s6 + $0x144] sm:$0xff]
      %v1459 = vld [vmem:[%s6 + $0x14c] sm:$0xf]
      %v1460 = vld [vmem:[%s6 + $0x150] sm:$0xff]
      %v1461 = vld [vmem:[%s6 + $0x158] sm:$0xff]
      %v1462 = vld [vmem:[%s6 + $0x160] sm:$0xff]
      %v1463 = vld [vmem:[%s6 + $0x168] sm:$0xf]
      %v1464 = vld [vmem:[%s6 + $0x16c] sm:$0xff]
      %v1465 = vld [vmem:[%s6 + $0x174] sm:$0xff]
      %v1466 = vld [vmem:[%s6 + $0x17c] sm:$0xff]
      %v1467 = vld [vmem:[%s6 + $0x184] sm:$0xf]
      %v1468 = vld [vmem:[%s6 + $0x188] sm:$0xff]
      %v1469 = vld [vmem:[%s6 + $0x190] sm:$0xff]
      %v1470 = vld [vmem:[%s6 + $0x198] sm:$0xff]
      %v1471 = vld [vmem:[%s6 + $0x1a0] sm:$0xf]
      %v1472 = vld [vmem:[%s6 + $0x1a4] sm:$0xff]
      %v1473 = vld [vmem:[%s6 + $0x1ac] sm:$0xff]
      %v1474 = vld [vmem:[%s6 + $0x1b4] sm:$0xff]
      %v1475 = vld [vmem:[%s6 + $0x1bc] sm:$0xf]
      %v1476 = vld [vmem:[%s6 + $0x1c0] sm:$0xff]
      %v1477 = vld [vmem:[%s6 + $0x1c8] sm:$0xff]
      %v1478 = vld [vmem:[%s6 + $0x1d0] sm:$0xff]
      %v1479 = vld [vmem:[%s6 + $0x1d8] sm:$0xf]
      %v1480 = vld [vmem:[%s6 + $0x1dc] sm:$0xff]
      %v1481 = vld [vmem:[%s6 + $0x1e4] sm:$0xff]
      %v1482 = vld [vmem:[%s6 + $0x1ec] sm:$0xff]
      %v1483 = vld [vmem:[%s6 + $0x1f4] sm:$0xf]
      %v1484 = vld [vmem:[%s6 + $0x1f8] sm:$0xff]
      %v1485 = vld [vmem:[%s6 + $0x200] sm:$0xff]
      %v1486 = vld [vmem:[%s6 + $0x208] sm:$0xff]
      %v1487 = vld [vmem:[%s6 + $0x210] sm:$0xf]
      %v1488 = vld [vmem:[%s6 + $0x214] sm:$0xff]
      %v1489 = vld [vmem:[%s6 + $0x21c] sm:$0xff]
      %v1490 = vld [vmem:[%s6 + $0x224] sm:$0xff]
      %v1491 = vld [vmem:[%s6 + $0x22c] sm:$0xf]
      %v1492 = vld [vmem:[%s6 + $0x230] sm:$0xff]
      %v1493 = vld [vmem:[%s6 + $0x238] sm:$0xff]
      %v1494 = vld [vmem:[%s6 + $0x240] sm:$0xff]
      %v1495 = vld [vmem:[%s6 + $0x248] sm:$0xf]
      %v1496 = vld [vmem:[%s6 + $0x24c] sm:$0xff]
      %v1497 = vld [vmem:[%s6 + $0x254] sm:$0xff]
      %v1498 = vld [vmem:[%s6 + $0x25c] sm:$0xff]
      %v1499 = vld [vmem:[%s6 + $0x264] sm:$0xf]
      %v1500 = vld [vmem:[%s6 + $0x268] sm:$0xff]
      %v1501 = vld [vmem:[%s6 + $0x270] sm:$0xff]
      %v1502 = vld [vmem:[%s6 + $0x278] sm:$0xff]
      %v1503 = vld [vmem:[%s6 + $0x280] sm:$0xf]
      %v1504 = vld [vmem:[%s6 + $0x284] sm:$0xff]
      %v1505 = vld [vmem:[%s6 + $0x28c] sm:$0xff]
      %v1506 = vld [vmem:[%s6 + $0x294] sm:$0xff]
      %v1507 = vld [vmem:[%s6 + $0x29c] sm:$0xf]
      %v1508 = vld [vmem:[%s6 + $0x2a0] sm:$0xff]
      %v1509 = vld [vmem:[%s6 + $0x2a8] sm:$0xff]
      %v1510 = vld [vmem:[%s6 + $0x2b0] sm:$0xff]
      %v1511 = vld [vmem:[%s6 + $0x2b8] sm:$0xf]
      %v1512 = vld [vmem:[%s6 + $0x2bc] sm:$0xff]
      %v1513 = vld [vmem:[%s6 + $0x2c4] sm:$0xff]
      %v1514 = vld [vmem:[%s6 + $0x2cc] sm:$0xff]
      %v1515 = vld [vmem:[%s6 + $0x2d4] sm:$0xf]
      %v1516 = vld [vmem:[%s6 + $0x2d8] sm:$0xff]
      %v1517 = vld [vmem:[%s6 + $0x2e0] sm:$0xff]
      %v1518 = vld [vmem:[%s6 + $0x2e8] sm:$0xff]
      %v1519 = vld [vmem:[%s6 + $0x2f0] sm:$0xf]
      %v1520 = vld [vmem:[%s6 + $0x2f4] sm:$0xff]
      %v1521 = vld [vmem:[%s6 + $0x2fc] sm:$0xff]
      %v1522 = vld [vmem:[%s6 + $0x304] sm:$0xff]
      %v1523 = vld [vmem:[%s6 + $0x30c] sm:$0xf]
      %v1524 = vld [vmem:[%s6 + $0x310] sm:$0xff]
      %v1525 = vld [vmem:[%s6 + $0x318] sm:$0xff]
      %v1526 = vld [vmem:[%s6 + $0x320] sm:$0xff]
      %v1527 = vld [vmem:[%s6 + $0x328] sm:$0xf]
      %v1528 = vld [vmem:[%s6 + $0x32c] sm:$0xff]
      %v1529 = vld [vmem:[%s6 + $0x334] sm:$0xff]
      %v1530 = vld [vmem:[%s6 + $0x33c] sm:$0xff]
      %v1531 = vld [vmem:[%s6 + $0x344] sm:$0xf]
      %v1532 = vld [vmem:[%s6 + $0x348] sm:$0xff]
      %v1533 = vld [vmem:[%s6 + $0x350] sm:$0xff]
      %v1534 = vld [vmem:[%s6 + $0x358] sm:$0xff]
      %v1535 = vld [vmem:[%s6 + $0x360] sm:$0xf]
      %v1536 = vld [vmem:[%s6 + $0x364] sm:$0xff]
      %v1537 = vld [vmem:[%s6 + $0x36c] sm:$0xff]
      %v1538 = vld [vmem:[%s6 + $0x374] sm:$0xff]
      %v1539 = vld [vmem:[%s6 + $0x37c] sm:$0xf]
      %v1540 = vld [vmem:[%s6 + $0x380] sm:$0xff]
      %v1541 = vld [vmem:[%s6 + $0x388] sm:$0xff]
      %v1542 = vld [vmem:[%s6 + $0x390] sm:$0xff]
      %v1543 = vld [vmem:[%s6 + $0x398] sm:$0xf]
      %v1544 = vld [vmem:[%s6 + $0x39c] sm:$0xff]
      %v1545 = vld [vmem:[%s6 + $0x3a4] sm:$0xff]
      %v1546 = vld [vmem:[%s6 + $0x3ac] sm:$0xff]
      %v1547 = vld [vmem:[%s6 + $0x3b4] sm:$0xf]
      %v1548 = vld [vmem:[%s6 + $0x3b8] sm:$0xff]
      %v1549 = vld [vmem:[%s6 + $0x3c0] sm:$0xff]
      %v1550 = vld [vmem:[%s6 + $0x3c8] sm:$0xff]
      %v1551 = vld [vmem:[%s6 + $0x3d0] sm:$0xf]
      %v1552 = vld [vmem:[%s7] sm:$0xff]
      %v1554 = vperm.slane %v1552, 0
      %v1555 = vperm.slane %v1552, 1
      %v1556 = vperm.slane %v1552, 2
      %v1557 = vperm.slane %v1552, 3
      %v1558 = vperm.slane %v1552, 4
      %v1559 = vperm.slane %v1552, 5
      %v1560 = vperm.slane %v1552, 6
      %v1572 = vunpack.c.l.b16 %v1408
      %v1573 = vunpack.c.h.b16 %v1408
      %v1574 = vunpack.c.l.b16 %v1409
      %v1575 = vunpack.c.l.b16 %v1410
      %v1576 = vunpack.c.h.b16 %v1410
      %v1577 = vunpack.c.l.b16 %v1411
      %v1578 = vpack.c.b16 %v1575, %v1572
      %v1579 = vpack.c.b16 %v1576, %v1573
      %v1580 = vpack.c.b16 %v1577, %v1574
      %v1723 = vunpack.c.l.b16 %v1412
      %v1724 = vunpack.c.h.b16 %v1412
      %v1725 = vunpack.c.l.b16 %v1413
      %v1726 = vunpack.c.h.b16 %v1413
      %v1727 = vunpack.c.l.b16 %v1414
      %v1728 = vunpack.c.h.b16 %v1414
      %v1729 = vunpack.c.l.b16 %v1415
      %v1730 = vunpack.c.l.b16 %v1416
      %v1731 = vunpack.c.h.b16 %v1416
      %v1732 = vunpack.c.l.b16 %v1417
      %v1733 = vunpack.c.h.b16 %v1417
      %v1734 = vunpack.c.l.b16 %v1418
      %v1735 = vunpack.c.h.b16 %v1418
      %v1736 = vunpack.c.l.b16 %v1419
      %v1737 = vunpack.c.l.b16 %v1420
      %v1738 = vunpack.c.h.b16 %v1420
      %v1739 = vunpack.c.l.b16 %v1421
      %v1740 = vunpack.c.h.b16 %v1421
      %v1741 = vunpack.c.l.b16 %v1422
      %v1742 = vunpack.c.h.b16 %v1422
      %v1743 = vunpack.c.l.b16 %v1423
      %v1744 = vunpack.c.l.b16 %v1424
      %v1745 = vunpack.c.h.b16 %v1424
      %v1746 = vunpack.c.l.b16 %v1425
      %v1747 = vunpack.c.h.b16 %v1425
      %v1748 = vunpack.c.l.b16 %v1426
      %v1749 = vunpack.c.h.b16 %v1426
      %v1750 = vunpack.c.l.b16 %v1427
      %v1751 = vunpack.c.l.b16 %v1428
      %v1752 = vunpack.c.h.b16 %v1428
      %v1753 = vunpack.c.l.b16 %v1429
      %v1754 = vunpack.c.h.b16 %v1429
      %v1755 = vunpack.c.l.b16 %v1430
      %v1756 = vunpack.c.h.b16 %v1430
      %v1757 = vunpack.c.l.b16 %v1431
      %v1758 = vunpack.c.l.b16 %v1432
      %v1759 = vunpack.c.h.b16 %v1432
      %v1760 = vunpack.c.l.b16 %v1433
      %v1761 = vunpack.c.h.b16 %v1433
      %v1762 = vunpack.c.l.b16 %v1434
      %v1763 = vunpack.c.h.b16 %v1434
      %v1764 = vunpack.c.l.b16 %v1435
      %v1765 = vunpack.c.l.b16 %v1436
      %v1766 = vunpack.c.h.b16 %v1436
      %v1767 = vunpack.c.l.b16 %v1437
      %v1768 = vunpack.c.h.b16 %v1437
      %v1769 = vunpack.c.l.b16 %v1438
      %v1770 = vunpack.c.h.b16 %v1438
      %v1771 = vunpack.c.l.b16 %v1439
      %v1772 = vunpack.c.l.b16 %v1440
      %v1773 = vunpack.c.h.b16 %v1440
      %v1774 = vunpack.c.l.b16 %v1441
      %v1775 = vunpack.c.h.b16 %v1441
      %v1776 = vunpack.c.l.b16 %v1442
      %v1777 = vunpack.c.h.b16 %v1442
      %v1778 = vunpack.c.l.b16 %v1443
      %v1779 = vunpack.c.l.b16 %v1444
      %v1780 = vunpack.c.h.b16 %v1444
      %v1781 = vunpack.c.l.b16 %v1445
      %v1782 = vunpack.c.h.b16 %v1445
      %v1783 = vunpack.c.l.b16 %v1446
      %v1784 = vunpack.c.h.b16 %v1446
      %v1785 = vunpack.c.l.b16 %v1447
      %v1786 = vunpack.c.l.b16 %v1448
      %v1787 = vunpack.c.h.b16 %v1448
      %v1788 = vunpack.c.l.b16 %v1449
      %v1789 = vunpack.c.h.b16 %v1449
      %v1790 = vunpack.c.l.b16 %v1450
      %v1791 = vunpack.c.h.b16 %v1450
      %v1792 = vunpack.c.l.b16 %v1451
      %v1793 = vunpack.c.l.b16 %v1452
      %v1794 = vunpack.c.h.b16 %v1452
      %v1795 = vunpack.c.l.b16 %v1453
      %v1796 = vunpack.c.h.b16 %v1453
      %v1797 = vunpack.c.l.b16 %v1454
      %v1798 = vunpack.c.h.b16 %v1454
      %v1799 = vunpack.c.l.b16 %v1455
      %v1800 = vunpack.c.l.b16 %v1456
      %v1801 = vunpack.c.h.b16 %v1456
      %v1802 = vunpack.c.l.b16 %v1457
      %v1803 = vunpack.c.h.b16 %v1457
      %v1804 = vunpack.c.l.b16 %v1458
      %v1805 = vunpack.c.h.b16 %v1458
      %v1806 = vunpack.c.l.b16 %v1459
      %v1807 = vunpack.c.l.b16 %v1460
      %v1808 = vunpack.c.h.b16 %v1460
      %v1809 = vunpack.c.l.b16 %v1461
      %v1810 = vunpack.c.h.b16 %v1461
      %v1811 = vunpack.c.l.b16 %v1462
      %v1812 = vunpack.c.h.b16 %v1462
      %v1813 = vunpack.c.l.b16 %v1463
      %v1814 = vunpack.c.l.b16 %v1464
      %v1815 = vunpack.c.h.b16 %v1464
      %v1816 = vunpack.c.l.b16 %v1465
      %v1817 = vunpack.c.h.b16 %v1465
      %v1818 = vunpack.c.l.b16 %v1466
      %v1819 = vunpack.c.h.b16 %v1466
      %v1820 = vunpack.c.l.b16 %v1467
      %v1821 = vunpack.c.l.b16 %v1468
      %v1822 = vunpack.c.h.b16 %v1468
      %v1823 = vunpack.c.l.b16 %v1469
      %v1824 = vunpack.c.h.b16 %v1469
      %v1825 = vunpack.c.l.b16 %v1470
      %v1826 = vunpack.c.h.b16 %v1470
      %v1827 = vunpack.c.l.b16 %v1471
      %v1828 = vunpack.c.l.b16 %v1472
      %v1829 = vunpack.c.h.b16 %v1472
      %v1830 = vunpack.c.l.b16 %v1473
      %v1831 = vunpack.c.h.b16 %v1473
      %v1832 = vunpack.c.l.b16 %v1474
      %v1833 = vunpack.c.h.b16 %v1474
      %v1834 = vunpack.c.l.b16 %v1475
      %v1835 = vunpack.c.l.b16 %v1476
      %v1836 = vunpack.c.h.b16 %v1476
      %v1837 = vunpack.c.l.b16 %v1477
      %v1838 = vunpack.c.h.b16 %v1477
      %v1839 = vunpack.c.l.b16 %v1478
      %v1840 = vunpack.c.h.b16 %v1478
      %v1841 = vunpack.c.l.b16 %v1479
      %v1842 = vunpack.c.l.b16 %v1480
      %v1843 = vunpack.c.h.b16 %v1480
      %v1844 = vunpack.c.l.b16 %v1481
      %v1845 = vunpack.c.h.b16 %v1481
      %v1846 = vunpack.c.l.b16 %v1482
      %v1847 = vunpack.c.h.b16 %v1482
      %v1848 = vunpack.c.l.b16 %v1483
      %v1849 = vunpack.c.l.b16 %v1484
      %v1850 = vunpack.c.h.b16 %v1484
      %v1851 = vunpack.c.l.b16 %v1485
      %v1852 = vunpack.c.h.b16 %v1485
      %v1853 = vunpack.c.l.b16 %v1486
      %v1854 = vunpack.c.h.b16 %v1486
      %v1855 = vunpack.c.l.b16 %v1487
      %v1856 = vunpack.c.l.b16 %v1488
      %v1857 = vunpack.c.h.b16 %v1488
      %v1858 = vunpack.c.l.b16 %v1489
      %v1859 = vunpack.c.h.b16 %v1489
      %v1860 = vunpack.c.l.b16 %v1490
      %v1861 = vunpack.c.h.b16 %v1490
      %v1862 = vunpack.c.l.b16 %v1491
      %v1863 = vunpack.c.l.b16 %v1492
      %v1864 = vunpack.c.h.b16 %v1492
      %v1865 = vunpack.c.l.b16 %v1493
      %v1866 = vunpack.c.h.b16 %v1493
      %v1867 = vunpack.c.l.b16 %v1494
      %v1868 = vunpack.c.h.b16 %v1494
      %v1869 = vunpack.c.l.b16 %v1495
      %v1870 = vunpack.c.l.b16 %v1496
      %v1871 = vunpack.c.h.b16 %v1496
      %v1872 = vunpack.c.l.b16 %v1497
      %v1873 = vunpack.c.h.b16 %v1497
      %v1874 = vunpack.c.l.b16 %v1498
      %v1875 = vunpack.c.h.b16 %v1498
      %v1876 = vunpack.c.l.b16 %v1499
      %v1877 = vunpack.c.l.b16 %v1500
      %v1878 = vunpack.c.h.b16 %v1500
      %v1879 = vunpack.c.l.b16 %v1501
      %v1880 = vunpack.c.h.b16 %v1501
      %v1881 = vunpack.c.l.b16 %v1502
      %v1882 = vunpack.c.h.b16 %v1502
      %v1883 = vunpack.c.l.b16 %v1503
      %v1884 = vunpack.c.l.b16 %v1504
      %v1885 = vunpack.c.h.b16 %v1504
      %v1886 = vunpack.c.l.b16 %v1505
      %v1887 = vunpack.c.h.b16 %v1505
      %v1888 = vunpack.c.l.b16 %v1506
      %v1889 = vunpack.c.h.b16 %v1506
      %v1890 = vunpack.c.l.b16 %v1507
      %v1891 = vunpack.c.l.b16 %v1508
      %v1892 = vunpack.c.h.b16 %v1508
      %v1893 = vunpack.c.l.b16 %v1509
      %v1894 = vunpack.c.h.b16 %v1509
      %v1895 = vunpack.c.l.b16 %v1510
      %v1896 = vunpack.c.h.b16 %v1510
      %v1897 = vunpack.c.l.b16 %v1511
      %v1898 = vunpack.c.l.b16 %v1512
      %v1899 = vunpack.c.h.b16 %v1512
      %v1900 = vunpack.c.l.b16 %v1513
      %v1901 = vunpack.c.h.b16 %v1513
      %v1902 = vunpack.c.l.b16 %v1514
      %v1903 = vunpack.c.h.b16 %v1514
      %v1904 = vunpack.c.l.b16 %v1515
      %v1905 = vunpack.c.l.b16 %v1516
      %v1906 = vunpack.c.h.b16 %v1516
      %v1907 = vunpack.c.l.b16 %v1517
      %v1908 = vunpack.c.h.b16 %v1517
      %v1909 = vunpack.c.l.b16 %v1518
      %v1910 = vunpack.c.h.b16 %v1518
      %v1911 = vunpack.c.l.b16 %v1519
      %v1912 = vunpack.c.l.b16 %v1520
      %v1913 = vunpack.c.h.b16 %v1520
      %v1914 = vunpack.c.l.b16 %v1521
      %v1915 = vunpack.c.h.b16 %v1521
      %v1916 = vunpack.c.l.b16 %v1522
      %v1917 = vunpack.c.h.b16 %v1522
      %v1918 = vunpack.c.l.b16 %v1523
      %v1919 = vunpack.c.l.b16 %v1524
      %v1920 = vunpack.c.h.b16 %v1524
      %v1921 = vunpack.c.l.b16 %v1525
      %v1922 = vunpack.c.h.b16 %v1525
      %v1923 = vunpack.c.l.b16 %v1526
      %v1924 = vunpack.c.h.b16 %v1526
      %v1925 = vunpack.c.l.b16 %v1527
      %v1926 = vunpack.c.l.b16 %v1528
      %v1927 = vunpack.c.h.b16 %v1528
      %v1928 = vunpack.c.l.b16 %v1529
      %v1929 = vunpack.c.h.b16 %v1529
      %v1930 = vunpack.c.l.b16 %v1530
      %v1931 = vunpack.c.h.b16 %v1530
      %v1932 = vunpack.c.l.b16 %v1531
      %v1933 = vunpack.c.l.b16 %v1532
      %v1934 = vunpack.c.h.b16 %v1532
      %v1935 = vunpack.c.l.b16 %v1533
      %v1936 = vunpack.c.h.b16 %v1533
      %v1937 = vunpack.c.l.b16 %v1534
      %v1938 = vunpack.c.h.b16 %v1534
      %v1939 = vunpack.c.l.b16 %v1535
      %v1940 = vunpack.c.l.b16 %v1536
      %v1941 = vunpack.c.h.b16 %v1536
      %v1942 = vunpack.c.l.b16 %v1537
      %v1943 = vunpack.c.h.b16 %v1537
      %v1944 = vunpack.c.l.b16 %v1538
      %v1945 = vunpack.c.h.b16 %v1538
      %v1946 = vunpack.c.l.b16 %v1539
      %v1947 = vunpack.c.l.b16 %v1540
      %v1948 = vunpack.c.h.b16 %v1540
      %v1949 = vunpack.c.l.b16 %v1541
      %v1950 = vunpack.c.h.b16 %v1541
      %v1951 = vunpack.c.l.b16 %v1542
      %v1952 = vunpack.c.h.b16 %v1542
      %v1953 = vunpack.c.l.b16 %v1543
      %v1954 = vunpack.c.l.b16 %v1544
      %v1955 = vunpack.c.h.b16 %v1544
      %v1956 = vunpack.c.l.b16 %v1545
      %v1957 = vunpack.c.h.b16 %v1545
      %v1958 = vunpack.c.l.b16 %v1546
      %v1959 = vunpack.c.h.b16 %v1546
      %v1960 = vunpack.c.l.b16 %v1547
      %v1961 = vunpack.c.l.b16 %v1548
      %v1962 = vunpack.c.h.b16 %v1548
      %v1963 = vunpack.c.l.b16 %v1549
      %v1964 = vunpack.c.h.b16 %v1549
      %v1965 = vunpack.c.l.b16 %v1550
      %v1966 = vunpack.c.h.b16 %v1550
      %v1967 = vunpack.c.l.b16 %v1551
      %v1968 = vpack.c.b16 %v1730, %v1723
      %v1969 = vpack.c.b16 %v1731, %v1724
      %v1970 = vpack.c.b16 %v1732, %v1725
      %v1971 = vpack.c.b16 %v1733, %v1726
      %v1972 = vpack.c.b16 %v1734, %v1727
      %v1973 = vpack.c.b16 %v1735, %v1728
      %v1974 = vpack.c.b16 %v1736, %v1729
      %v1975 = vpack.c.b16 %v1744, %v1737
      %v1976 = vpack.c.b16 %v1745, %v1738
      %v1977 = vpack.c.b16 %v1746, %v1739
      %v1978 = vpack.c.b16 %v1747, %v1740
      %v1979 = vpack.c.b16 %v1748, %v1741
      %v1980 = vpack.c.b16 %v1749, %v1742
      %v1981 = vpack.c.b16 %v1750, %v1743
      %v1982 = vpack.c.b16 %v1758, %v1751
      %v1983 = vpack.c.b16 %v1759, %v1752
      %v1984 = vpack.c.b16 %v1760, %v1753
      %v1985 = vpack.c.b16 %v1761, %v1754
      %v1986 = vpack.c.b16 %v1762, %v1755
      %v1987 = vpack.c.b16 %v1763, %v1756
      %v1988 = vpack.c.b16 %v1764, %v1757
      %v1989 = vpack.c.b16 %v1772, %v1765
      %v1990 = vpack.c.b16 %v1773, %v1766
      %v1991 = vpack.c.b16 %v1774, %v1767
      %v1992 = vpack.c.b16 %v1775, %v1768
      %v1993 = vpack.c.b16 %v1776, %v1769
      %v1994 = vpack.c.b16 %v1777, %v1770
      %v1995 = vpack.c.b16 %v1778, %v1771
      %v1996 = vpack.c.b16 %v1786, %v1779
      %v1997 = vpack.c.b16 %v1787, %v1780
      %v1998 = vpack.c.b16 %v1788, %v1781
      %v1999 = vpack.c.b16 %v1789, %v1782
      %v2000 = vpack.c.b16 %v1790, %v1783
      %v2001 = vpack.c.b16 %v1791, %v1784
      %v2002 = vpack.c.b16 %v1792, %v1785
      %v2003 = vpack.c.b16 %v1800, %v1793
      %v2004 = vpack.c.b16 %v1801, %v1794
      %v2005 = vpack.c.b16 %v1802, %v1795
      %v2006 = vpack.c.b16 %v1803, %v1796
      %v2007 = vpack.c.b16 %v1804, %v1797
      %v2008 = vpack.c.b16 %v1805, %v1798
      %v2009 = vpack.c.b16 %v1806, %v1799
      %v2010 = vpack.c.b16 %v1814, %v1807
      %v2011 = vpack.c.b16 %v1815, %v1808
      %v2012 = vpack.c.b16 %v1816, %v1809
      %v2013 = vpack.c.b16 %v1817, %v1810
      %v2014 = vpack.c.b16 %v1818, %v1811
      %v2015 = vpack.c.b16 %v1819, %v1812
      %v2016 = vpack.c.b16 %v1820, %v1813
      %v2017 = vpack.c.b16 %v1828, %v1821
      %v2018 = vpack.c.b16 %v1829, %v1822
      %v2019 = vpack.c.b16 %v1830, %v1823
      %v2020 = vpack.c.b16 %v1831, %v1824
      %v2021 = vpack.c.b16 %v1832, %v1825
      %v2022 = vpack.c.b16 %v1833, %v1826
      %v2023 = vpack.c.b16 %v1834, %v1827
      %v2024 = vpack.c.b16 %v1842, %v1835
      %v2025 = vpack.c.b16 %v1843, %v1836
      %v2026 = vpack.c.b16 %v1844, %v1837
      %v2027 = vpack.c.b16 %v1845, %v1838
      %v2028 = vpack.c.b16 %v1846, %v1839
      %v2029 = vpack.c.b16 %v1847, %v1840
      %v2030 = vpack.c.b16 %v1848, %v1841
      %v2031 = vpack.c.b16 %v1856, %v1849
      %v2032 = vpack.c.b16 %v1857, %v1850
      %v2033 = vpack.c.b16 %v1858, %v1851
      %v2034 = vpack.c.b16 %v1859, %v1852
      %v2035 = vpack.c.b16 %v1860, %v1853
      %v2036 = vpack.c.b16 %v1861, %v1854
      %v2037 = vpack.c.b16 %v1862, %v1855
      %v2038 = vpack.c.b16 %v1870, %v1863
      %v2039 = vpack.c.b16 %v1871, %v1864
      %v2040 = vpack.c.b16 %v1872, %v1865
      %v2041 = vpack.c.b16 %v1873, %v1866
      %v2042 = vpack.c.b16 %v1874, %v1867
      %v2043 = vpack.c.b16 %v1875, %v1868
      %v2044 = vpack.c.b16 %v1876, %v1869
      %v2045 = vpack.c.b16 %v1884, %v1877
      %v2046 = vpack.c.b16 %v1885, %v1878
      %v2047 = vpack.c.b16 %v1886, %v1879
      %v2048 = vpack.c.b16 %v1887, %v1880
      %v2049 = vpack.c.b16 %v1888, %v1881
      %v2050 = vpack.c.b16 %v1889, %v1882
      %v2051 = vpack.c.b16 %v1890, %v1883
      %v2052 = vpack.c.b16 %v1898, %v1891
      %v2053 = vpack.c.b16 %v1899, %v1892
      %v2054 = vpack.c.b16 %v1900, %v1893
      %v2055 = vpack.c.b16 %v1901, %v1894
      %v2056 = vpack.c.b16 %v1902, %v1895
      %v2057 = vpack.c.b16 %v1903, %v1896
      %v2058 = vpack.c.b16 %v1904, %v1897
      %v2059 = vpack.c.b16 %v1912, %v1905
      %v2060 = vpack.c.b16 %v1913, %v1906
      %v2061 = vpack.c.b16 %v1914, %v1907
      %v2062 = vpack.c.b16 %v1915, %v1908
      %v2063 = vpack.c.b16 %v1916, %v1909
      %v2064 = vpack.c.b16 %v1917, %v1910
      %v2065 = vpack.c.b16 %v1918, %v1911
      %v2066 = vpack.c.b16 %v1926, %v1919
      %v2067 = vpack.c.b16 %v1927, %v1920
      %v2068 = vpack.c.b16 %v1928, %v1921
      %v2069 = vpack.c.b16 %v1929, %v1922
      %v2070 = vpack.c.b16 %v1930, %v1923
      %v2071 = vpack.c.b16 %v1931, %v1924
      %v2072 = vpack.c.b16 %v1932, %v1925
      %v2073 = vpack.c.b16 %v1940, %v1933
      %v2074 = vpack.c.b16 %v1941, %v1934
      %v2075 = vpack.c.b16 %v1942, %v1935
      %v2076 = vpack.c.b16 %v1943, %v1936
      %v2077 = vpack.c.b16 %v1944, %v1937
      %v2078 = vpack.c.b16 %v1945, %v1938
      %v2079 = vpack.c.b16 %v1946, %v1939
      %v2080 = vpack.c.b16 %v1954, %v1947
      %v2081 = vpack.c.b16 %v1955, %v1948
      %v2082 = vpack.c.b16 %v1956, %v1949
      %v2083 = vpack.c.b16 %v1957, %v1950
      %v2084 = vpack.c.b16 %v1958, %v1951
      %v2085 = vpack.c.b16 %v1959, %v1952
      %v2086 = vpack.c.b16 %v1960, %v1953
      %v2087 = vpack.c.b16 %v1961, %v1961
      %v2088 = vpack.c.b16 %v1962, %v1962
      %v2089 = vpack.c.b16 %v1963, %v1963
      %v2090 = vpack.c.b16 %v1964, %v1964
      %v2091 = vpack.c.b16 %v1965, %v1965
      %v2092 = vpack.c.b16 %v1966, %v1966
      %v2093 = vpack.c.b16 %v1967, %v1967
      %vm2213 = vcmask 195584
      %v2215 = vsel %vm2213, %v1580, 0
      %vm2217 = vcmask 1043456
      %v2219 = vsel %vm2217, %v2087, 0
      %v2222 = vsel %vm2217, %v2088, 0
      %v2225 = vsel %vm2217, %v2089, 0
      %v2228 = vsel %vm2217, %v2090, 0
      %v2231 = vsel %vm2217, %v2091, 0
      %v2234 = vsel %vm2217, %v2092, 0
      %v2237 = vsel %vm2217, %v2093, 0
      %2239 = vmatpush.bf16.msra.mxu0 %v2017
      %2240 = vmatpush.bf16.msra.mxu0 %v2010
      %2241 = vmatpush.bf16.msra.mxu0 %v2003
      %2242 = vmatpush.bf16.msra.mxu0 %v1996
      %2243 = vmatpush.bf16.msra.mxu0 %v1989
      %2244 = vmatpush.bf16.msra.mxu0 %v1982
      %2245 = vmatpush.bf16.msra.mxu0 %v1975
      %2246 = vmatpush.bf16.msra.mxu0 %v1968
      %2247 = vmatmul.bf16.gmra.mxu0 %v1578
      %v2248 = vpop.f32.mrf.mxu0
      %v2249 = vadd.f32 %v1554, %v2248
      %v2250 = vpop.f32.mrf.mxu0
      %v2251 = vadd.f32 %v1554, %v2250
      %2252 = vdwg.mxu0
      %2253 = vmatpush.bf16.msra.mxu0 %v2073
      %2254 = vmatpush.bf16.msra.mxu0 %v2066
      %2255 = vmatpush.bf16.msra.mxu0 %v2059
      %2256 = vmatpush.bf16.msra.mxu0 %v2052
      %2257 = vmatpush.bf16.msra.mxu0 %v2045
      %2258 = vmatpush.bf16.msra.mxu0 %v2038
      %2259 = vmatpush.bf16.msra.mxu0 %v2031
      %2260 = vmatpush.bf16.msra.mxu0 %v2024
      %2261 = vmatmul.bf16.gmra.mxu0 %v1579
      %v2262 = vpop.f32.mrf.mxu0
      %v2263 = vadd.f32 %v2249, %v2262
      %v2264 = vpop.f32.mrf.mxu0
      %v2265 = vadd.f32 %v2251, %v2264
      %2266 = vdwg.mxu0
      %2267 = vmatpush.bf16.msra.mxu0 0
      %2268 = vmatpush.bf16.msra.mxu0 0
      %2269 = vmatpush.bf16.msra.mxu0 0
      %2270 = vmatpush.bf16.msra.mxu0 0
      %2271 = vmatpush.bf16.msra.mxu0 0
      %2272 = vmatpush.bf16.msra.mxu0 0
      %2273 = vmatpush.bf16.msra.mxu0 %v2219
      %2274 = vmatpush.bf16.msra.mxu0 %v2080
      %2275 = vmatmul.bf16.gmra.mxu0 %v2215
      %v2276 = vpop.f32.mrf.mxu0
      %v2277 = vadd.f32 %v2263, %v2276
      %v2278 = vpop.f32.mrf.mxu0
      %v2279 = vadd.f32 %v2265, %v2278
      %2280 = vdwg.mxu0
      %2281 = vmatpush.bf16.msra.mxu0 %v2018
      %2282 = vmatpush.bf16.msra.mxu0 %v2011
      %2283 = vmatpush.bf16.msra.mxu0 %v2004
      %2284 = vmatpush.bf16.msra.mxu0 %v1997
      %2285 = vmatpush.bf16.msra.mxu0 %v1990
      %2286 = vmatpush.bf16.msra.mxu0 %v1983
      %2287 = vmatpush.bf16.msra.mxu0 %v1976
      %2288 = vmatpush.bf16.msra.mxu0 %v1969
      %2289 = vmatmul.bf16.gmra.mxu0 %v1578
      %v2290 = vpop.f32.mrf.mxu0
      %v2291 = vadd.f32 %v1555, %v2290
      %v2292 = vpop.f32.mrf.mxu0
      %v2293 = vadd.f32 %v1555, %v2292
      %2294 = vdwg.mxu0
      %2295 = vmatpush.bf16.msra.mxu0 %v2074
      %2296 = vmatpush.bf16.msra.mxu0 %v2067
      %2297 = vmatpush.bf16.msra.mxu0 %v2060
      %2298 = vmatpush.bf16.msra.mxu0 %v2053
      %2299 = vmatpush.bf16.msra.mxu0 %v2046
      %2300 = vmatpush.bf16.msra.mxu0 %v2039
      %2301 = vmatpush.bf16.msra.mxu0 %v2032
      %2302 = vmatpush.bf16.msra.mxu0 %v2025
      %2303 = vmatmul.bf16.gmra.mxu0 %v1579
      %v2304 = vpop.f32.mrf.mxu0
      %v2305 = vadd.f32 %v2291, %v2304
      %v2306 = vpop.f32.mrf.mxu0
      %v2307 = vadd.f32 %v2293, %v2306
      %2308 = vdwg.mxu0
      %2309 = vmatpush.bf16.msra.mxu0 0
      %2310 = vmatpush.bf16.msra.mxu0 0
      %2311 = vmatpush.bf16.msra.mxu0 0
      %2312 = vmatpush.bf16.msra.mxu0 0
      %2313 = vmatpush.bf16.msra.mxu0 0
      %2314 = vmatpush.bf16.msra.mxu0 0
      %2315 = vmatpush.bf16.msra.mxu0 %v2222
      %2316 = vmatpush.bf16.msra.mxu0 %v2081
      %2317 = vmatmul.bf16.gmra.mxu0 %v2215
      %v2318 = vpop.f32.mrf.mxu0
      %v2319 = vadd.f32 %v2305, %v2318
      %v2320 = vpop.f32.mrf.mxu0
      %v2321 = vadd.f32 %v2307, %v2320
      %2322 = vdwg.mxu0
      %2323 = vmatpush.bf16.msra.mxu0 %v2019
      %2324 = vmatpush.bf16.msra.mxu0 %v2012
      %2325 = vmatpush.bf16.msra.mxu0 %v2005
      %2326 = vmatpush.bf16.msra.mxu0 %v1998
      %2327 = vmatpush.bf16.msra.mxu0 %v1991
      %2328 = vmatpush.bf16.msra.mxu0 %v1984
      %2329 = vmatpush.bf16.msra.mxu0 %v1977
      %2330 = vmatpush.bf16.msra.mxu0 %v1970
      %2331 = vmatmul.bf16.gmra.mxu0 %v1578
      %v2332 = vpop.f32.mrf.mxu0
      %v2333 = vadd.f32 %v1556, %v2332
      %v2334 = vpop.f32.mrf.mxu0
      %v2335 = vadd.f32 %v1556, %v2334
      %2336 = vdwg.mxu0
      %2337 = vmatpush.bf16.msra.mxu0 %v2075
      %2338 = vmatpush.bf16.msra.mxu0 %v2068
      %2339 = vmatpush.bf16.msra.mxu0 %v2061
      %2340 = vmatpush.bf16.msra.mxu0 %v2054
      %2341 = vmatpush.bf16.msra.mxu0 %v2047
      %2342 = vmatpush.bf16.msra.mxu0 %v2040
      %2343 = vmatpush.bf16.msra.mxu0 %v2033
      %2344 = vmatpush.bf16.msra.mxu0 %v2026
      %2345 = vmatmul.bf16.gmra.mxu0 %v1579
      %v2346 = vpop.f32.mrf.mxu0
      %v2347 = vadd.f32 %v2333, %v2346
      %v2348 = vpop.f32.mrf.mxu0
      %v2349 = vadd.f32 %v2335, %v2348
      %2350 = vdwg.mxu0
      %2351 = vmatpush.bf16.msra.mxu0 0
      %2352 = vmatpush.bf16.msra.mxu0 0
      %2353 = vmatpush.bf16.msra.mxu0 0
      %2354 = vmatpush.bf16.msra.mxu0 0
      %2355 = vmatpush.bf16.msra.mxu0 0
      %2356 = vmatpush.bf16.msra.mxu0 0
      %2357 = vmatpush.bf16.msra.mxu0 %v2225
      %2358 = vmatpush.bf16.msra.mxu0 %v2082
      %2359 = vmatmul.bf16.gmra.mxu0 %v2215
      %v2360 = vpop.f32.mrf.mxu0
      %v2361 = vadd.f32 %v2347, %v2360
      %v2362 = vpop.f32.mrf.mxu0
      %v2363 = vadd.f32 %v2349, %v2362
      %2364 = vdwg.mxu0
      %2365 = vmatpush.bf16.msra.mxu0 %v2020
      %2366 = vmatpush.bf16.msra.mxu0 %v2013
      %2367 = vmatpush.bf16.msra.mxu0 %v2006
      %2368 = vmatpush.bf16.msra.mxu0 %v1999
      %2369 = vmatpush.bf16.msra.mxu0 %v1992
      %2370 = vmatpush.bf16.msra.mxu0 %v1985
      %2371 = vmatpush.bf16.msra.mxu0 %v1978
      %2372 = vmatpush.bf16.msra.mxu0 %v1971
      %2373 = vmatmul.bf16.gmra.mxu0 %v1578
      %v2374 = vpop.f32.mrf.mxu0
      %v2375 = vadd.f32 %v1557, %v2374
      %v2376 = vpop.f32.mrf.mxu0
      %v2377 = vadd.f32 %v1557, %v2376
      %2378 = vdwg.mxu0
      %2379 = vmatpush.bf16.msra.mxu0 %v2076
      %2380 = vmatpush.bf16.msra.mxu0 %v2069
      %2381 = vmatpush.bf16.msra.mxu0 %v2062
      %2382 = vmatpush.bf16.msra.mxu0 %v2055
      %2383 = vmatpush.bf16.msra.mxu0 %v2048
      %2384 = vmatpush.bf16.msra.mxu0 %v2041
      %2385 = vmatpush.bf16.msra.mxu0 %v2034
      %2386 = vmatpush.bf16.msra.mxu0 %v2027
      %2387 = vmatmul.bf16.gmra.mxu0 %v1579
      %v2388 = vpop.f32.mrf.mxu0
      %v2389 = vadd.f32 %v2375, %v2388
      %v2390 = vpop.f32.mrf.mxu0
      %v2391 = vadd.f32 %v2377, %v2390
      %2392 = vdwg.mxu0
      %2393 = vmatpush.bf16.msra.mxu0 0
      %2394 = vmatpush.bf16.msra.mxu0 0
      %2395 = vmatpush.bf16.msra.mxu0 0
      %2396 = vmatpush.bf16.msra.mxu0 0
      %2397 = vmatpush.bf16.msra.mxu0 0
      %2398 = vmatpush.bf16.msra.mxu0 0
      %2399 = vmatpush.bf16.msra.mxu0 %v2228
      %2400 = vmatpush.bf16.msra.mxu0 %v2083
      %2401 = vmatmul.bf16.gmra.mxu0 %v2215
      %v2402 = vpop.f32.mrf.mxu0
      %v2403 = vadd.f32 %v2389, %v2402
      %v2404 = vpop.f32.mrf.mxu0
      %v2405 = vadd.f32 %v2391, %v2404
      %2406 = vdwg.mxu0
      %2407 = vmatpush.bf16.msra.mxu0 %v2021
      %2408 = vmatpush.bf16.msra.mxu0 %v2014
      %2409 = vmatpush.bf16.msra.mxu0 %v2007
      %2410 = vmatpush.bf16.msra.mxu0 %v2000
      %2411 = vmatpush.bf16.msra.mxu0 %v1993
      %2412 = vmatpush.bf16.msra.mxu0 %v1986
      %2413 = vmatpush.bf16.msra.mxu0 %v1979
      %2414 = vmatpush.bf16.msra.mxu0 %v1972
      %2415 = vmatmul.bf16.gmra.mxu0 %v1578
      %v2416 = vpop.f32.mrf.mxu0
      %v2417 = vadd.f32 %v1558, %v2416
      %v2418 = vpop.f32.mrf.mxu0
      %v2419 = vadd.f32 %v1558, %v2418
      %2420 = vdwg.mxu0
      %2421 = vmatpush.bf16.msra.mxu0 %v2077
      %2422 = vmatpush.bf16.msra.mxu0 %v2070
      %2423 = vmatpush.bf16.msra.mxu0 %v2063
      %2424 = vmatpush.bf16.msra.mxu0 %v2056
      %2425 = vmatpush.bf16.msra.mxu0 %v2049
      %2426 = vmatpush.bf16.msra.mxu0 %v2042
      %2427 = vmatpush.bf16.msra.mxu0 %v2035
      %2428 = vmatpush.bf16.msra.mxu0 %v2028
      %2429 = vmatmul.bf16.gmra.mxu0 %v1579
      %v2430 = vpop.f32.mrf.mxu0
      %v2431 = vadd.f32 %v2417, %v2430
      %v2432 = vpop.f32.mrf.mxu0
      %v2433 = vadd.f32 %v2419, %v2432
      %2434 = vdwg.mxu0
      %2435 = vmatpush.bf16.msra.mxu0 0
      %2436 = vmatpush.bf16.msra.mxu0 0
      %2437 = vmatpush.bf16.msra.mxu0 0
      %2438 = vmatpush.bf16.msra.mxu0 0
      %2439 = vmatpush.bf16.msra.mxu0 0
      %2440 = vmatpush.bf16.msra.mxu0 0
      %2441 = vmatpush.bf16.msra.mxu0 %v2231
      %2442 = vmatpush.bf16.msra.mxu0 %v2084
      %2443 = vmatmul.bf16.gmra.mxu0 %v2215
      %v2444 = vpop.f32.mrf.mxu0
      %v2445 = vadd.f32 %v2431, %v2444
      %v2446 = vpop.f32.mrf.mxu0
      %v2447 = vadd.f32 %v2433, %v2446
      %2448 = vdwg.mxu0
      %2449 = vmatpush.bf16.msra.mxu0 %v2022
      %2450 = vmatpush.bf16.msra.mxu0 %v2015
      %2451 = vmatpush.bf16.msra.mxu0 %v2008
      %2452 = vmatpush.bf16.msra.mxu0 %v2001
      %2453 = vmatpush.bf16.msra.mxu0 %v1994
      %2454 = vmatpush.bf16.msra.mxu0 %v1987
      %2455 = vmatpush.bf16.msra.mxu0 %v1980
      %2456 = vmatpush.bf16.msra.mxu0 %v1973
      %2457 = vmatmul.bf16.gmra.mxu0 %v1578
      %v2458 = vpop.f32.mrf.mxu0
      %v2459 = vadd.f32 %v1559, %v2458
      %v2460 = vpop.f32.mrf.mxu0
      %v2461 = vadd.f32 %v1559, %v2460
      %2462 = vdwg.mxu0
      %2463 = vmatpush.bf16.msra.mxu0 %v2078
      %2464 = vmatpush.bf16.msra.mxu0 %v2071
      %2465 = vmatpush.bf16.msra.mxu0 %v2064
      %2466 = vmatpush.bf16.msra.mxu0 %v2057
      %2467 = vmatpush.bf16.msra.mxu0 %v2050
      %2468 = vmatpush.bf16.msra.mxu0 %v2043
      %2469 = vmatpush.bf16.msra.mxu0 %v2036
      %2470 = vmatpush.bf16.msra.mxu0 %v2029
      %2471 = vmatmul.bf16.gmra.mxu0 %v1579
      %v2472 = vpop.f32.mrf.mxu0
      %v2473 = vadd.f32 %v2459, %v2472
      %v2474 = vpop.f32.mrf.mxu0
      %v2475 = vadd.f32 %v2461, %v2474
      %2476 = vdwg.mxu0
      %2477 = vmatpush.bf16.msra.mxu0 0
      %2478 = vmatpush.bf16.msra.mxu0 0
      %2479 = vmatpush.bf16.msra.mxu0 0
      %2480 = vmatpush.bf16.msra.mxu0 0
      %2481 = vmatpush.bf16.msra.mxu0 0
      %2482 = vmatpush.bf16.msra.mxu0 0
      %2483 = vmatpush.bf16.msra.mxu0 %v2234
      %2484 = vmatpush.bf16.msra.mxu0 %v2085
      %2485 = vmatmul.bf16.gmra.mxu0 %v2215
      %v2486 = vpop.f32.mrf.mxu0
      %v2487 = vadd.f32 %v2473, %v2486
      %v2488 = vpop.f32.mrf.mxu0
      %v2489 = vadd.f32 %v2475, %v2488
      %2490 = vdwg.mxu0
      %2491 = vmatpush.bf16.msra.mxu0 %v2023
      %2492 = vmatpush.bf16.msra.mxu0 %v2016
      %2493 = vmatpush.bf16.msra.mxu0 %v2009
      %2494 = vmatpush.bf16.msra.mxu0 %v2002
      %2495 = vmatpush.bf16.msra.mxu0 %v1995
      %2496 = vmatpush.bf16.msra.mxu0 %v1988
      %2497 = vmatpush.bf16.msra.mxu0 %v1981
      %2498 = vmatpush.bf16.msra.mxu0 %v1974
      %2499 = vmatmul.bf16.gmra.mxu0 %v1578
      %v2500 = vpop.f32.mrf.mxu0
      %v2501 = vadd.f32 %v1560, %v2500
      %v2502 = vpop.f32.mrf.mxu0
      %v2503 = vadd.f32 %v1560, %v2502
      %2504 = vdwg.mxu0
      %2505 = vmatpush.bf16.msra.mxu0 %v2079
      %2506 = vmatpush.bf16.msra.mxu0 %v2072
      %2507 = vmatpush.bf16.msra.mxu0 %v2065
      %2508 = vmatpush.bf16.msra.mxu0 %v2058
      %2509 = vmatpush.bf16.msra.mxu0 %v2051
      %2510 = vmatpush.bf16.msra.mxu0 %v2044
      %2511 = vmatpush.bf16.msra.mxu0 %v2037
      %2512 = vmatpush.bf16.msra.mxu0 %v2030
      %2513 = vmatmul.bf16.gmra.mxu0 %v1579
      %v2514 = vpop.f32.mrf.mxu0
      %v2515 = vadd.f32 %v2501, %v2514
      %v2516 = vpop.f32.mrf.mxu0
      %v2517 = vadd.f32 %v2503, %v2516
      %2518 = vdwg.mxu0
      %2519 = vmatpush.bf16.msra.mxu0 0
      %2520 = vmatpush.bf16.msra.mxu0 0
      %2521 = vmatpush.bf16.msra.mxu0 0
      %2522 = vmatpush.bf16.msra.mxu0 0
      %2523 = vmatpush.bf16.msra.mxu0 0
      %2524 = vmatpush.bf16.msra.mxu0 0
      %2525 = vmatpush.bf16.msra.mxu0 %v2237
      %2526 = vmatpush.bf16.msra.mxu0 %v2086
      %2527 = vmatmul.bf16.gmra.mxu0 %v2215
      %v2528 = vpop.f32.mrf.mxu0
      %v2529 = vadd.f32 %v2515, %v2528
      %v2530 = vpop.f32.mrf.mxu0
      %v2531 = vadd.f32 %v2517, %v2530
      %2532 = vdwg.mxu0
      %vm2533 = vcmp.gt.f32.partialorder %v2277, 0.0
      %vm2534 = vcmp.gt.f32.partialorder %v2319, 0.0
      %vm2535 = vcmp.gt.f32.partialorder %v2361, 0.0
      %vm2536 = vcmp.gt.f32.partialorder %v2403, 0.0
      %vm2537 = vcmp.gt.f32.partialorder %v2445, 0.0
      %vm2538 = vcmp.gt.f32.partialorder %v2487, 0.0
      %vm2539 = vcmp.gt.f32.partialorder %v2529, 0.0
      %vm2540 = vcmp.gt.f32.partialorder %v2279, 0.0
      %vm2541 = vcmp.gt.f32.partialorder %v2321, 0.0
      %vm2542 = vcmp.gt.f32.partialorder %v2363, 0.0
      %vm2543 = vcmp.gt.f32.partialorder %v2405, 0.0
      %vm2544 = vcmp.gt.f32.partialorder %v2447, 0.0
      %vm2545 = vcmp.gt.f32.partialorder %v2489, 0.0
      %vm2546 = vcmp.gt.f32.partialorder %v2531, 0.0
      %v2547 = vmul.f32 %v2277, 0.01
      %v2548 = vmul.f32 %v2319, 0.01
      %v2549 = vmul.f32 %v2361, 0.01
      %v2550 = vmul.f32 %v2403, 0.01
      %v2551 = vmul.f32 %v2445, 0.01
      %v2552 = vmul.f32 %v2487, 0.01
      %v2553 = vmul.f32 %v2529, 0.01
      %v2554 = vmul.f32 %v2279, 0.01
      %v2555 = vmul.f32 %v2321, 0.01
      %v2556 = vmul.f32 %v2363, 0.01
      %v2557 = vmul.f32 %v2405, 0.01
      %v2558 = vmul.f32 %v2447, 0.01
      %v2559 = vmul.f32 %v2489, 0.01
      %v2560 = vmul.f32 %v2531, 0.01
      %v2561 = vsel %vm2533, %v2277, %v2547
      %v2562 = vsel %vm2534, %v2319, %v2548
      %v2563 = vsel %vm2535, %v2361, %v2549
      %v2564 = vsel %vm2536, %v2403, %v2550
      %v2565 = vsel %vm2537, %v2445, %v2551
      %v2566 = vsel %vm2538, %v2487, %v2552
      %v2567 = vsel %vm2539, %v2529, %v2553
      %v2568 = vsel %vm2540, %v2279, %v2554
      %v2569 = vsel %vm2541, %v2321, %v2555
      %v2570 = vsel %vm2542, %v2363, %v2556
      %v2571 = vsel %vm2543, %v2405, %v2557
      %v2572 = vsel %vm2544, %v2447, %v2558
      %v2573 = vsel %vm2545, %v2489, %v2559
      %v2574 = vsel %vm2546, %v2531, %v2560
      %v2575 = vpack.c.bf16 %v1395, %v1394
      %v2576 = vpack.c.bf16 %v1397, %v1396
      %v2577 = vpack.c.bf16 %v1399, %v1398
      %v2578 = vpack.c.bf16 %v1400, %v1400
      %v2579 = vpack.c.bf16 %v1402, %v1401
      %v2580 = vpack.c.bf16 %v1404, %v1403
      %v2581 = vpack.c.bf16 %v1406, %v1405
      %v2582 = vpack.c.bf16 %v1407, %v1407
      %v2583 = vpack.c.bf16 %v2562, %v2561
      %v2584 = vpack.c.bf16 %v2564, %v2563
      %v2585 = vpack.c.bf16 %v2566, %v2565
      %v2586 = vpack.c.bf16 %v2567, %v2567
      %v2587 = vpack.c.bf16 %v2569, %v2568
      %v2588 = vpack.c.bf16 %v2571, %v2570
      %v2589 = vpack.c.bf16 %v2573, %v2572
      %v2590 = vpack.c.bf16 %v2574, %v2574
      %v2591 = vld [vmem:[%s10] sm:$0x1]
      %v2592 = vld [vmem:[%s8] sm:$0xf]
      %v2593 = vld [vmem:[%s8 + $0x4] sm:$0xf]
      %v2594 = vld [vmem:[%s8 + $0x8] sm:$0xf]
      %v2595 = vld [vmem:[%s8 + $0xc] sm:$0xf]
      %v2596 = vld [vmem:[%s8 + $0x10] sm:$0xf]
      %v2597 = vld [vmem:[%s8 + $0x14] sm:$0xf]
      %v2598 = vld [vmem:[%s8 + $0x18] sm:$0xf]
      %v2599 = vld [vmem:[%s8 + $0x1c] sm:$0xf]
      %v2600 = vld [vmem:[%s8 + $0x20] sm:$0xf]
      %v2601 = vld [vmem:[%s8 + $0x24] sm:$0xf]
      %v2602 = vld [vmem:[%s8 + $0x28] sm:$0xf]
      %v2603 = vld [vmem:[%s8 + $0x2c] sm:$0xf]
      %v2604 = vld [vmem:[%s8 + $0x30] sm:$0xf]
      %v2605 = vld [vmem:[%s8 + $0x34] sm:$0xf]
      %v2606 = vld [vmem:[%s8 + $0x38] sm:$0xf]
      %v2607 = vld [vmem:[%s8 + $0x3c] sm:$0xf]
      %v2608 = vld [vmem:[%s9] sm:$0xf]
      %v2609 = vld [vmem:[%s9 + $0x4] sm:$0xf]
      %v2610 = vld [vmem:[%s9 + $0x8] sm:$0xf]
      %v2611 = vld [vmem:[%s9 + $0xc] sm:$0xf]
      %v2612 = vld [vmem:[%s9 + $0x10] sm:$0xf]
      %v2613 = vld [vmem:[%s9 + $0x14] sm:$0xf]
      %v2614 = vld [vmem:[%s9 + $0x18] sm:$0xf]
      %v2615 = vld [vmem:[%s9 + $0x1c] sm:$0xf]
      %v2616 = vld [vmem:[%s9 + $0x20] sm:$0xf]
      %v2617 = vld [vmem:[%s9 + $0x24] sm:$0xf]
      %v2618 = vld [vmem:[%s9 + $0x28] sm:$0xf]
      %v2619 = vld [vmem:[%s9 + $0x2c] sm:$0xf]
      %v2620 = vld [vmem:[%s9 + $0x30] sm:$0xf]
      %v2621 = vld [vmem:[%s9 + $0x34] sm:$0xf]
      %v2622 = vld [vmem:[%s9 + $0x38] sm:$0xf]
      %v2623 = vld [vmem:[%s9 + $0x3c] sm:$0xf]
      %v2626 = vunpack.c.l.b16 %v2583
      %v2627 = vunpack.c.l.b16 %v2587
      %v2628 = vpack.c.b16 %v2627, %v2626
      %v2646 = vunpack.c.l.b16 %v2608
      %v2647 = vunpack.c.l.b16 %v2609
      %v2648 = vunpack.c.l.b16 %v2610
      %v2649 = vunpack.c.l.b16 %v2611
      %v2650 = vunpack.c.l.b16 %v2612
      %v2651 = vunpack.c.l.b16 %v2613
      %v2652 = vunpack.c.l.b16 %v2614
      %v2653 = vunpack.c.l.b16 %v2615
      %v2654 = vunpack.c.l.b16 %v2616
      %v2655 = vunpack.c.l.b16 %v2617
      %v2656 = vunpack.c.l.b16 %v2618
      %v2657 = vunpack.c.l.b16 %v2619
      %v2658 = vunpack.c.l.b16 %v2620
      %v2659 = vunpack.c.l.b16 %v2621
      %v2660 = vunpack.c.l.b16 %v2622
      %v2661 = vunpack.c.l.b16 %v2623
      %v2662 = vpack.c.b16 %v2647, %v2646
      %v2663 = vpack.c.b16 %v2649, %v2648
      %v2664 = vpack.c.b16 %v2651, %v2650
      %v2665 = vpack.c.b16 %v2653, %v2652
      %v2666 = vpack.c.b16 %v2655, %v2654
      %v2667 = vpack.c.b16 %v2657, %v2656
      %v2668 = vpack.c.b16 %v2659, %v2658
      %v2669 = vpack.c.b16 %v2661, %v2660
      %2678 = vmatpush.bf16.msra.mxu0 %v2669
      %2679 = vmatpush.bf16.msra.mxu0 %v2668
      %2680 = vmatpush.bf16.msra.mxu0 %v2667
      %2681 = vmatpush.bf16.msra.mxu0 %v2666
      %2682 = vmatpush.bf16.msra.mxu0 %v2665
      %2683 = vmatpush.bf16.msra.mxu0 %v2664
      %2684 = vmatpush.bf16.msra.mxu0 %v2663
      %2685 = vmatpush.bf16.msra.mxu0 %v2662
      %2686 = vmatmul.bf16.gmra.mxu0 %v2628
      %v2687 = vpop.f32.mrf.mxu0
      %v2688 = vadd.f32 0.0, %v2687
      %v2689 = vpop.f32.mrf.mxu0
      %v2690 = vadd.f32 0.0, %v2689
      %2691 = vdwg.mxu0
      %v2694 = vunpack.c.l.b16 %v2575
      %v2695 = vunpack.c.l.b16 %v2579
      %v2696 = vpack.c.b16 %v2695, %v2694
      %v2714 = vunpack.c.l.b16 %v2592
      %v2715 = vunpack.c.l.b16 %v2593
      %v2716 = vunpack.c.l.b16 %v2594
      %v2717 = vunpack.c.l.b16 %v2595
      %v2718 = vunpack.c.l.b16 %v2596
      %v2719 = vunpack.c.l.b16 %v2597
      %v2720 = vunpack.c.l.b16 %v2598
      %v2721 = vunpack.c.l.b16 %v2599
      %v2722 = vunpack.c.l.b16 %v2600
      %v2723 = vunpack.c.l.b16 %v2601
      %v2724 = vunpack.c.l.b16 %v2602
      %v2725 = vunpack.c.l.b16 %v2603
      %v2726 = vunpack.c.l.b16 %v2604
      %v2727 = vunpack.c.l.b16 %v2605
      %v2728 = vunpack.c.l.b16 %v2606
      %v2729 = vunpack.c.l.b16 %v2607
      %v2730 = vpack.c.b16 %v2715, %v2714
      %v2731 = vpack.c.b16 %v2717, %v2716
      %v2732 = vpack.c.b16 %v2719, %v2718
      %v2733 = vpack.c.b16 %v2721, %v2720
      %v2734 = vpack.c.b16 %v2723, %v2722
      %v2735 = vpack.c.b16 %v2725, %v2724
      %v2736 = vpack.c.b16 %v2727, %v2726
      %v2737 = vpack.c.b16 %v2729, %v2728
      %2746 = vmatpush.bf16.msra.mxu0 %v2737
      %2747 = vmatpush.bf16.msra.mxu0 %v2736
      %2748 = vmatpush.bf16.msra.mxu0 %v2735
      %2749 = vmatpush.bf16.msra.mxu0 %v2734
      %2750 = vmatpush.bf16.msra.mxu0 %v2733
      %2751 = vmatpush.bf16.msra.mxu0 %v2732
      %2752 = vmatpush.bf16.msra.mxu0 %v2731
      %2753 = vmatpush.bf16.msra.mxu0 %v2730
      %2754 = vmatmul.bf16.gmra.mxu0 %v2696
      %v2755 = vpop.f32.mrf.mxu0
      %v2756 = vadd.f32 %v2688, %v2755
      %v2757 = vpop.f32.mrf.mxu0
      %v2758 = vadd.f32 %v2690, %v2757
      %2759 = vdwg.mxu0
      %v2761 = vperm.slane %v2591, 0
      %v2763 = vadd.f32 %v2756, %v2761
      %v2764 = vadd.f32 %v2758, %v2761
      %vm2765 = vcmp.gt.f32.partialorder %v2763, 0.0
      %vm2766 = vcmp.gt.f32.partialorder %v2764, 0.0
      %v2767 = vmul.f32 %v2763, 0.01
      %v2768 = vmul.f32 %v2764, 0.01
      %v2769 = vsel %vm2765, %v2763, %v2767
      %v2770 = vsel %vm2766, %v2764, %v2768
      %2771 = vst [vmem:[%s415] sm:$0xff] %v2769
      %2772 = vst [vmem:[%s415 + $0x38] sm:$0xff] %v2770
      %v2773 = vld [vmem:[%s8] sm:$0xf]
      %v2774 = vld [vmem:[%s8 + $0x4] sm:$0xf]
      %v2775 = vld [vmem:[%s8 + $0x8] sm:$0xf]
      %v2776 = vld [vmem:[%s8 + $0xc] sm:$0xf]
      %v2777 = vld [vmem:[%s8 + $0x10] sm:$0xf]
      %v2778 = vld [vmem:[%s8 + $0x14] sm:$0xf]
      %v2779 = vld [vmem:[%s8 + $0x18] sm:$0xf]
      %v2780 = vld [vmem:[%s8 + $0x1c] sm:$0xf]
      %v2781 = vld [vmem:[%s8 + $0x20] sm:$0xf]
      %v2782 = vld [vmem:[%s8 + $0x24] sm:$0xf]
      %v2783 = vld [vmem:[%s8 + $0x28] sm:$0xf]
      %v2784 = vld [vmem:[%s8 + $0x2c] sm:$0xf]
      %v2785 = vld [vmem:[%s8 + $0x30] sm:$0xf]
      %v2786 = vld [vmem:[%s8 + $0x34] sm:$0xf]
      %v2787 = vld [vmem:[%s8 + $0x38] sm:$0xf]
      %v2788 = vld [vmem:[%s8 + $0x3c] sm:$0xf]
      %v2789 = vld [vmem:[%s9] sm:$0xf]
      %v2790 = vld [vmem:[%s9 + $0x4] sm:$0xf]
      %v2791 = vld [vmem:[%s9 + $0x8] sm:$0xf]
      %v2792 = vld [vmem:[%s9 + $0xc] sm:$0xf]
      %v2793 = vld [vmem:[%s9 + $0x10] sm:$0xf]
      %v2794 = vld [vmem:[%s9 + $0x14] sm:$0xf]
      %v2795 = vld [vmem:[%s9 + $0x18] sm:$0xf]
      %v2796 = vld [vmem:[%s9 + $0x1c] sm:$0xf]
      %v2797 = vld [vmem:[%s9 + $0x20] sm:$0xf]
      %v2798 = vld [vmem:[%s9 + $0x24] sm:$0xf]
      %v2799 = vld [vmem:[%s9 + $0x28] sm:$0xf]
      %v2800 = vld [vmem:[%s9 + $0x2c] sm:$0xf]
      %v2801 = vld [vmem:[%s9 + $0x30] sm:$0xf]
      %v2802 = vld [vmem:[%s9 + $0x34] sm:$0xf]
      %v2803 = vld [vmem:[%s9 + $0x38] sm:$0xf]
      %v2804 = vld [vmem:[%s9 + $0x3c] sm:$0xf]
      %v2805 = vunpack.c.h.b16 %v2583
      %v2806 = vunpack.c.h.b16 %v2587
      %v2807 = vpack.c.b16 %v2806, %v2805
      %v2825 = vunpack.c.l.b16 %v2789
      %v2826 = vunpack.c.l.b16 %v2790
      %v2827 = vunpack.c.l.b16 %v2791
      %v2828 = vunpack.c.l.b16 %v2792
      %v2829 = vunpack.c.l.b16 %v2793
      %v2830 = vunpack.c.l.b16 %v2794
      %v2831 = vunpack.c.l.b16 %v2795
      %v2832 = vunpack.c.l.b16 %v2796
      %v2833 = vunpack.c.l.b16 %v2797
      %v2834 = vunpack.c.l.b16 %v2798
      %v2835 = vunpack.c.l.b16 %v2799
      %v2836 = vunpack.c.l.b16 %v2800
      %v2837 = vunpack.c.l.b16 %v2801
      %v2838 = vunpack.c.l.b16 %v2802
      %v2839 = vunpack.c.l.b16 %v2803
      %v2840 = vunpack.c.l.b16 %v2804
      %v2841 = vpack.c.b16 %v2826, %v2825
      %v2842 = vpack.c.b16 %v2828, %v2827
      %v2843 = vpack.c.b16 %v2830, %v2829
      %v2844 = vpack.c.b16 %v2832, %v2831
      %v2845 = vpack.c.b16 %v2834, %v2833
      %v2846 = vpack.c.b16 %v2836, %v2835
      %v2847 = vpack.c.b16 %v2838, %v2837
      %v2848 = vpack.c.b16 %v2840, %v2839
      %2857 = vmatpush.bf16.msra.mxu0 %v2848
      %2858 = vmatpush.bf16.msra.mxu0 %v2847
      %2859 = vmatpush.bf16.msra.mxu0 %v2846
      %2860 = vmatpush.bf16.msra.mxu0 %v2845
      %2861 = vmatpush.bf16.msra.mxu0 %v2844
      %2862 = vmatpush.bf16.msra.mxu0 %v2843
      %2863 = vmatpush.bf16.msra.mxu0 %v2842
      %2864 = vmatpush.bf16.msra.mxu0 %v2841
      %2865 = vmatmul.bf16.gmra.mxu0 %v2807
      %v2866 = vpop.f32.mrf.mxu0
      %v2867 = vadd.f32 0.0, %v2866
      %v2868 = vpop.f32.mrf.mxu0
      %v2869 = vadd.f32 0.0, %v2868
      %2870 = vdwg.mxu0
      %v2871 = vunpack.c.h.b16 %v2575
      %v2872 = vunpack.c.h.b16 %v2579
      %v2873 = vpack.c.b16 %v2872, %v2871
      %v2891 = vunpack.c.l.b16 %v2773
      %v2892 = vunpack.c.l.b16 %v2774
      %v2893 = vunpack.c.l.b16 %v2775
      %v2894 = vunpack.c.l.b16 %v2776
      %v2895 = vunpack.c.l.b16 %v2777
      %v2896 = vunpack.c.l.b16 %v2778
      %v2897 = vunpack.c.l.b16 %v2779
      %v2898 = vunpack.c.l.b16 %v2780
      %v2899 = vunpack.c.l.b16 %v2781
      %v2900 = vunpack.c.l.b16 %v2782
      %v2901 = vunpack.c.l.b16 %v2783
      %v2902 = vunpack.c.l.b16 %v2784
      %v2903 = vunpack.c.l.b16 %v2785
      %v2904 = vunpack.c.l.b16 %v2786
      %v2905 = vunpack.c.l.b16 %v2787
      %v2906 = vunpack.c.l.b16 %v2788
      %v2907 = vpack.c.b16 %v2892, %v2891
      %v2908 = vpack.c.b16 %v2894, %v2893
      %v2909 = vpack.c.b16 %v2896, %v2895
      %v2910 = vpack.c.b16 %v2898, %v2897
      %v2911 = vpack.c.b16 %v2900, %v2899
      %v2912 = vpack.c.b16 %v2902, %v2901
      %v2913 = vpack.c.b16 %v2904, %v2903
      %v2914 = vpack.c.b16 %v2906, %v2905
      %2923 = vmatpush.bf16.msra.mxu0 %v2914
      %2924 = vmatpush.bf16.msra.mxu0 %v2913
      %2925 = vmatpush.bf16.msra.mxu0 %v2912
      %2926 = vmatpush.bf16.msra.mxu0 %v2911
      %2927 = vmatpush.bf16.msra.mxu0 %v2910
      %2928 = vmatpush.bf16.msra.mxu0 %v2909
      %2929 = vmatpush.bf16.msra.mxu0 %v2908
      %2930 = vmatpush.bf16.msra.mxu0 %v2907
      %2931 = vmatmul.bf16.gmra.mxu0 %v2873
      %v2932 = vpop.f32.mrf.mxu0
      %v2933 = vadd.f32 %v2867, %v2932
      %v2934 = vpop.f32.mrf.mxu0
      %v2935 = vadd.f32 %v2869, %v2934
      %2936 = vdwg.mxu0
      %v2937 = vadd.f32 %v2933, %v2761
      %v2938 = vadd.f32 %v2935, %v2761
      %vm2939 = vcmp.gt.f32.partialorder %v2937, 0.0
      %vm2940 = vcmp.gt.f32.partialorder %v2938, 0.0
      %v2941 = vmul.f32 %v2937, 0.01
      %v2942 = vmul.f32 %v2938, 0.01
      %v2943 = vsel %vm2939, %v2937, %v2941
      %v2944 = vsel %vm2940, %v2938, %v2942
      %2945 = vst [vmem:[%s415 + $0x8] sm:$0xff] %v2943
      %2946 = vst [vmem:[%s415 + $0x40] sm:$0xff] %v2944
      %v2947 = vld [vmem:[%s8] sm:$0xf]
      %v2948 = vld [vmem:[%s8 + $0x4] sm:$0xf]
      %v2949 = vld [vmem:[%s8 + $0x8] sm:$0xf]
      %v2950 = vld [vmem:[%s8 + $0xc] sm:$0xf]
      %v2951 = vld [vmem:[%s8 + $0x10] sm:$0xf]
      %v2952 = vld [vmem:[%s8 + $0x14] sm:$0xf]
      %v2953 = vld [vmem:[%s8 + $0x18] sm:$0xf]
      %v2954 = vld [vmem:[%s8 + $0x1c] sm:$0xf]
      %v2955 = vld [vmem:[%s8 + $0x20] sm:$0xf]
      %v2956 = vld [vmem:[%s8 + $0x24] sm:$0xf]
      %v2957 = vld [vmem:[%s8 + $0x28] sm:$0xf]
      %v2958 = vld [vmem:[%s8 + $0x2c] sm:$0xf]
      %v2959 = vld [vmem:[%s8 + $0x30] sm:$0xf]
      %v2960 = vld [vmem:[%s8 + $0x34] sm:$0xf]
      %v2961 = vld [vmem:[%s8 + $0x38] sm:$0xf]
      %v2962 = vld [vmem:[%s8 + $0x3c] sm:$0xf]
      %v2963 = vld [vmem:[%s9] sm:$0xf]
      %v2964 = vld [vmem:[%s9 + $0x4] sm:$0xf]
      %v2965 = vld [vmem:[%s9 + $0x8] sm:$0xf]
      %v2966 = vld [vmem:[%s9 + $0xc] sm:$0xf]
      %v2967 = vld [vmem:[%s9 + $0x10] sm:$0xf]
      %v2968 = vld [vmem:[%s9 + $0x14] sm:$0xf]
      %v2969 = vld [vmem:[%s9 + $0x18] sm:$0xf]
      %v2970 = vld [vmem:[%s9 + $0x1c] sm:$0xf]
      %v2971 = vld [vmem:[%s9 + $0x20] sm:$0xf]
      %v2972 = vld [vmem:[%s9 + $0x24] sm:$0xf]
      %v2973 = vld [vmem:[%s9 + $0x28] sm:$0xf]
      %v2974 = vld [vmem:[%s9 + $0x2c] sm:$0xf]
      %v2975 = vld [vmem:[%s9 + $0x30] sm:$0xf]
      %v2976 = vld [vmem:[%s9 + $0x34] sm:$0xf]
      %v2977 = vld [vmem:[%s9 + $0x38] sm:$0xf]
      %v2978 = vld [vmem:[%s9 + $0x3c] sm:$0xf]
      %v2981 = vunpack.c.l.b16 %v2584
      %v2982 = vunpack.c.l.b16 %v2588
      %v2983 = vpack.c.b16 %v2982, %v2981
      %v3001 = vunpack.c.l.b16 %v2963
      %v3002 = vunpack.c.l.b16 %v2964
      %v3003 = vunpack.c.l.b16 %v2965
      %v3004 = vunpack.c.l.b16 %v2966
      %v3005 = vunpack.c.l.b16 %v2967
      %v3006 = vunpack.c.l.b16 %v2968
      %v3007 = vunpack.c.l.b16 %v2969
      %v3008 = vunpack.c.l.b16 %v2970
      %v3009 = vunpack.c.l.b16 %v2971
      %v3010 = vunpack.c.l.b16 %v2972
      %v3011 = vunpack.c.l.b16 %v2973
      %v3012 = vunpack.c.l.b16 %v2974
      %v3013 = vunpack.c.l.b16 %v2975
      %v3014 = vunpack.c.l.b16 %v2976
      %v3015 = vunpack.c.l.b16 %v2977
      %v3016 = vunpack.c.l.b16 %v2978
      %v3017 = vpack.c.b16 %v3002, %v3001
      %v3018 = vpack.c.b16 %v3004, %v3003
      %v3019 = vpack.c.b16 %v3006, %v3005
      %v3020 = vpack.c.b16 %v3008, %v3007
      %v3021 = vpack.c.b16 %v3010, %v3009
      %v3022 = vpack.c.b16 %v3012, %v3011
      %v3023 = vpack.c.b16 %v3014, %v3013
      %v3024 = vpack.c.b16 %v3016, %v3015
      %3033 = vmatpush.bf16.msra.mxu0 %v3024
      %3034 = vmatpush.bf16.msra.mxu0 %v3023
      %3035 = vmatpush.bf16.msra.mxu0 %v3022
      %3036 = vmatpush.bf16.msra.mxu0 %v3021
      %3037 = vmatpush.bf16.msra.mxu0 %v3020
      %3038 = vmatpush.bf16.msra.mxu0 %v3019
      %3039 = vmatpush.bf16.msra.mxu0 %v3018
      %3040 = vmatpush.bf16.msra.mxu0 %v3017
      %3041 = vmatmul.bf16.gmra.mxu0 %v2983
      %v3042 = vpop.f32.mrf.mxu0
      %v3043 = vadd.f32 0.0, %v3042
      %v3044 = vpop.f32.mrf.mxu0
      %v3045 = vadd.f32 0.0, %v3044
      %3046 = vdwg.mxu0
      %v3049 = vunpack.c.l.b16 %v2576
      %v3050 = vunpack.c.l.b16 %v2580
      %v3051 = vpack.c.b16 %v3050, %v3049
      %v3069 = vunpack.c.l.b16 %v2947
      %v3070 = vunpack.c.l.b16 %v2948
      %v3071 = vunpack.c.l.b16 %v2949
      %v3072 = vunpack.c.l.b16 %v2950
      %v3073 = vunpack.c.l.b16 %v2951
      %v3074 = vunpack.c.l.b16 %v2952
      %v3075 = vunpack.c.l.b16 %v2953
      %v3076 = vunpack.c.l.b16 %v2954
      %v3077 = vunpack.c.l.b16 %v2955
      %v3078 = vunpack.c.l.b16 %v2956
      %v3079 = vunpack.c.l.b16 %v2957
      %v3080 = vunpack.c.l.b16 %v2958
      %v3081 = vunpack.c.l.b16 %v2959
      %v3082 = vunpack.c.l.b16 %v2960
      %v3083 = vunpack.c.l.b16 %v2961
      %v3084 = vunpack.c.l.b16 %v2962
      %v3085 = vpack.c.b16 %v3070, %v3069
      %v3086 = vpack.c.b16 %v3072, %v3071
      %v3087 = vpack.c.b16 %v3074, %v3073
      %v3088 = vpack.c.b16 %v3076, %v3075
      %v3089 = vpack.c.b16 %v3078, %v3077
      %v3090 = vpack.c.b16 %v3080, %v3079
      %v3091 = vpack.c.b16 %v3082, %v3081
      %v3092 = vpack.c.b16 %v3084, %v3083
      %3101 = vmatpush.bf16.msra.mxu0 %v3092
      %3102 = vmatpush.bf16.msra.mxu0 %v3091
      %3103 = vmatpush.bf16.msra.mxu0 %v3090
      %3104 = vmatpush.bf16.msra.mxu0 %v3089
      %3105 = vmatpush.bf16.msra.mxu0 %v3088
      %3106 = vmatpush.bf16.msra.mxu0 %v3087
      %3107 = vmatpush.bf16.msra.mxu0 %v3086
      %3108 = vmatpush.bf16.msra.mxu0 %v3085
      %3109 = vmatmul.bf16.gmra.mxu0 %v3051
      %v3110 = vpop.f32.mrf.mxu0
      %v3111 = vadd.f32 %v3043, %v3110
      %v3112 = vpop.f32.mrf.mxu0
      %v3113 = vadd.f32 %v3045, %v3112
      %3114 = vdwg.mxu0
      %v3115 = vadd.f32 %v3111, %v2761
      %v3116 = vadd.f32 %v3113, %v2761
      %vm3117 = vcmp.gt.f32.partialorder %v3115, 0.0
      %vm3118 = vcmp.gt.f32.partialorder %v3116, 0.0
      %v3119 = vmul.f32 %v3115, 0.01
      %v3120 = vmul.f32 %v3116, 0.01
      %v3121 = vsel %vm3117, %v3115, %v3119
      %v3122 = vsel %vm3118, %v3116, %v3120
      %3123 = vst [vmem:[%s415 + $0x10] sm:$0xff] %v3121
      %3124 = vst [vmem:[%s415 + $0x48] sm:$0xff] %v3122
      %v3125 = vld [vmem:[%s8] sm:$0xf]
      %v3126 = vld [vmem:[%s8 + $0x4] sm:$0xf]
      %v3127 = vld [vmem:[%s8 + $0x8] sm:$0xf]
      %v3128 = vld [vmem:[%s8 + $0xc] sm:$0xf]
      %v3129 = vld [vmem:[%s8 + $0x10] sm:$0xf]
      %v3130 = vld [vmem:[%s8 + $0x14] sm:$0xf]
      %v3131 = vld [vmem:[%s8 + $0x18] sm:$0xf]
      %v3132 = vld [vmem:[%s8 + $0x1c] sm:$0xf]
      %v3133 = vld [vmem:[%s8 + $0x20] sm:$0xf]
      %v3134 = vld [vmem:[%s8 + $0x24] sm:$0xf]
      %v3135 = vld [vmem:[%s8 + $0x28] sm:$0xf]
      %v3136 = vld [vmem:[%s8 + $0x2c] sm:$0xf]
      %v3137 = vld [vmem:[%s8 + $0x30] sm:$0xf]
      %v3138 = vld [vmem:[%s8 + $0x34] sm:$0xf]
      %v3139 = vld [vmem:[%s8 + $0x38] sm:$0xf]
      %v3140 = vld [vmem:[%s8 + $0x3c] sm:$0xf]
      %v3141 = vld [vmem:[%s9] sm:$0xf]
      %v3142 = vld [vmem:[%s9 + $0x4] sm:$0xf]
      %v3143 = vld [vmem:[%s9 + $0x8] sm:$0xf]
      %v3144 = vld [vmem:[%s9 + $0xc] sm:$0xf]
      %v3145 = vld [vmem:[%s9 + $0x10] sm:$0xf]
      %v3146 = vld [vmem:[%s9 + $0x14] sm:$0xf]
      %v3147 = vld [vmem:[%s9 + $0x18] sm:$0xf]
      %v3148 = vld [vmem:[%s9 + $0x1c] sm:$0xf]
      %v3149 = vld [vmem:[%s9 + $0x20] sm:$0xf]
      %v3150 = vld [vmem:[%s9 + $0x24] sm:$0xf]
      %v3151 = vld [vmem:[%s9 + $0x28] sm:$0xf]
      %v3152 = vld [vmem:[%s9 + $0x2c] sm:$0xf]
      %v3153 = vld [vmem:[%s9 + $0x30] sm:$0xf]
      %v3154 = vld [vmem:[%s9 + $0x34] sm:$0xf]
      %v3155 = vld [vmem:[%s9 + $0x38] sm:$0xf]
      %v3156 = vld [vmem:[%s9 + $0x3c] sm:$0xf]
      %v3157 = vunpack.c.h.b16 %v2584
      %v3158 = vunpack.c.h.b16 %v2588
      %v3159 = vpack.c.b16 %v3158, %v3157
      %v3177 = vunpack.c.l.b16 %v3141
      %v3178 = vunpack.c.l.b16 %v3142
      %v3179 = vunpack.c.l.b16 %v3143
      %v3180 = vunpack.c.l.b16 %v3144
      %v3181 = vunpack.c.l.b16 %v3145
      %v3182 = vunpack.c.l.b16 %v3146
      %v3183 = vunpack.c.l.b16 %v3147
      %v3184 = vunpack.c.l.b16 %v3148
      %v3185 = vunpack.c.l.b16 %v3149
      %v3186 = vunpack.c.l.b16 %v3150
      %v3187 = vunpack.c.l.b16 %v3151
      %v3188 = vunpack.c.l.b16 %v3152
      %v3189 = vunpack.c.l.b16 %v3153
      %v3190 = vunpack.c.l.b16 %v3154
      %v3191 = vunpack.c.l.b16 %v3155
      %v3192 = vunpack.c.l.b16 %v3156
      %v3193 = vpack.c.b16 %v3178, %v3177
      %v3194 = vpack.c.b16 %v3180, %v3179
      %v3195 = vpack.c.b16 %v3182, %v3181
      %v3196 = vpack.c.b16 %v3184, %v3183
      %v3197 = vpack.c.b16 %v3186, %v3185
      %v3198 = vpack.c.b16 %v3188, %v3187
      %v3199 = vpack.c.b16 %v3190, %v3189
      %v3200 = vpack.c.b16 %v3192, %v3191
      %3209 = vmatpush.bf16.msra.mxu0 %v3200
      %3210 = vmatpush.bf16.msra.mxu0 %v3199
      %3211 = vmatpush.bf16.msra.mxu0 %v3198
      %3212 = vmatpush.bf16.msra.mxu0 %v3197
      %3213 = vmatpush.bf16.msra.mxu0 %v3196
      %3214 = vmatpush.bf16.msra.mxu0 %v3195
      %3215 = vmatpush.bf16.msra.mxu0 %v3194
      %3216 = vmatpush.bf16.msra.mxu0 %v3193
      %3217 = vmatmul.bf16.gmra.mxu0 %v3159
      %v3218 = vpop.f32.mrf.mxu0
      %v3219 = vadd.f32 0.0, %v3218
      %v3220 = vpop.f32.mrf.mxu0
      %v3221 = vadd.f32 0.0, %v3220
      %3222 = vdwg.mxu0
      %v3223 = vunpack.c.h.b16 %v2576
      %v3224 = vunpack.c.h.b16 %v2580
      %v3225 = vpack.c.b16 %v3224, %v3223
      %v3243 = vunpack.c.l.b16 %v3125
      %v3244 = vunpack.c.l.b16 %v3126
      %v3245 = vunpack.c.l.b16 %v3127
      %v3246 = vunpack.c.l.b16 %v3128
      %v3247 = vunpack.c.l.b16 %v3129
      %v3248 = vunpack.c.l.b16 %v3130
      %v3249 = vunpack.c.l.b16 %v3131
      %v3250 = vunpack.c.l.b16 %v3132
      %v3251 = vunpack.c.l.b16 %v3133
      %v3252 = vunpack.c.l.b16 %v3134
      %v3253 = vunpack.c.l.b16 %v3135
      %v3254 = vunpack.c.l.b16 %v3136
      %v3255 = vunpack.c.l.b16 %v3137
      %v3256 = vunpack.c.l.b16 %v3138
      %v3257 = vunpack.c.l.b16 %v3139
      %v3258 = vunpack.c.l.b16 %v3140
      %v3259 = vpack.c.b16 %v3244, %v3243
      %v3260 = vpack.c.b16 %v3246, %v3245
      %v3261 = vpack.c.b16 %v3248, %v3247
      %v3262 = vpack.c.b16 %v3250, %v3249
      %v3263 = vpack.c.b16 %v3252, %v3251
      %v3264 = vpack.c.b16 %v3254, %v3253
      %v3265 = vpack.c.b16 %v3256, %v3255
      %v3266 = vpack.c.b16 %v3258, %v3257
      %3275 = vmatpush.bf16.msra.mxu0 %v3266
      %3276 = vmatpush.bf16.msra.mxu0 %v3265
      %3277 = vmatpush.bf16.msra.mxu0 %v3264
      %3278 = vmatpush.bf16.msra.mxu0 %v3263
      %3279 = vmatpush.bf16.msra.mxu0 %v3262
      %3280 = vmatpush.bf16.msra.mxu0 %v3261
      %3281 = vmatpush.bf16.msra.mxu0 %v3260
      %3282 = vmatpush.bf16.msra.mxu0 %v3259
      %3283 = vmatmul.bf16.gmra.mxu0 %v3225
      %v3284 = vpop.f32.mrf.mxu0
      %v3285 = vadd.f32 %v3219, %v3284
      %v3286 = vpop.f32.mrf.mxu0
      %v3287 = vadd.f32 %v3221, %v3286
      %3288 = vdwg.mxu0
      %v3289 = vadd.f32 %v3285, %v2761
      %v3290 = vadd.f32 %v3287, %v2761
      %vm3291 = vcmp.gt.f32.partialorder %v3289, 0.0
      %vm3292 = vcmp.gt.f32.partialorder %v3290, 0.0
      %v3293 = vmul.f32 %v3289, 0.01
      %v3294 = vmul.f32 %v3290, 0.01
      %v3295 = vsel %vm3291, %v3289, %v3293
      %v3296 = vsel %vm3292, %v3290, %v3294
      %3297 = vst [vmem:[%s415 + $0x18] sm:$0xff] %v3295
      %3298 = vst [vmem:[%s415 + $0x50] sm:$0xff] %v3296
      %v3299 = vld [vmem:[%s8] sm:$0xf]
      %v3300 = vld [vmem:[%s8 + $0x4] sm:$0xf]
      %v3301 = vld [vmem:[%s8 + $0x8] sm:$0xf]
      %v3302 = vld [vmem:[%s8 + $0xc] sm:$0xf]
      %v3303 = vld [vmem:[%s8 + $0x10] sm:$0xf]
      %v3304 = vld [vmem:[%s8 + $0x14] sm:$0xf]
      %v3305 = vld [vmem:[%s8 + $0x18] sm:$0xf]
      %v3306 = vld [vmem:[%s8 + $0x1c] sm:$0xf]
      %v3307 = vld [vmem:[%s8 + $0x20] sm:$0xf]
      %v3308 = vld [vmem:[%s8 + $0x24] sm:$0xf]
      %v3309 = vld [vmem:[%s8 + $0x28] sm:$0xf]
      %v3310 = vld [vmem:[%s8 + $0x2c] sm:$0xf]
      %v3311 = vld [vmem:[%s8 + $0x30] sm:$0xf]
      %v3312 = vld [vmem:[%s8 + $0x34] sm:$0xf]
      %v3313 = vld [vmem:[%s8 + $0x38] sm:$0xf]
      %v3314 = vld [vmem:[%s8 + $0x3c] sm:$0xf]
      %v3315 = vld [vmem:[%s9] sm:$0xf]
      %v3316 = vld [vmem:[%s9 + $0x4] sm:$0xf]
      %v3317 = vld [vmem:[%s9 + $0x8] sm:$0xf]
      %v3318 = vld [vmem:[%s9 + $0xc] sm:$0xf]
      %v3319 = vld [vmem:[%s9 + $0x10] sm:$0xf]
      %v3320 = vld [vmem:[%s9 + $0x14] sm:$0xf]
      %v3321 = vld [vmem:[%s9 + $0x18] sm:$0xf]
      %v3322 = vld [vmem:[%s9 + $0x1c] sm:$0xf]
      %v3323 = vld [vmem:[%s9 + $0x20] sm:$0xf]
      %v3324 = vld [vmem:[%s9 + $0x24] sm:$0xf]
      %v3325 = vld [vmem:[%s9 + $0x28] sm:$0xf]
      %v3326 = vld [vmem:[%s9 + $0x2c] sm:$0xf]
      %v3327 = vld [vmem:[%s9 + $0x30] sm:$0xf]
      %v3328 = vld [vmem:[%s9 + $0x34] sm:$0xf]
      %v3329 = vld [vmem:[%s9 + $0x38] sm:$0xf]
      %v3330 = vld [vmem:[%s9 + $0x3c] sm:$0xf]
      %v3333 = vunpack.c.l.b16 %v2585
      %v3334 = vunpack.c.l.b16 %v2589
      %v3335 = vpack.c.b16 %v3334, %v3333
      %v3353 = vunpack.c.l.b16 %v3315
      %v3354 = vunpack.c.l.b16 %v3316
      %v3355 = vunpack.c.l.b16 %v3317
      %v3356 = vunpack.c.l.b16 %v3318
      %v3357 = vunpack.c.l.b16 %v3319
      %v3358 = vunpack.c.l.b16 %v3320
      %v3359 = vunpack.c.l.b16 %v3321
      %v3360 = vunpack.c.l.b16 %v3322
      %v3361 = vunpack.c.l.b16 %v3323
      %v3362 = vunpack.c.l.b16 %v3324
      %v3363 = vunpack.c.l.b16 %v3325
      %v3364 = vunpack.c.l.b16 %v3326
      %v3365 = vunpack.c.l.b16 %v3327
      %v3366 = vunpack.c.l.b16 %v3328
      %v3367 = vunpack.c.l.b16 %v3329
      %v3368 = vunpack.c.l.b16 %v3330
      %v3369 = vpack.c.b16 %v3354, %v3353
      %v3370 = vpack.c.b16 %v3356, %v3355
      %v3371 = vpack.c.b16 %v3358, %v3357
      %v3372 = vpack.c.b16 %v3360, %v3359
      %v3373 = vpack.c.b16 %v3362, %v3361
      %v3374 = vpack.c.b16 %v3364, %v3363
      %v3375 = vpack.c.b16 %v3366, %v3365
      %v3376 = vpack.c.b16 %v3368, %v3367
      %3385 = vmatpush.bf16.msra.mxu0 %v3376
      %3386 = vmatpush.bf16.msra.mxu0 %v3375
      %3387 = vmatpush.bf16.msra.mxu0 %v3374
      %3388 = vmatpush.bf16.msra.mxu0 %v3373
      %3389 = vmatpush.bf16.msra.mxu0 %v3372
      %3390 = vmatpush.bf16.msra.mxu0 %v3371
      %3391 = vmatpush.bf16.msra.mxu0 %v3370
      %3392 = vmatpush.bf16.msra.mxu0 %v3369
      %3393 = vmatmul.bf16.gmra.mxu0 %v3335
      %v3394 = vpop.f32.mrf.mxu0
      %v3395 = vadd.f32 0.0, %v3394
      %v3396 = vpop.f32.mrf.mxu0
      %v3397 = vadd.f32 0.0, %v3396
      %3398 = vdwg.mxu0
      %v3401 = vunpack.c.l.b16 %v2577
      %v3402 = vunpack.c.l.b16 %v2581
      %v3403 = vpack.c.b16 %v3402, %v3401
      %v3421 = vunpack.c.l.b16 %v3299
      %v3422 = vunpack.c.l.b16 %v3300
      %v3423 = vunpack.c.l.b16 %v3301
      %v3424 = vunpack.c.l.b16 %v3302
      %v3425 = vunpack.c.l.b16 %v3303
      %v3426 = vunpack.c.l.b16 %v3304
      %v3427 = vunpack.c.l.b16 %v3305
      %v3428 = vunpack.c.l.b16 %v3306
      %v3429 = vunpack.c.l.b16 %v3307
      %v3430 = vunpack.c.l.b16 %v3308
      %v3431 = vunpack.c.l.b16 %v3309
      %v3432 = vunpack.c.l.b16 %v3310
      %v3433 = vunpack.c.l.b16 %v3311
      %v3434 = vunpack.c.l.b16 %v3312
      %v3435 = vunpack.c.l.b16 %v3313
      %v3436 = vunpack.c.l.b16 %v3314
      %v3437 = vpack.c.b16 %v3422, %v3421
      %v3438 = vpack.c.b16 %v3424, %v3423
      %v3439 = vpack.c.b16 %v3426, %v3425
      %v3440 = vpack.c.b16 %v3428, %v3427
      %v3441 = vpack.c.b16 %v3430, %v3429
      %v3442 = vpack.c.b16 %v3432, %v3431
      %v3443 = vpack.c.b16 %v3434, %v3433
      %v3444 = vpack.c.b16 %v3436, %v3435
      %3453 = vmatpush.bf16.msra.mxu0 %v3444
      %3454 = vmatpush.bf16.msra.mxu0 %v3443
      %3455 = vmatpush.bf16.msra.mxu0 %v3442
      %3456 = vmatpush.bf16.msra.mxu0 %v3441
      %3457 = vmatpush.bf16.msra.mxu0 %v3440
      %3458 = vmatpush.bf16.msra.mxu0 %v3439
      %3459 = vmatpush.bf16.msra.mxu0 %v3438
      %3460 = vmatpush.bf16.msra.mxu0 %v3437
      %3461 = vmatmul.bf16.gmra.mxu0 %v3403
      %v3462 = vpop.f32.mrf.mxu0
      %v3463 = vadd.f32 %v3395, %v3462
      %v3464 = vpop.f32.mrf.mxu0
      %v3465 = vadd.f32 %v3397, %v3464
      %3466 = vdwg.mxu0
      %v3467 = vadd.f32 %v3463, %v2761
      %v3468 = vadd.f32 %v3465, %v2761
      %vm3469 = vcmp.gt.f32.partialorder %v3467, 0.0
      %vm3470 = vcmp.gt.f32.partialorder %v3468, 0.0
      %v3471 = vmul.f32 %v3467, 0.01
      %v3472 = vmul.f32 %v3468, 0.01
      %v3473 = vsel %vm3469, %v3467, %v3471
      %v3474 = vsel %vm3470, %v3468, %v3472
      %3475 = vst [vmem:[%s415 + $0x20] sm:$0xff] %v3473
      %3476 = vst [vmem:[%s415 + $0x58] sm:$0xff] %v3474
      %v3477 = vld [vmem:[%s8] sm:$0xf]
      %v3478 = vld [vmem:[%s8 + $0x4] sm:$0xf]
      %v3479 = vld [vmem:[%s8 + $0x8] sm:$0xf]
      %v3480 = vld [vmem:[%s8 + $0xc] sm:$0xf]
      %v3481 = vld [vmem:[%s8 + $0x10] sm:$0xf]
      %v3482 = vld [vmem:[%s8 + $0x14] sm:$0xf]
      %v3483 = vld [vmem:[%s8 + $0x18] sm:$0xf]
      %v3484 = vld [vmem:[%s8 + $0x1c] sm:$0xf]
      %v3485 = vld [vmem:[%s8 + $0x20] sm:$0xf]
      %v3486 = vld [vmem:[%s8 + $0x24] sm:$0xf]
      %v3487 = vld [vmem:[%s8 + $0x28] sm:$0xf]
      %v3488 = vld [vmem:[%s8 + $0x2c] sm:$0xf]
      %v3489 = vld [vmem:[%s8 + $0x30] sm:$0xf]
      %v3490 = vld [vmem:[%s8 + $0x34] sm:$0xf]
      %v3491 = vld [vmem:[%s8 + $0x38] sm:$0xf]
      %v3492 = vld [vmem:[%s8 + $0x3c] sm:$0xf]
      %v3493 = vld [vmem:[%s9] sm:$0xf]
      %v3494 = vld [vmem:[%s9 + $0x4] sm:$0xf]
      %v3495 = vld [vmem:[%s9 + $0x8] sm:$0xf]
      %v3496 = vld [vmem:[%s9 + $0xc] sm:$0xf]
      %v3497 = vld [vmem:[%s9 + $0x10] sm:$0xf]
      %v3498 = vld [vmem:[%s9 + $0x14] sm:$0xf]
      %v3499 = vld [vmem:[%s9 + $0x18] sm:$0xf]
      %v3500 = vld [vmem:[%s9 + $0x1c] sm:$0xf]
      %v3501 = vld [vmem:[%s9 + $0x20] sm:$0xf]
      %v3502 = vld [vmem:[%s9 + $0x24] sm:$0xf]
      %v3503 = vld [vmem:[%s9 + $0x28] sm:$0xf]
      %v3504 = vld [vmem:[%s9 + $0x2c] sm:$0xf]
      %v3505 = vld [vmem:[%s9 + $0x30] sm:$0xf]
      %v3506 = vld [vmem:[%s9 + $0x34] sm:$0xf]
      %v3507 = vld [vmem:[%s9 + $0x38] sm:$0xf]
      %v3508 = vld [vmem:[%s9 + $0x3c] sm:$0xf]
      %v3509 = vunpack.c.h.b16 %v2585
      %v3510 = vunpack.c.h.b16 %v2589
      %v3511 = vpack.c.b16 %v3510, %v3509
      %v3529 = vunpack.c.l.b16 %v3493
      %v3530 = vunpack.c.l.b16 %v3494
      %v3531 = vunpack.c.l.b16 %v3495
      %v3532 = vunpack.c.l.b16 %v3496
      %v3533 = vunpack.c.l.b16 %v3497
      %v3534 = vunpack.c.l.b16 %v3498
      %v3535 = vunpack.c.l.b16 %v3499
      %v3536 = vunpack.c.l.b16 %v3500
      %v3537 = vunpack.c.l.b16 %v3501
      %v3538 = vunpack.c.l.b16 %v3502
      %v3539 = vunpack.c.l.b16 %v3503
      %v3540 = vunpack.c.l.b16 %v3504
      %v3541 = vunpack.c.l.b16 %v3505
      %v3542 = vunpack.c.l.b16 %v3506
      %v3543 = vunpack.c.l.b16 %v3507
      %v3544 = vunpack.c.l.b16 %v3508
      %v3545 = vpack.c.b16 %v3530, %v3529
      %v3546 = vpack.c.b16 %v3532, %v3531
      %v3547 = vpack.c.b16 %v3534, %v3533
      %v3548 = vpack.c.b16 %v3536, %v3535
      %v3549 = vpack.c.b16 %v3538, %v3537
      %v3550 = vpack.c.b16 %v3540, %v3539
      %v3551 = vpack.c.b16 %v3542, %v3541
      %v3552 = vpack.c.b16 %v3544, %v3543
      %3561 = vmatpush.bf16.msra.mxu0 %v3552
      %3562 = vmatpush.bf16.msra.mxu0 %v3551
      %3563 = vmatpush.bf16.msra.mxu0 %v3550
      %3564 = vmatpush.bf16.msra.mxu0 %v3549
      %3565 = vmatpush.bf16.msra.mxu0 %v3548
      %3566 = vmatpush.bf16.msra.mxu0 %v3547
      %3567 = vmatpush.bf16.msra.mxu0 %v3546
      %3568 = vmatpush.bf16.msra.mxu0 %v3545
      %3569 = vmatmul.bf16.gmra.mxu0 %v3511
      %v3570 = vpop.f32.mrf.mxu0
      %v3571 = vadd.f32 0.0, %v3570
      %v3572 = vpop.f32.mrf.mxu0
      %v3573 = vadd.f32 0.0, %v3572
      %3574 = vdwg.mxu0
      %v3575 = vunpack.c.h.b16 %v2577
      %v3576 = vunpack.c.h.b16 %v2581
      %v3577 = vpack.c.b16 %v3576, %v3575
      %v3595 = vunpack.c.l.b16 %v3477
      %v3596 = vunpack.c.l.b16 %v3478
      %v3597 = vunpack.c.l.b16 %v3479
      %v3598 = vunpack.c.l.b16 %v3480
      %v3599 = vunpack.c.l.b16 %v3481
      %v3600 = vunpack.c.l.b16 %v3482
      %v3601 = vunpack.c.l.b16 %v3483
      %v3602 = vunpack.c.l.b16 %v3484
      %v3603 = vunpack.c.l.b16 %v3485
      %v3604 = vunpack.c.l.b16 %v3486
      %v3605 = vunpack.c.l.b16 %v3487
      %v3606 = vunpack.c.l.b16 %v3488
      %v3607 = vunpack.c.l.b16 %v3489
      %v3608 = vunpack.c.l.b16 %v3490
      %v3609 = vunpack.c.l.b16 %v3491
      %v3610 = vunpack.c.l.b16 %v3492
      %v3611 = vpack.c.b16 %v3596, %v3595
      %v3612 = vpack.c.b16 %v3598, %v3597
      %v3613 = vpack.c.b16 %v3600, %v3599
      %v3614 = vpack.c.b16 %v3602, %v3601
      %v3615 = vpack.c.b16 %v3604, %v3603
      %v3616 = vpack.c.b16 %v3606, %v3605
      %v3617 = vpack.c.b16 %v3608, %v3607
      %v3618 = vpack.c.b16 %v3610, %v3609
      %3627 = vmatpush.bf16.msra.mxu0 %v3618
      %3628 = vmatpush.bf16.msra.mxu0 %v3617
      %3629 = vmatpush.bf16.msra.mxu0 %v3616
      %3630 = vmatpush.bf16.msra.mxu0 %v3615
      %3631 = vmatpush.bf16.msra.mxu0 %v3614
      %3632 = vmatpush.bf16.msra.mxu0 %v3613
      %3633 = vmatpush.bf16.msra.mxu0 %v3612
      %3634 = vmatpush.bf16.msra.mxu0 %v3611
      %3635 = vmatmul.bf16.gmra.mxu0 %v3577
      %v3636 = vpop.f32.mrf.mxu0
      %v3637 = vadd.f32 %v3571, %v3636
      %v3638 = vpop.f32.mrf.mxu0
      %v3639 = vadd.f32 %v3573, %v3638
      %3640 = vdwg.mxu0
      %v3641 = vadd.f32 %v3637, %v2761
      %v3642 = vadd.f32 %v3639, %v2761
      %vm3643 = vcmp.gt.f32.partialorder %v3641, 0.0
      %vm3644 = vcmp.gt.f32.partialorder %v3642, 0.0
      %v3645 = vmul.f32 %v3641, 0.01
      %v3646 = vmul.f32 %v3642, 0.01
      %v3647 = vsel %vm3643, %v3641, %v3645
      %v3648 = vsel %vm3644, %v3642, %v3646
      %3649 = vst [vmem:[%s415 + $0x28] sm:$0xff] %v3647
      %3650 = vst [vmem:[%s415 + $0x60] sm:$0xff] %v3648
      %v3651 = vld [vmem:[%s8] sm:$0xf]
      %v3652 = vld [vmem:[%s8 + $0x4] sm:$0xf]
      %v3653 = vld [vmem:[%s8 + $0x8] sm:$0xf]
      %v3654 = vld [vmem:[%s8 + $0xc] sm:$0xf]
      %v3655 = vld [vmem:[%s8 + $0x10] sm:$0xf]
      %v3656 = vld [vmem:[%s8 + $0x14] sm:$0xf]
      %v3657 = vld [vmem:[%s8 + $0x18] sm:$0xf]
      %v3658 = vld [vmem:[%s8 + $0x1c] sm:$0xf]
      %v3659 = vld [vmem:[%s8 + $0x20] sm:$0xf]
      %v3660 = vld [vmem:[%s8 + $0x24] sm:$0xf]
      %v3661 = vld [vmem:[%s8 + $0x28] sm:$0xf]
      %v3662 = vld [vmem:[%s8 + $0x2c] sm:$0xf]
      %v3663 = vld [vmem:[%s8 + $0x30] sm:$0xf]
      %v3664 = vld [vmem:[%s8 + $0x34] sm:$0xf]
      %v3665 = vld [vmem:[%s8 + $0x38] sm:$0xf]
      %v3666 = vld [vmem:[%s8 + $0x3c] sm:$0xf]
      %v3667 = vld [vmem:[%s9] sm:$0xf]
      %v3668 = vld [vmem:[%s9 + $0x4] sm:$0xf]
      %v3669 = vld [vmem:[%s9 + $0x8] sm:$0xf]
      %v3670 = vld [vmem:[%s9 + $0xc] sm:$0xf]
      %v3671 = vld [vmem:[%s9 + $0x10] sm:$0xf]
      %v3672 = vld [vmem:[%s9 + $0x14] sm:$0xf]
      %v3673 = vld [vmem:[%s9 + $0x18] sm:$0xf]
      %v3674 = vld [vmem:[%s9 + $0x1c] sm:$0xf]
      %v3675 = vld [vmem:[%s9 + $0x20] sm:$0xf]
      %v3676 = vld [vmem:[%s9 + $0x24] sm:$0xf]
      %v3677 = vld [vmem:[%s9 + $0x28] sm:$0xf]
      %v3678 = vld [vmem:[%s9 + $0x2c] sm:$0xf]
      %v3679 = vld [vmem:[%s9 + $0x30] sm:$0xf]
      %v3680 = vld [vmem:[%s9 + $0x34] sm:$0xf]
      %v3681 = vld [vmem:[%s9 + $0x38] sm:$0xf]
      %v3682 = vld [vmem:[%s9 + $0x3c] sm:$0xf]
      %v3685 = vunpack.c.l.b16 %v2586
      %v3686 = vunpack.c.l.b16 %v2590
      %v3687 = vpack.c.b16 %v3686, %v3685
      %v3705 = vunpack.c.l.b16 %v3667
      %v3706 = vunpack.c.l.b16 %v3668
      %v3707 = vunpack.c.l.b16 %v3669
      %v3708 = vunpack.c.l.b16 %v3670
      %v3709 = vunpack.c.l.b16 %v3671
      %v3710 = vunpack.c.l.b16 %v3672
      %v3711 = vunpack.c.l.b16 %v3673
      %v3712 = vunpack.c.l.b16 %v3674
      %v3713 = vunpack.c.l.b16 %v3675
      %v3714 = vunpack.c.l.b16 %v3676
      %v3715 = vunpack.c.l.b16 %v3677
      %v3716 = vunpack.c.l.b16 %v3678
      %v3717 = vunpack.c.l.b16 %v3679
      %v3718 = vunpack.c.l.b16 %v3680
      %v3719 = vunpack.c.l.b16 %v3681
      %v3720 = vunpack.c.l.b16 %v3682
      %v3721 = vpack.c.b16 %v3706, %v3705
      %v3722 = vpack.c.b16 %v3708, %v3707
      %v3723 = vpack.c.b16 %v3710, %v3709
      %v3724 = vpack.c.b16 %v3712, %v3711
      %v3725 = vpack.c.b16 %v3714, %v3713
      %v3726 = vpack.c.b16 %v3716, %v3715
      %v3727 = vpack.c.b16 %v3718, %v3717
      %v3728 = vpack.c.b16 %v3720, %v3719
      %3737 = vmatpush.bf16.msra.mxu0 %v3728
      %3738 = vmatpush.bf16.msra.mxu0 %v3727
      %3739 = vmatpush.bf16.msra.mxu0 %v3726
      %3740 = vmatpush.bf16.msra.mxu0 %v3725
      %3741 = vmatpush.bf16.msra.mxu0 %v3724
      %3742 = vmatpush.bf16.msra.mxu0 %v3723
      %3743 = vmatpush.bf16.msra.mxu0 %v3722
      %3744 = vmatpush.bf16.msra.mxu0 %v3721
      %3745 = vmatmul.bf16.gmra.mxu0 %v3687
      %v3746 = vpop.f32.mrf.mxu0
      %v3747 = vadd.f32 0.0, %v3746
      %v3748 = vpop.f32.mrf.mxu0
      %v3749 = vadd.f32 0.0, %v3748
      %3750 = vdwg.mxu0
      %v3753 = vunpack.c.l.b16 %v2578
      %v3754 = vunpack.c.l.b16 %v2582
      %v3755 = vpack.c.b16 %v3754, %v3753
      %v3773 = vunpack.c.l.b16 %v3651
      %v3774 = vunpack.c.l.b16 %v3652
      %v3775 = vunpack.c.l.b16 %v3653
      %v3776 = vunpack.c.l.b16 %v3654
      %v3777 = vunpack.c.l.b16 %v3655
      %v3778 = vunpack.c.l.b16 %v3656
      %v3779 = vunpack.c.l.b16 %v3657
      %v3780 = vunpack.c.l.b16 %v3658
      %v3781 = vunpack.c.l.b16 %v3659
      %v3782 = vunpack.c.l.b16 %v3660
      %v3783 = vunpack.c.l.b16 %v3661
      %v3784 = vunpack.c.l.b16 %v3662
      %v3785 = vunpack.c.l.b16 %v3663
      %v3786 = vunpack.c.l.b16 %v3664
      %v3787 = vunpack.c.l.b16 %v3665
      %v3788 = vunpack.c.l.b16 %v3666
      %v3789 = vpack.c.b16 %v3774, %v3773
      %v3790 = vpack.c.b16 %v3776, %v3775
      %v3791 = vpack.c.b16 %v3778, %v3777
      %v3792 = vpack.c.b16 %v3780, %v3779
      %v3793 = vpack.c.b16 %v3782, %v3781
      %v3794 = vpack.c.b16 %v3784, %v3783
      %v3795 = vpack.c.b16 %v3786, %v3785
      %v3796 = vpack.c.b16 %v3788, %v3787
      %3805 = vmatpush.bf16.msra.mxu0 %v3796
      %3806 = vmatpush.bf16.msra.mxu0 %v3795
      %3807 = vmatpush.bf16.msra.mxu0 %v3794
      %3808 = vmatpush.bf16.msra.mxu0 %v3793
      %3809 = vmatpush.bf16.msra.mxu0 %v3792
      %3810 = vmatpush.bf16.msra.mxu0 %v3791
      %3811 = vmatpush.bf16.msra.mxu0 %v3790
      %3812 = vmatpush.bf16.msra.mxu0 %v3789
      %3813 = vmatmul.bf16.gmra.mxu0 %v3755
      %v3814 = vpop.f32.mrf.mxu0
      %v3815 = vadd.f32 %v3747, %v3814
      %v3816 = vpop.f32.mrf.mxu0
      %v3817 = vadd.f32 %v3749, %v3816
      %3818 = vdwg.mxu0
      %v3819 = vadd.f32 %v3815, %v2761
      %v3820 = vadd.f32 %v3817, %v2761
      %vm3821 = vcmp.gt.f32.partialorder %v3819, 0.0
      %vm3822 = vcmp.gt.f32.partialorder %v3820, 0.0
      %v3823 = vmul.f32 %v3819, 0.01
      %v3824 = vmul.f32 %v3820, 0.01
      %v3825 = vsel %vm3821, %v3819, %v3823
      %v3826 = vsel %vm3822, %v3820, %v3824
      %3827 = vst [vmem:[%s415 + $0x30] sm:$0xff] %v3825
      %3828 = vst [vmem:[%s415 + $0x68] sm:$0xff] %v3826
      %s3829 = smul.u32 2, %s22
      %p3830 = scmp.lt.s32.totalorder %s3829, 5
      %s3831 = scalar_select %p3830, %s3829, 5
      %s3832 = smul.addr %s3831, 7
      %s3833 = smul.addr %s3832, 8
      %s3834 = scalar_lea.vmem %s11, %s3833
      // Predicated region
      $region65: #{melody_encoder_pallas.1} parent=63 // pred_check
        %p3835 = pneg %p281
      $region66: #{melody_encoder_pallas.1} parent=63 // pred_check_branch
        %3837 = sbr.rel (%p3835) target = $region68
      $region67: #{melody_encoder_pallas.1} parent=63 // pred_region
        %s3838 = smul.u32 2, %s22
      $region68: #{melody_encoder_pallas.1} parent=63 // pred_fallthru
        _
    $region64: #{melody_encoder_pallas.1} parent=5 // pred_fallthru
      _
    %p3839 = scmp.le.s32.totalorder 2, %s17
    // Predicated region
    $region69: #{melody_encoder_pallas.1} parent=5 // pred_check
      %p3840 = pneg %p3839
    $region70: #{melody_encoder_pallas.1} parent=5 // pred_check_branch
      %3842 = sbr.rel (%p3840) target = $region72
    $region71: #{melody_encoder_pallas.1} parent=5 // pred_region
      %s3843 = ssub.s32 %s17, 2
      // Predicated region
      $region73: #{melody_encoder_pallas.1} parent=71 // pred_check
        %p3844 = pneg %p287
      $region74: #{melody_encoder_pallas.1} parent=71 // pred_check_branch
        %3846 = sbr.rel (%p3844) target = $region76
      $region75: #{melody_encoder_pallas.1} parent=71 // pred_region
        %s3847 = smul.u32 2, %s23
        %p3848 = scmp.lt.s32.totalorder %s3847, 5
        %s3849 = scalar_select %p3848, %s3847, 5
        %s3850 = smul.addr %s3849, 7
        %s3851 = smul.addr %s3850, 8
        %s3852 = scalar_lea.vmem %s11, %s3851
      $region76: #{melody_encoder_pallas.1} parent=71 // pred_fallthru
        _
    $region72: #{melody_encoder_pallas.1} parent=5 // pred_fallthru
      _
  $region6: #{melody_encoder_pallas.1} parent=0 // loop_footer
    %s21 = sadd.s32 1, %s17
  $region7: #{melody_encoder_pallas.1} parent=0 // loop_footer_branch
    %16 = sbr.rel target = $region3
  $region8: #{melody_encoder_pallas.1} parent=0 // loop_exit
    _

</llo_original>
